<compile_context>
chip_gen: v6e
topology: v6e:2x2x1
jax: 0.10.0
libtpu: 0.0.40
codegen_flags: <defaults>
</compile_context>

<pallas_src>
import math

import jax
import jax.numpy as jnp
from jax import lax
from jax.experimental import pallas as pl
from jax.experimental.pallas import tpu as pltpu

EPS = 1e-6
NEG_INF = -1e9


def _build_kernel(S, Se, D, H, DK, TQ):
    def kernel(x_ref, e_ref, tb_ref, sb_ref,
               wq_ref, wkv_ref, wo_ref, ffw1_ref, ffb1_ref, ffw2_ref,
               vecs_ref, out_ref,
               k1_scr, v1_scr, k2_scr, v2_scr):
        j = pl.program_id(1)
        vecs = vecs_ref[...]                     # (16, D) f32 packed vectors
        # rows: 0 bq1*s, 1 bk1, 2 bv1, 3 bq2*s, 4 bk2, 5 bv2,
        #       6 bo1, 7 bo2, 8 ff_b2, 9..14 norm{1,2,3}_{a,b}, 15 pad

        # ---- hoisted K/V projections: once per batch (j == 0) --------------
        def project_kv(src_f32, wkv, bk, bv, k_scr, v_scr):
            kv = jnp.dot(src_f32.astype(jnp.bfloat16), wkv,
                         preferred_element_type=jnp.float32)      # (Sk, 2D)
            k2d = kv[:, :D] + bk
            v2d = kv[:, D:] + bv
            for h in range(H):
                sl = slice(h * DK, (h + 1) * DK)
                k_scr[h] = k2d[:, sl].astype(jnp.bfloat16)
                v_scr[h] = v2d[:, sl].astype(jnp.bfloat16)

        @pl.when(j == 0)
        def _():
            project_kv(x_ref[0], wkv_ref[0], vecs[1:2], vecs[2:3],
                       k1_scr, v1_scr)                            # self-attn K/V
            project_kv(e_ref[0], wkv_ref[1], vecs[4:5], vecs[5:6],
                       k2_scr, v2_scr)                            # cross-attn K/V

        # ---- query tile, sliced from the resident full-x block -------------
        q_start = pl.multiple_of(j * TQ, TQ)
        xq = x_ref[0, pl.ds(q_start, TQ), :]                      # (TQ, D) f32

        def layer_norm(y, alpha, beta):
            # torch Norm: alpha * (y - mean) / (std_unbiased + eps) + beta
            mu = jnp.mean(y, axis=-1, keepdims=True)
            diff = y - mu
            var = jnp.sum(diff * diff, axis=-1, keepdims=True) * (1.0 / (D - 1))
            return alpha * diff / (jnp.sqrt(var) + EPS) + beta

        def attend(q_src, wq, bq, k_scr, v_scr, bias, wo, bo):
            # q_src: (TQ, D) f32.  wq (D, D) bf16 (1/sqrt(dk) folded),
            # bq (1, D) f32 (scaled), k/v scratch (H, Sk, DK) bf16,
            # bias additive f32 broadcastable to (TQ, Sk), wo (D, D) bf16.
            q2d = jnp.dot(q_src.astype(jnp.bfloat16), wq,
                          preferred_element_type=jnp.float32) + bq   # (TQ, D)
            outs = []
            for h in range(H):
                q_h = q2d[:, h * DK:(h + 1) * DK].astype(jnp.bfloat16)
                s = lax.dot_general(q_h, k_scr[h],
                                    (((1,), (1,)), ((), ())),
                                    preferred_element_type=jnp.float32)  # (TQ, Sk)
                s = s + bias
                m = jnp.max(s, axis=-1, keepdims=True)
                p = jnp.exp(s - m)
                denom = jnp.sum(p, axis=-1, keepdims=True)
                o = jnp.dot(p.astype(jnp.bfloat16), v_scr[h],
                            preferred_element_type=jnp.float32)          # (TQ, DK)
                outs.append(o * pl.reciprocal(denom, approx=True))
            o_cat = jnp.concatenate(outs, axis=-1)                       # (TQ, D)
            return jnp.dot(o_cat.astype(jnp.bfloat16), wo,
                           preferred_element_type=jnp.float32) + bo

        # ---- self attention (trg mask) + residual + norm --------------------
        a1 = attend(xq, wq_ref[0], vecs[0:1], k1_scr, v1_scr,
                    tb_ref[0], wo_ref[0], vecs[6:7])
        x1 = layer_norm(xq + a1, vecs[9:10], vecs[10:11])

        # ---- cross attention (src mask) + residual + norm -------------------
        a2 = attend(x1, wq_ref[1], vecs[3:4], k2_scr, v2_scr,
                    sb_ref[0], wo_ref[1], vecs[7:8])
        x2 = layer_norm(x1 + a2, vecs[11:12], vecs[12:13])

        # ---- feed forward + residual + norm ---------------------------------
        hid = jnp.maximum(
            jnp.dot(x2.astype(jnp.bfloat16), ffw1_ref[...],
                    preferred_element_type=jnp.float32) + ffb1_ref[...], 0.0)
        ff = jnp.dot(hid.astype(jnp.bfloat16), ffw2_ref[...],
                     preferred_element_type=jnp.float32) + vecs[8:9]
        x3 = layer_norm(x2 + ff, vecs[13:14], vecs[14:15])

        out_ref[0] = x3.astype(out_ref.dtype)

    return kernel


def _vmem_limit_bytes():
    try:
        cap = pltpu.get_tpu_info().vmem_capacity_bytes
    except Exception:
        cap = 64 * 1024 * 1024
    return min(int(cap * 3 // 4), 96 * 1024 * 1024)


# ---------------- wrapper: parameter packing + pallas_call -------------------
def decoder_layer_forward(x, e_outputs, src_mask, trg_mask, params, heads,
                          q_block=None):
    B, S, D = x.shape
    Se = e_outputs.shape[1]
    DFF = params["ff_w1"].shape[1]
    H = heads
    assert D % H == 0
    DK = D // H
    inv_sqrt_dk = 1.0 / math.sqrt(DK)

    TQ = min(S, 256) if q_block is None else q_block
    assert S % TQ == 0 and (TQ % 8 == 0 or TQ == S)

    # ---- consolidate / pre-fold parameters (plain XLA, outside the kernel) --
    w_q = jnp.stack([params["attn1_wq"] * inv_sqrt_dk,
                     params["attn2_wq"] * inv_sqrt_dk]).astype(jnp.bfloat16)
    w_kv = jnp.stack([
        jnp.concatenate([params["attn1_wk"], params["attn1_wv"]], axis=1),
        jnp.concatenate([params["attn2_wk"], params["attn2_wv"]], axis=1),
    ]).astype(jnp.bfloat16)                                    # (2, D, 2D)
    w_o = jnp.stack([params["attn1_wo"],
                     params["attn2_wo"]]).astype(jnp.bfloat16)  # (2, D, D)
    vecs = jnp.concatenate([
        params["attn1_bq"] * inv_sqrt_dk, params["attn1_bk"], params["attn1_bv"],
        params["attn2_bq"] * inv_sqrt_dk, params["attn2_bk"], params["attn2_bv"],
        params["attn1_bo"], params["attn2_bo"], params["ff_b2"],
        params["norm1_a"], params["norm1_b"],
        params["norm2_a"], params["norm2_b"],
        params["norm3_a"], params["norm3_b"],
        jnp.zeros((1, D), jnp.float32),
    ], axis=0).astype(jnp.float32)                             # (16, D)
    ff_w1 = params["ff_w1"].astype(jnp.bfloat16)               # (D, DFF)
    ff_b1 = params["ff_b1"].astype(jnp.float32)                # (1, DFF)
    ff_w2 = params["ff_w2"].astype(jnp.bfloat16)               # (DFF, D)

    # additive mask biases (computed once here, shared by every head/step)
    # TODO(synk): pass masks as int8 (4x less DMA) once sub-byte tile
    # constraints for small TQ are handled.
    trg_bias = jnp.where(trg_mask == 0.0, NEG_INF, 0.0).astype(jnp.float32)
    src_bias = jnp.where(src_mask == 0.0, NEG_INF, 0.0).astype(jnp.float32)

    kernel = _build_kernel(S, Se, D, H, DK, TQ)

    in_specs = [
        pl.BlockSpec((1, S, D), lambda b, j: (b, 0, 0)),        # x (full seq)
        pl.BlockSpec((1, Se, D), lambda b, j: (b, 0, 0)),       # e_outputs
        pl.BlockSpec((1, TQ, S), lambda b, j: (b, j, 0)),       # trg bias tile
        pl.BlockSpec((1, 1, Se), lambda b, j: (b, 0, 0)),       # src bias
        # grid-invariant parameters (constant block index -> DMA'd once)
        pl.BlockSpec((2, D, D), lambda b, j: (0, 0, 0)),        # w_q
        pl.BlockSpec((2, D, 2 * D), lambda b, j: (0, 0, 0)),    # w_kv
        pl.BlockSpec((2, D, D), lambda b, j: (0, 0, 0)),        # w_o
        pl.BlockSpec((D, DFF), lambda b, j: (0, 0)),            # ff_w1
        pl.BlockSpec((1, DFF), lambda b, j: (0, 0)),            # ff_b1
        pl.BlockSpec((DFF, D), lambda b, j: (0, 0)),            # ff_w2
        pl.BlockSpec((16, D), lambda b, j: (0, 0)),             # packed vectors
    ]
    out_spec = pl.BlockSpec((1, TQ, D), lambda b, j: (b, j, 0))

    fn = pl.pallas_call(
        kernel,
        out_shape=jax.ShapeDtypeStruct((B, S, D), jnp.float32),
        grid_spec=pltpu.PrefetchScalarGridSpec(
            num_scalar_prefetch=0,
            grid=(B, S // TQ),
            in_specs=in_specs,
            out_specs=out_spec,
            scratch_shapes=[
                pltpu.VMEM((H, S, DK), jnp.bfloat16),    # self-attn K
                pltpu.VMEM((H, S, DK), jnp.bfloat16),    # self-attn V
                pltpu.VMEM((H, Se, DK), jnp.bfloat16),   # cross-attn K
                pltpu.VMEM((H, Se, DK), jnp.bfloat16),   # cross-attn V
            ],
        ),
        compiler_params=pltpu.CompilerParams(
            # j must be sequential so the hoisted K/V scratch is reused;
            # batch stays parallel for the megacore split.
            dimension_semantics=("parallel", "arbitrary"),
            vmem_limit_bytes=_vmem_limit_bytes(),
        ),
    )
    return fn(x, e_outputs, trg_bias, src_bias,
              w_q, w_kv, w_o, ff_w1, ff_b1, ff_w2, vecs)


# ---------------- pure-JAX f32 reference (mirrors the PyTorch semantics) -----
def _ref_norm(y, alpha, bias):
    mu = y.mean(-1, keepdims=True)
    diff = y - mu
    std = jnp.sqrt((diff * diff).sum(-1, keepdims=True) / (y.shape[-1] - 1))
    return alpha[0] * diff / (std + EPS) + bias[0]


def _ref_mha(xq, xkv, wq, bq, wk, bk, wv, bv, wo, bo, mask, H):
    B, Sq, D = xq.shape
    Sk = xkv.shape[1]
    dk = D // H
    q = (xq @ wq + bq).reshape(B, Sq, H, dk).transpose(0, 2, 1, 3)
    k = (xkv @ wk + bk).reshape(B, Sk, H, dk).transpose(0, 2, 1, 3)
    v = (xkv @ wv + bv).reshape(B, Sk, H, dk).transpose(0, 2, 1, 3)
    s = q @ k.transpose(0, 1, 3, 2) / math.sqrt(dk)
    s = jnp.where(mask[:, None] == 0.0, NEG_INF, s)
    p = jax.nn.softmax(s, axis=-1)
    o = (p @ v).transpose(0, 2, 1, 3).reshape(B, Sq, D)
    return o @ wo + bo


def ref_forward(x, e, src_mask, trg_mask, prm, H):
    a1 = _ref_mha(x, x, prm["attn1_wq"], prm["attn1_bq"], prm["attn1_wk"],
                  prm["attn1_bk"], prm["attn1_wv"], prm["attn1_bv"],
                  prm["attn1_wo"], prm["attn1_bo"], trg_mask, H)
    x = _ref_norm(x + a1, prm["norm1_a"], prm["norm1_b"])
    a2 = _ref_mha(x, e, prm["attn2_wq"], prm["attn2_bq"], prm["attn2_wk"],
                  prm["attn2_bk"], prm["attn2_wv"], prm["attn2_bv"],
                  prm["attn2_wo"], prm["attn2_bo"], src_mask, H)
    x = _ref_norm(x + a2, prm["norm2_a"], prm["norm2_b"])
    h = jnp.maximum(x @ prm["ff_w1"] + prm["ff_b1"], 0.0)
    ff = h @ prm["ff_w2"] + prm["ff_b2"]
    x = _ref_norm(x + ff, prm["norm3_a"], prm["norm3_b"])
    return x


# ---------------- parameter construction -------------------------------------
def init_params(key, d_model, heads, d_ff):
    keys = jax.random.split(key, 32)
    it = iter(keys)

    def lin(kin, kout):
        return 0.05 * jax.random.normal(next(it), (kin, kout), jnp.float32)

    def bias(kout):
        return 0.05 * jax.random.normal(next(it), (1, kout), jnp.float32)

    p = {}
    for name in ("attn1", "attn2"):
        p[f"{name}_wq"] = lin(d_model, d_model)
        p[f"{name}_bq"] = bias(d_model)
        p[f"{name}_wk"] = lin(d_model, d_model)
        p[f"{name}_bk"] = bias(d_model)
        p[f"{name}_wv"] = lin(d_model, d_model)
        p[f"{name}_bv"] = bias(d_model)
        p[f"{name}_wo"] = lin(d_model, d_model)
        p[f"{name}_bo"] = bias(d_model)
    for name in ("norm1", "norm2", "norm3"):
        p[f"{name}_a"] = jnp.ones((1, d_model), jnp.float32)
        p[f"{name}_b"] = jnp.zeros((1, d_model), jnp.float32)
    p["ff_w1"] = lin(d_model, d_ff)
    p["ff_b1"] = bias(d_ff)
    p["ff_w2"] = lin(d_ff, d_model)
    p["ff_b2"] = bias(d_model)
    return p


if __name__ == "__main__":
    # NOTE: for real model sizes choose D (and DK) as multiples of 128 so the
    # lane axis of every block is dense; the toy config below is deliberately
    # small and exercises the (batch, query-tile) grid with 2x2 steps, which
    # also tests K/V scratch reuse across j > 0.
    B, S, Se, D, H, DFF = 2, 16, 8, 32, 4, 64

    key = jax.random.PRNGKey(0)
    k_x, k_e, k_p = jax.random.split(key, 3)

    x = jax.random.normal(k_x, (B, S, D), jnp.float32)
    e_outputs = jax.random.normal(k_e, (B, Se, D), jnp.float32)

    # causal target mask (B, S, S) and src padding mask (B, 1, Se)
    trg_mask = jnp.broadcast_to(
        jnp.tril(jnp.ones((S, S), jnp.float32)), (B, S, S))
    src_mask = jnp.ones((B, 1, Se), jnp.float32)
    src_mask = src_mask.at[:, :, Se - 2:].set(0.0)  # last 2 src tokens are pad

    params = init_params(k_p, D, H, DFF)

    out = decoder_layer_forward(x, e_outputs, src_mask, trg_mask, params, H,
                                q_block=8)
    out = jax.block_until_ready(out)

    ref = ref_forward(x, e_outputs, src_mask, trg_mask, params, H)
    assert out.shape == (B, S, D)
    # bf16 matmul operands + approx softmax reciprocal => compare against the
    # f32 reference with a correspondingly relaxed tolerance.
    max_err = float(jnp.max(jnp.abs(out - ref)))
    assert jnp.allclose(out, ref, atol=5e-2, rtol=5e-2), max_err

    print("KERNEL_OK")
</pallas_src>

<mosaic_0001>
module attributes {stable_mosaic.version = 11 : i64} {
  func.func @kernel(%arg0: i32, %arg1: i32, %arg2: memref<1x16x32xf32, #tpu.memory_space<vmem>>, %arg3: memref<1x8x32xf32, #tpu.memory_space<vmem>>, %arg4: memref<1x8x16xf32, #tpu.memory_space<vmem>>, %arg5: memref<1x1x8xf32, #tpu.memory_space<vmem>>, %arg6: memref<2x32x32xbf16, #tpu.memory_space<vmem>>, %arg7: memref<2x32x64xbf16, #tpu.memory_space<vmem>>, %arg8: memref<2x32x32xbf16, #tpu.memory_space<vmem>>, %arg9: memref<32x64xbf16, #tpu.memory_space<vmem>>, %arg10: memref<1x64xf32, #tpu.memory_space<vmem>>, %arg11: memref<64x32xbf16, #tpu.memory_space<vmem>>, %arg12: memref<16x32xf32, #tpu.memory_space<vmem>>, %arg13: memref<1x8x32xf32, #tpu.memory_space<vmem>>, %arg14: memref<4x16x8xbf16, #tpu.memory_space<vmem>>, %arg15: memref<4x16x8xbf16, #tpu.memory_space<vmem>>, %arg16: memref<4x8x8xbf16, #tpu.memory_space<vmem>>, %arg17: memref<4x8x8xbf16, #tpu.memory_space<vmem>>) attributes {dimension_semantics = [#tpu.dimension_semantics<parallel>, #tpu.dimension_semantics<arbitrary>], iteration_bounds = array<i64: 2, 2>, scalar_prefetch = 0 : i64, scratch_operands = 4 : i64, tpu.core_type = #tpu.core_type<tc>, window_params = [{transform_indices = @transform_0, window_bounds = array<i64: 1, 16, 32>}, {transform_indices = @transform_1, window_bounds = array<i64: 1, 8, 32>}, {transform_indices = @transform_2, window_bounds = array<i64: 1, 8, 16>}, {transform_indices = @transform_3, window_bounds = array<i64: 1, 1, 8>}, {pipeline_mode = #tpu.pipeline_mode<synchronous>, transform_indices = @transform_4, window_bounds = array<i64: 2, 32, 32>}, {pipeline_mode = #tpu.pipeline_mode<synchronous>, transform_indices = @transform_5, window_bounds = array<i64: 2, 32, 64>}, {pipeline_mode = #tpu.pipeline_mode<synchronous>, transform_indices = @transform_6, window_bounds = array<i64: 2, 32, 32>}, {pipeline_mode = #tpu.pipeline_mode<synchronous>, transform_indices = @transform_7, window_bounds = array<i64: 32, 64>}, {pipeline_mode = #tpu.pipeline_mode<synchronous>, transform_indices = @transform_8, window_bounds = array<i64: 1, 64>}, {pipeline_mode = #tpu.pipeline_mode<synchronous>, transform_indices = @transform_9, window_bounds = array<i64: 64, 32>}, {pipeline_mode = #tpu.pipeline_mode<synchronous>, transform_indices = @transform_10, window_bounds = array<i64: 16, 32>}, {transform_indices = @transform_11, window_bounds = array<i64: 1, 8, 32>}]} {
    %c0 = arith.constant 0 : index
    %c0_0 = arith.constant 0 : index
    %0 = vector.load %arg12[%c0, %c0_0] : memref<16x32xf32, #tpu.memory_space<vmem>>, vector<16x32xf32>
    %c0_i32 = arith.constant 0 : i32
    %1 = arith.cmpi eq, %arg1, %c0_i32 : i32
    %2 = arith.extui %1 : i1 to i32
    %c0_i32_1 = arith.constant 0 : i32
    %3 = arith.cmpi ne, %2, %c0_i32_1 : i32
    scf.if %3 {
      %c0_129 = arith.constant 0 : index
      %c0_130 = arith.constant 0 : index
      %c0_131 = arith.constant 0 : index
      %293 = vector.load %arg2[%c0_129, %c0_130, %c0_131] : memref<1x16x32xf32, #tpu.memory_space<vmem>>, vector<1x16x32xf32>
      %294 = vector.shape_cast %293 : vector<1x16x32xf32> to vector<16x32xf32>
      %c0_132 = arith.constant 0 : index
      %c0_133 = arith.constant 0 : index
      %c0_134 = arith.constant 0 : index
      %295 = vector.load %arg7[%c0_132, %c0_133, %c0_134] : memref<2x32x64xbf16, #tpu.memory_space<vmem>>, vector<1x32x64xbf16>
      %296 = vector.shape_cast %295 : vector<1x32x64xbf16> to vector<32x64xbf16>
      %297 = vector.extract_strided_slice %0 {offsets = [1, 0], sizes = [1, 32], strides = [1, 1]} : vector<16x32xf32> to vector<1x32xf32>
      %298 = vector.extract_strided_slice %0 {offsets = [2, 0], sizes = [1, 32], strides = [1, 1]} : vector<16x32xf32> to vector<1x32xf32>
      %299 = arith.truncf %294 : vector<16x32xf32> to vector<16x32xbf16>
      %cst_135 = arith.constant dense<0.000000e+00> : vector<16x64xf32>
      %300 = tpu.matmul %299, %296, %cst_135 {dimension_numbers = #tpu.dot_dimension_numbers<[1], [0], [0], [1], [0, 0, 1, 1], [], []>} : vector<16x32xbf16>, vector<32x64xbf16>, vector<16x64xf32> -> vector<16x64xf32>
      %301 = vector.extract_strided_slice %300 {offsets = [0, 0], sizes = [16, 32], strides = [1, 1]} : vector<16x64xf32> to vector<16x32xf32>
      %302 = vector.broadcast %297 : vector<1x32xf32> to vector<16x32xf32>
      %303 = arith.addf %301, %302 : vector<16x32xf32>
      %304 = vector.extract_strided_slice %300 {offsets = [0, 32], sizes = [16, 32], strides = [1, 1]} : vector<16x64xf32> to vector<16x32xf32>
      %305 = vector.broadcast %298 : vector<1x32xf32> to vector<16x32xf32>
      %306 = arith.addf %304, %305 : vector<16x32xf32>
      %307 = vector.extract_strided_slice %303 {offsets = [0, 0], sizes = [16, 8], strides = [1, 1]} : vector<16x32xf32> to vector<16x8xf32>
      %308 = arith.truncf %307 : vector<16x8xf32> to vector<16x8xbf16>
      %c0_136 = arith.constant 0 : index
      %c0_137 = arith.constant 0 : index
      %c0_138 = arith.constant 0 : index
      %309 = vector.load %arg14[%c0_136, %c0_137, %c0_138] : memref<4x16x8xbf16, #tpu.memory_space<vmem>>, vector<1x16x8xbf16>
      %310 = vector.shape_cast %309 : vector<1x16x8xbf16> to vector<16x8xbf16>
      %311 = vector.shape_cast %308 : vector<16x8xbf16> to vector<1x16x8xbf16>
      tpu.vector_store %arg14[%c0_136, %c0_137, %c0_138], %311 {strides = array<i32>} : memref<4x16x8xbf16, #tpu.memory_space<vmem>>, vector<1x16x8xbf16>,
      %312 = vector.extract_strided_slice %306 {offsets = [0, 0], sizes = [16, 8], strides = [1, 1]} : vector<16x32xf32> to vector<16x8xf32>
      %313 = arith.truncf %312 : vector<16x8xf32> to vector<16x8xbf16>
      %c0_139 = arith.constant 0 : index
      %c0_140 = arith.constant 0 : index
      %c0_141 = arith.constant 0 : index
      %314 = vector.load %arg15[%c0_139, %c0_140, %c0_141] : memref<4x16x8xbf16, #tpu.memory_space<vmem>>, vector<1x16x8xbf16>
      %315 = vector.shape_cast %314 : vector<1x16x8xbf16> to vector<16x8xbf16>
      %316 = vector.shape_cast %313 : vector<16x8xbf16> to vector<1x16x8xbf16>
      tpu.vector_store %arg15[%c0_139, %c0_140, %c0_141], %316 {strides = array<i32>} : memref<4x16x8xbf16, #tpu.memory_space<vmem>>, vector<1x16x8xbf16>,
      %317 = vector.extract_strided_slice %303 {offsets = [0, 8], sizes = [16, 8], strides = [1, 1]} : vector<16x32xf32> to vector<16x8xf32>
      %318 = arith.truncf %317 : vector<16x8xf32> to vector<16x8xbf16>
      %c1_142 = arith.constant 1 : index
      %c0_143 = arith.constant 0 : index
      %c0_144 = arith.constant 0 : index
      %319 = vector.load %arg14[%c1_142, %c0_143, %c0_144] : memref<4x16x8xbf16, #tpu.memory_space<vmem>>, vector<1x16x8xbf16>
      %320 = vector.shape_cast %319 : vector<1x16x8xbf16> to vector<16x8xbf16>
      %321 = vector.shape_cast %318 : vector<16x8xbf16> to vector<1x16x8xbf16>
      tpu.vector_store %arg14[%c1_142, %c0_143, %c0_144], %321 {strides = array<i32>} : memref<4x16x8xbf16, #tpu.memory_space<vmem>>, vector<1x16x8xbf16>,
      %322 = vector.extract_strided_slice %306 {offsets = [0, 8], sizes = [16, 8], strides = [1, 1]} : vector<16x32xf32> to vector<16x8xf32>
      %323 = arith.truncf %322 : vector<16x8xf32> to vector<16x8xbf16>
      %c1_145 = arith.constant 1 : index
      %c0_146 = arith.constant 0 : index
      %c0_147 = arith.constant 0 : index
      %324 = vector.load %arg15[%c1_145, %c0_146, %c0_147] : memref<4x16x8xbf16, #tpu.memory_space<vmem>>, vector<1x16x8xbf16>
      %325 = vector.shape_cast %324 : vector<1x16x8xbf16> to vector<16x8xbf16>
      %326 = vector.shape_cast %323 : vector<16x8xbf16> to vector<1x16x8xbf16>
      tpu.vector_store %arg15[%c1_145, %c0_146, %c0_147], %326 {strides = array<i32>} : memref<4x16x8xbf16, #tpu.memory_space<vmem>>, vector<1x16x8xbf16>,
      %327 = vector.extract_strided_slice %303 {offsets = [0, 16], sizes = [16, 8], strides = [1, 1]} : vector<16x32xf32> to vector<16x8xf32>
      %328 = arith.truncf %327 : vector<16x8xf32> to vector<16x8xbf16>
      %c2_148 = arith.constant 2 : index
      %c0_149 = arith.constant 0 : index
      %c0_150 = arith.constant 0 : index
      %329 = vector.load %arg14[%c2_148, %c0_149, %c0_150] : memref<4x16x8xbf16, #tpu.memory_space<vmem>>, vector<1x16x8xbf16>
      %330 = vector.shape_cast %329 : vector<1x16x8xbf16> to vector<16x8xbf16>
      %331 = vector.shape_cast %328 : vector<16x8xbf16> to vector<1x16x8xbf16>
      tpu.vector_store %arg14[%c2_148, %c0_149, %c0_150], %331 {strides = array<i32>} : memref<4x16x8xbf16, #tpu.memory_space<vmem>>, vector<1x16x8xbf16>,
      %332 = vector.extract_strided_slice %306 {offsets = [0, 16], sizes = [16, 8], strides = [1, 1]} : vector<16x32xf32> to vector<16x8xf32>
      %333 = arith.truncf %332 : vector<16x8xf32> to vector<16x8xbf16>
      %c2_151 = arith.constant 2 : index
      %c0_152 = arith.constant 0 : index
      %c0_153 = arith.constant 0 : index
      %334 = vector.load %arg15[%c2_151, %c0_152, %c0_153] : memref<4x16x8xbf16, #tpu.memory_space<vmem>>, vector<1x16x8xbf16>
      %335 = vector.shape_cast %334 : vector<1x16x8xbf16> to vector<16x8xbf16>
      %336 = vector.shape_cast %333 : vector<16x8xbf16> to vector<1x16x8xbf16>
      tpu.vector_store %arg15[%c2_151, %c0_152, %c0_153], %336 {strides = array<i32>} : memref<4x16x8xbf16, #tpu.memory_space<vmem>>, vector<1x16x8xbf16>,
      %337 = vector.extract_strided_slice %303 {offsets = [0, 24], sizes = [16, 8], strides = [1, 1]} : vector<16x32xf32> to vector<16x8xf32>
      %338 = arith.truncf %337 : vector<16x8xf32> to vector<16x8xbf16>
      %c3_154 = arith.constant 3 : index
      %c0_155 = arith.constant 0 : index
      %c0_156 = arith.constant 0 : index
      %339 = vector.load %arg14[%c3_154, %c0_155, %c0_156] : memref<4x16x8xbf16, #tpu.memory_space<vmem>>, vector<1x16x8xbf16>
      %340 = vector.shape_cast %339 : vector<1x16x8xbf16> to vector<16x8xbf16>
      %341 = vector.shape_cast %338 : vector<16x8xbf16> to vector<1x16x8xbf16>
      tpu.vector_store %arg14[%c3_154, %c0_155, %c0_156], %341 {strides = array<i32>} : memref<4x16x8xbf16, #tpu.memory_space<vmem>>, vector<1x16x8xbf16>,
      %342 = vector.extract_strided_slice %306 {offsets = [0, 24], sizes = [16, 8], strides = [1, 1]} : vector<16x32xf32> to vector<16x8xf32>
      %343 = arith.truncf %342 : vector<16x8xf32> to vector<16x8xbf16>
      %c3_157 = arith.constant 3 : index
      %c0_158 = arith.constant 0 : index
      %c0_159 = arith.constant 0 : index
      %344 = vector.load %arg15[%c3_157, %c0_158, %c0_159] : memref<4x16x8xbf16, #tpu.memory_space<vmem>>, vector<1x16x8xbf16>
      %345 = vector.shape_cast %344 : vector<1x16x8xbf16> to vector<16x8xbf16>
      %346 = vector.shape_cast %343 : vector<16x8xbf16> to vector<1x16x8xbf16>
      tpu.vector_store %arg15[%c3_157, %c0_158, %c0_159], %346 {strides = array<i32>} : memref<4x16x8xbf16, #tpu.memory_space<vmem>>, vector<1x16x8xbf16>,
      %c0_160 = arith.constant 0 : index
      %c0_161 = arith.constant 0 : index
      %c0_162 = arith.constant 0 : index
      %347 = vector.load %arg3[%c0_160, %c0_161, %c0_162] : memref<1x8x32xf32, #tpu.memory_space<vmem>>, vector<1x8x32xf32>
      %348 = vector.shape_cast %347 : vector<1x8x32xf32> to vector<8x32xf32>
      %c1_163 = arith.constant 1 : index
      %c0_164 = arith.constant 0 : index
      %c0_165 = arith.constant 0 : index
      %349 = vector.load %arg7[%c1_163, %c0_164, %c0_165] : memref<2x32x64xbf16, #tpu.memory_space<vmem>>, vector<1x32x64xbf16>
      %350 = vector.shape_cast %349 : vector<1x32x64xbf16> to vector<32x64xbf16>
      %351 = vector.extract_strided_slice %0 {offsets = [4, 0], sizes = [1, 32], strides = [1, 1]} : vector<16x32xf32> to vector<1x32xf32>
      %352 = vector.extract_strided_slice %0 {offsets = [5, 0], sizes = [1, 32], strides = [1, 1]} : vector<16x32xf32> to vector<1x32xf32>
      %353 = arith.truncf %348 : vector<8x32xf32> to vector<8x32xbf16>
      %cst_166 = arith.constant dense<0.000000e+00> : vector<8x64xf32>
      %354 = tpu.matmul %353, %350, %cst_166 {dimension_numbers = #tpu.dot_dimension_numbers<[1], [0], [0], [1], [0, 0, 1, 1], [], []>} : vector<8x32xbf16>, vector<32x64xbf16>, vector<8x64xf32> -> vector<8x64xf32>
      %355 = vector.extract_strided_slice %354 {offsets = [0, 0], sizes = [8, 32], strides = [1, 1]} : vector<8x64xf32> to vector<8x32xf32>
      %356 = vector.broadcast %351 : vector<1x32xf32> to vector<8x32xf32>
      %357 = arith.addf %355, %356 : vector<8x32xf32>
      %358 = vector.extract_strided_slice %354 {offsets = [0, 32], sizes = [8, 32], strides = [1, 1]} : vector<8x64xf32> to vector<8x32xf32>
      %359 = vector.broadcast %352 : vector<1x32xf32> to vector<8x32xf32>
      %360 = arith.addf %358, %359 : vector<8x32xf32>
      %361 = vector.extract_strided_slice %357 {offsets = [0, 0], sizes = [8, 8], strides = [1, 1]} : vector<8x32xf32> to vector<8x8xf32>
      %362 = arith.truncf %361 : vector<8x8xf32> to vector<8x8xbf16>
      %c0_167 = arith.constant 0 : index
      %c0_168 = arith.constant 0 : index
      %c0_169 = arith.constant 0 : index
      %363 = vector.load %arg16[%c0_167, %c0_168, %c0_169] : memref<4x8x8xbf16, #tpu.memory_space<vmem>>, vector<1x8x8xbf16>
      %364 = vector.shape_cast %363 : vector<1x8x8xbf16> to vector<8x8xbf16>
      %365 = vector.shape_cast %362 : vector<8x8xbf16> to vector<1x8x8xbf16>
      tpu.vector_store %arg16[%c0_167, %c0_168, %c0_169], %365 {strides = array<i32>} : memref<4x8x8xbf16, #tpu.memory_space<vmem>>, vector<1x8x8xbf16>,
      %366 = vector.extract_strided_slice %360 {offsets = [0, 0], sizes = [8, 8], strides = [1, 1]} : vector<8x32xf32> to vector<8x8xf32>
      %367 = arith.truncf %366 : vector<8x8xf32> to vector<8x8xbf16>
      %c0_170 = arith.constant 0 : index
      %c0_171 = arith.constant 0 : index
      %c0_172 = arith.constant 0 : index
      %368 = vector.load %arg17[%c0_170, %c0_171, %c0_172] : memref<4x8x8xbf16, #tpu.memory_space<vmem>>, vector<1x8x8xbf16>
      %369 = vector.shape_cast %368 : vector<1x8x8xbf16> to vector<8x8xbf16>
      %370 = vector.shape_cast %367 : vector<8x8xbf16> to vector<1x8x8xbf16>
      tpu.vector_store %arg17[%c0_170, %c0_171, %c0_172], %370 {strides = array<i32>} : memref<4x8x8xbf16, #tpu.memory_space<vmem>>, vector<1x8x8xbf16>,
      %371 = vector.extract_strided_slice %357 {offsets = [0, 8], sizes = [8, 8], strides = [1, 1]} : vector<8x32xf32> to vector<8x8xf32>
      %372 = arith.truncf %371 : vector<8x8xf32> to vector<8x8xbf16>
      %c1_173 = arith.constant 1 : index
      %c0_174 = arith.constant 0 : index
      %c0_175 = arith.constant 0 : index
      %373 = vector.load %arg16[%c1_173, %c0_174, %c0_175] : memref<4x8x8xbf16, #tpu.memory_space<vmem>>, vector<1x8x8xbf16>
      %374 = vector.shape_cast %373 : vector<1x8x8xbf16> to vector<8x8xbf16>
      %375 = vector.shape_cast %372 : vector<8x8xbf16> to vector<1x8x8xbf16>
      tpu.vector_store %arg16[%c1_173, %c0_174, %c0_175], %375 {strides = array<i32>} : memref<4x8x8xbf16, #tpu.memory_space<vmem>>, vector<1x8x8xbf16>,
      %376 = vector.extract_strided_slice %360 {offsets = [0, 8], sizes = [8, 8], strides = [1, 1]} : vector<8x32xf32> to vector<8x8xf32>
      %377 = arith.truncf %376 : vector<8x8xf32> to vector<8x8xbf16>
      %c1_176 = arith.constant 1 : index
      %c0_177 = arith.constant 0 : index
      %c0_178 = arith.constant 0 : index
      %378 = vector.load %arg17[%c1_176, %c0_177, %c0_178] : memref<4x8x8xbf16, #tpu.memory_space<vmem>>, vector<1x8x8xbf16>
      %379 = vector.shape_cast %378 : vector<1x8x8xbf16> to vector<8x8xbf16>
      %380 = vector.shape_cast %377 : vector<8x8xbf16> to vector<1x8x8xbf16>
      tpu.vector_store %arg17[%c1_176, %c0_177, %c0_178], %380 {strides = array<i32>} : memref<4x8x8xbf16, #tpu.memory_space<vmem>>, vector<1x8x8xbf16>,
      %381 = vector.extract_strided_slice %357 {offsets = [0, 16], sizes = [8, 8], strides = [1, 1]} : vector<8x32xf32> to vector<8x8xf32>
      %382 = arith.truncf %381 : vector<8x8xf32> to vector<8x8xbf16>
      %c2_179 = arith.constant 2 : index
      %c0_180 = arith.constant 0 : index
      %c0_181 = arith.constant 0 : index
      %383 = vector.load %arg16[%c2_179, %c0_180, %c0_181] : memref<4x8x8xbf16, #tpu.memory_space<vmem>>, vector<1x8x8xbf16>
      %384 = vector.shape_cast %383 : vector<1x8x8xbf16> to vector<8x8xbf16>
      %385 = vector.shape_cast %382 : vector<8x8xbf16> to vector<1x8x8xbf16>
      tpu.vector_store %arg16[%c2_179, %c0_180, %c0_181], %385 {strides = array<i32>} : memref<4x8x8xbf16, #tpu.memory_space<vmem>>, vector<1x8x8xbf16>,
      %386 = vector.extract_strided_slice %360 {offsets = [0, 16], sizes = [8, 8], strides = [1, 1]} : vector<8x32xf32> to vector<8x8xf32>
      %387 = arith.truncf %386 : vector<8x8xf32> to vector<8x8xbf16>
      %c2_182 = arith.constant 2 : index
      %c0_183 = arith.constant 0 : index
      %c0_184 = arith.constant 0 : index
      %388 = vector.load %arg17[%c2_182, %c0_183, %c0_184] : memref<4x8x8xbf16, #tpu.memory_space<vmem>>, vector<1x8x8xbf16>
      %389 = vector.shape_cast %388 : vector<1x8x8xbf16> to vector<8x8xbf16>
      %390 = vector.shape_cast %387 : vector<8x8xbf16> to vector<1x8x8xbf16>
      tpu.vector_store %arg17[%c2_182, %c0_183, %c0_184], %390 {strides = array<i32>} : memref<4x8x8xbf16, #tpu.memory_space<vmem>>, vector<1x8x8xbf16>,
      %391 = vector.extract_strided_slice %357 {offsets = [0, 24], sizes = [8, 8], strides = [1, 1]} : vector<8x32xf32> to vector<8x8xf32>
      %392 = arith.truncf %391 : vector<8x8xf32> to vector<8x8xbf16>
      %c3_185 = arith.constant 3 : index
      %c0_186 = arith.constant 0 : index
      %c0_187 = arith.constant 0 : index
      %393 = vector.load %arg16[%c3_185, %c0_186, %c0_187] : memref<4x8x8xbf16, #tpu.memory_space<vmem>>, vector<1x8x8xbf16>
      %394 = vector.shape_cast %393 : vector<1x8x8xbf16> to vector<8x8xbf16>
      %395 = vector.shape_cast %392 : vector<8x8xbf16> to vector<1x8x8xbf16>
      tpu.vector_store %arg16[%c3_185, %c0_186, %c0_187], %395 {strides = array<i32>} : memref<4x8x8xbf16, #tpu.memory_space<vmem>>, vector<1x8x8xbf16>,
      %396 = vector.extract_strided_slice %360 {offsets = [0, 24], sizes = [8, 8], strides = [1, 1]} : vector<8x32xf32> to vector<8x8xf32>
      %397 = arith.truncf %396 : vector<8x8xf32> to vector<8x8xbf16>
      %c3_188 = arith.constant 3 : index
      %c0_189 = arith.constant 0 : index
      %c0_190 = arith.constant 0 : index
      %398 = vector.load %arg17[%c3_188, %c0_189, %c0_190] : memref<4x8x8xbf16, #tpu.memory_space<vmem>>, vector<1x8x8xbf16>
      %399 = vector.shape_cast %398 : vector<1x8x8xbf16> to vector<8x8xbf16>
      %400 = vector.shape_cast %397 : vector<8x8xbf16> to vector<1x8x8xbf16>
      tpu.vector_store %arg17[%c3_188, %c0_189, %c0_190], %400 {strides = array<i32>} : memref<4x8x8xbf16, #tpu.memory_space<vmem>>, vector<1x8x8xbf16>,
    } else {
    }
    %c8_i32 = arith.constant 8 : i32
    %4 = arith.muli %arg1, %c8_i32 : i32
    %5 = tpu.assume_multiple %4, 8 : i32
    %c0_2 = arith.constant 0 : index
    %6 = arith.index_cast %5 : i32 to index
    %c0_3 = arith.constant 0 : index
    %7 = vector.load %arg2[%c0_2, %6, %c0_3] : memref<1x16x32xf32, #tpu.memory_space<vmem>>, vector<1x8x32xf32>
    %8 = vector.shape_cast %7 : vector<1x8x32xf32> to vector<8x32xf32>
    %c0_4 = arith.constant 0 : index
    %c0_5 = arith.constant 0 : index
    %c0_6 = arith.constant 0 : index
    %9 = vector.load %arg6[%c0_4, %c0_5, %c0_6] : memref<2x32x32xbf16, #tpu.memory_space<vmem>>, vector<1x32x32xbf16>
    %10 = vector.shape_cast %9 : vector<1x32x32xbf16> to vector<32x32xbf16>
    %11 = vector.extract_strided_slice %0 {offsets = [0, 0], sizes = [1, 32], strides = [1, 1]} : vector<16x32xf32> to vector<1x32xf32>
    %c0_7 = arith.constant 0 : index
    %c0_8 = arith.constant 0 : index
    %c0_9 = arith.constant 0 : index
    %12 = vector.load %arg4[%c0_7, %c0_8, %c0_9] : memref<1x8x16xf32, #tpu.memory_space<vmem>>, vector<1x8x16xf32>
    %13 = vector.shape_cast %12 : vector<1x8x16xf32> to vector<8x16xf32>
    %c0_10 = arith.constant 0 : index
    %c0_11 = arith.constant 0 : index
    %c0_12 = arith.constant 0 : index
    %14 = vector.load %arg8[%c0_10, %c0_11, %c0_12] : memref<2x32x32xbf16, #tpu.memory_space<vmem>>, vector<1x32x32xbf16>
    %15 = vector.shape_cast %14 : vector<1x32x32xbf16> to vector<32x32xbf16>
    %16 = vector.extract_strided_slice %0 {offsets = [6, 0], sizes = [1, 32], strides = [1, 1]} : vector<16x32xf32> to vector<1x32xf32>
    %17 = arith.truncf %8 : vector<8x32xf32> to vector<8x32xbf16>
    %cst = arith.constant dense<0.000000e+00> : vector<8x32xf32>
    %18 = tpu.matmul %17, %10, %cst {dimension_numbers = #tpu.dot_dimension_numbers<[1], [0], [0], [1], [0, 0, 1, 1], [], []>} : vector<8x32xbf16>, vector<32x32xbf16>, vector<8x32xf32> -> vector<8x32xf32>
    %19 = vector.broadcast %11 : vector<1x32xf32> to vector<8x32xf32>
    %20 = arith.addf %18, %19 : vector<8x32xf32>
    %21 = vector.extract_strided_slice %20 {offsets = [0, 0], sizes = [8, 8], strides = [1, 1]} : vector<8x32xf32> to vector<8x8xf32>
    %22 = arith.truncf %21 : vector<8x8xf32> to vector<8x8xbf16>
    %c0_13 = arith.constant 0 : index
    %c0_14 = arith.constant 0 : index
    %c0_15 = arith.constant 0 : index
    %23 = vector.load %arg14[%c0_13, %c0_14, %c0_15] : memref<4x16x8xbf16, #tpu.memory_space<vmem>>, vector<1x16x8xbf16>
    %24 = vector.shape_cast %23 : vector<1x16x8xbf16> to vector<16x8xbf16>
    %cst_16 = arith.constant dense<0.000000e+00> : vector<8x16xf32>
    %25 = tpu.matmul %22, %24, %cst_16 {dimension_numbers = #tpu.dot_dimension_numbers<[1], [1], [0], [0], [0, 0, 1, 0], [], []>} : vector<8x8xbf16>, vector<16x8xbf16>, vector<8x16xf32> -> vector<8x16xf32>
    %26 = arith.addf %25, %13 : vector<8x16xf32>
    %cst_17 = arith.constant dense<0xFF800000> : vector<8xf32>
    %27 = vector.multi_reduction <maximumf>, %26, %cst_17 [1] : vector<8x16xf32> to vector<8xf32>
    %28 = vector.shape_cast %27 : vector<8xf32> to vector<8x1xf32>
    %29 = vector.broadcast %28 : vector<8x1xf32> to vector<8x16xf32>
    %30 = arith.subf %26, %29 : vector<8x16xf32>
    %31 = math.exp %30 : vector<8x16xf32>
    %cst_18 = arith.constant dense<0.000000e+00> : vector<8xf32>
    %32 = vector.multi_reduction <add>, %31, %cst_18 [1] : vector<8x16xf32> to vector<8xf32>
    %33 = vector.shape_cast %32 : vector<8xf32> to vector<8x1xf32>
    %34 = arith.truncf %31 : vector<8x16xf32> to vector<8x16xbf16>
    %c0_19 = arith.constant 0 : index
    %c0_20 = arith.constant 0 : index
    %c0_21 = arith.constant 0 : index
    %35 = vector.load %arg15[%c0_19, %c0_20, %c0_21] : memref<4x16x8xbf16, #tpu.memory_space<vmem>>, vector<1x16x8xbf16>
    %36 = vector.shape_cast %35 : vector<1x16x8xbf16> to vector<16x8xbf16>
    %cst_22 = arith.constant dense<0.000000e+00> : vector<8x8xf32>
    %37 = tpu.matmul %34, %36, %cst_22 {dimension_numbers = #tpu.dot_dimension_numbers<[1], [0], [0], [1], [0, 0, 1, 1], [], []>} : vector<8x16xbf16>, vector<16x8xbf16>, vector<8x8xf32> -> vector<8x8xf32>
    %38 = tpu.reciprocal %33 {approx = true} : vector<8x1xf32> -> vector<8x1xf32>
    %39 = vector.broadcast %38 : vector<8x1xf32> to vector<8x8xf32>
    %40 = arith.mulf %37, %39 : vector<8x8xf32>
    %41 = vector.extract_strided_slice %20 {offsets = [0, 8], sizes = [8, 8], strides = [1, 1]} : vector<8x32xf32> to vector<8x8xf32>
    %42 = arith.truncf %41 : vector<8x8xf32> to vector<8x8xbf16>
    %c1 = arith.constant 1 : index
    %c0_23 = arith.constant 0 : index
    %c0_24 = arith.constant 0 : index
    %43 = vector.load %arg14[%c1, %c0_23, %c0_24] : memref<4x16x8xbf16, #tpu.memory_space<vmem>>, vector<1x16x8xbf16>
    %44 = vector.shape_cast %43 : vector<1x16x8xbf16> to vector<16x8xbf16>
    %cst_25 = arith.constant dense<0.000000e+00> : vector<8x16xf32>
    %45 = tpu.matmul %42, %44, %cst_25 {dimension_numbers = #tpu.dot_dimension_numbers<[1], [1], [0], [0], [0, 0, 1, 0], [], []>} : vector<8x8xbf16>, vector<16x8xbf16>, vector<8x16xf32> -> vector<8x16xf32>
    %46 = arith.addf %45, %13 : vector<8x16xf32>
    %cst_26 = arith.constant dense<0xFF800000> : vector<8xf32>
    %47 = vector.multi_reduction <maximumf>, %46, %cst_26 [1] : vector<8x16xf32> to vector<8xf32>
    %48 = vector.shape_cast %47 : vector<8xf32> to vector<8x1xf32>
    %49 = vector.broadcast %48 : vector<8x1xf32> to vector<8x16xf32>
    %50 = arith.subf %46, %49 : vector<8x16xf32>
    %51 = math.exp %50 : vector<8x16xf32>
    %cst_27 = arith.constant dense<0.000000e+00> : vector<8xf32>
    %52 = vector.multi_reduction <add>, %51, %cst_27 [1] : vector<8x16xf32> to vector<8xf32>
    %53 = vector.shape_cast %52 : vector<8xf32> to vector<8x1xf32>
    %54 = arith.truncf %51 : vector<8x16xf32> to vector<8x16xbf16>
    %c1_28 = arith.constant 1 : index
    %c0_29 = arith.constant 0 : index
    %c0_30 = arith.constant 0 : index
    %55 = vector.load %arg15[%c1_28, %c0_29, %c0_30] : memref<4x16x8xbf16, #tpu.memory_space<vmem>>, vector<1x16x8xbf16>
    %56 = vector.shape_cast %55 : vector<1x16x8xbf16> to vector<16x8xbf16>
    %cst_31 = arith.constant dense<0.000000e+00> : vector<8x8xf32>
    %57 = tpu.matmul %54, %56, %cst_31 {dimension_numbers = #tpu.dot_dimension_numbers<[1], [0], [0], [1], [0, 0, 1, 1], [], []>} : vector<8x16xbf16>, vector<16x8xbf16>, vector<8x8xf32> -> vector<8x8xf32>
    %58 = tpu.reciprocal %53 {approx = true} : vector<8x1xf32> -> vector<8x1xf32>
    %59 = vector.broadcast %58 : vector<8x1xf32> to vector<8x8xf32>
    %60 = arith.mulf %57, %59 : vector<8x8xf32>
    %61 = vector.extract_strided_slice %20 {offsets = [0, 16], sizes = [8, 8], strides = [1, 1]} : vector<8x32xf32> to vector<8x8xf32>
    %62 = arith.truncf %61 : vector<8x8xf32> to vector<8x8xbf16>
    %c2 = arith.constant 2 : index
    %c0_32 = arith.constant 0 : index
    %c0_33 = arith.constant 0 : index
    %63 = vector.load %arg14[%c2, %c0_32, %c0_33] : memref<4x16x8xbf16, #tpu.memory_space<vmem>>, vector<1x16x8xbf16>
    %64 = vector.shape_cast %63 : vector<1x16x8xbf16> to vector<16x8xbf16>
    %cst_34 = arith.constant dense<0.000000e+00> : vector<8x16xf32>
    %65 = tpu.matmul %62, %64, %cst_34 {dimension_numbers = #tpu.dot_dimension_numbers<[1], [1], [0], [0], [0, 0, 1, 0], [], []>} : vector<8x8xbf16>, vector<16x8xbf16>, vector<8x16xf32> -> vector<8x16xf32>
    %66 = arith.addf %65, %13 : vector<8x16xf32>
    %cst_35 = arith.constant dense<0xFF800000> : vector<8xf32>
    %67 = vector.multi_reduction <maximumf>, %66, %cst_35 [1] : vector<8x16xf32> to vector<8xf32>
    %68 = vector.shape_cast %67 : vector<8xf32> to vector<8x1xf32>
    %69 = vector.broadcast %68 : vector<8x1xf32> to vector<8x16xf32>
    %70 = arith.subf %66, %69 : vector<8x16xf32>
    %71 = math.exp %70 : vector<8x16xf32>
    %cst_36 = arith.constant dense<0.000000e+00> : vector<8xf32>
    %72 = vector.multi_reduction <add>, %71, %cst_36 [1] : vector<8x16xf32> to vector<8xf32>
    %73 = vector.shape_cast %72 : vector<8xf32> to vector<8x1xf32>
    %74 = arith.truncf %71 : vector<8x16xf32> to vector<8x16xbf16>
    %c2_37 = arith.constant 2 : index
    %c0_38 = arith.constant 0 : index
    %c0_39 = arith.constant 0 : index
    %75 = vector.load %arg15[%c2_37, %c0_38, %c0_39] : memref<4x16x8xbf16, #tpu.memory_space<vmem>>, vector<1x16x8xbf16>
    %76 = vector.shape_cast %75 : vector<1x16x8xbf16> to vector<16x8xbf16>
    %cst_40 = arith.constant dense<0.000000e+00> : vector<8x8xf32>
    %77 = tpu.matmul %74, %76, %cst_40 {dimension_numbers = #tpu.dot_dimension_numbers<[1], [0], [0], [1], [0, 0, 1, 1], [], []>} : vector<8x16xbf16>, vector<16x8xbf16>, vector<8x8xf32> -> vector<8x8xf32>
    %78 = tpu.reciprocal %73 {approx = true} : vector<8x1xf32> -> vector<8x1xf32>
    %79 = vector.broadcast %78 : vector<8x1xf32> to vector<8x8xf32>
    %80 = arith.mulf %77, %79 : vector<8x8xf32>
    %81 = vector.extract_strided_slice %20 {offsets = [0, 24], sizes = [8, 8], strides = [1, 1]} : vector<8x32xf32> to vector<8x8xf32>
    %82 = arith.truncf %81 : vector<8x8xf32> to vector<8x8xbf16>
    %c3 = arith.constant 3 : index
    %c0_41 = arith.constant 0 : index
    %c0_42 = arith.constant 0 : index
    %83 = vector.load %arg14[%c3, %c0_41, %c0_42] : memref<4x16x8xbf16, #tpu.memory_space<vmem>>, vector<1x16x8xbf16>
    %84 = vector.shape_cast %83 : vector<1x16x8xbf16> to vector<16x8xbf16>
    %cst_43 = arith.constant dense<0.000000e+00> : vector<8x16xf32>
    %85 = tpu.matmul %82, %84, %cst_43 {dimension_numbers = #tpu.dot_dimension_numbers<[1], [1], [0], [0], [0, 0, 1, 0], [], []>} : vector<8x8xbf16>, vector<16x8xbf16>, vector<8x16xf32> -> vector<8x16xf32>
    %86 = arith.addf %85, %13 : vector<8x16xf32>
    %cst_44 = arith.constant dense<0xFF800000> : vector<8xf32>
    %87 = vector.multi_reduction <maximumf>, %86, %cst_44 [1] : vector<8x16xf32> to vector<8xf32>
    %88 = vector.shape_cast %87 : vector<8xf32> to vector<8x1xf32>
    %89 = vector.broadcast %88 : vector<8x1xf32> to vector<8x16xf32>
    %90 = arith.subf %86, %89 : vector<8x16xf32>
    %91 = math.exp %90 : vector<8x16xf32>
    %cst_45 = arith.constant dense<0.000000e+00> : vector<8xf32>
    %92 = vector.multi_reduction <add>, %91, %cst_45 [1] : vector<8x16xf32> to vector<8xf32>
    %93 = vector.shape_cast %92 : vector<8xf32> to vector<8x1xf32>
    %94 = arith.truncf %91 : vector<8x16xf32> to vector<8x16xbf16>
    %c3_46 = arith.constant 3 : index
    %c0_47 = arith.constant 0 : index
    %c0_48 = arith.constant 0 : index
    %95 = vector.load %arg15[%c3_46, %c0_47, %c0_48] : memref<4x16x8xbf16, #tpu.memory_space<vmem>>, vector<1x16x8xbf16>
    %96 = vector.shape_cast %95 : vector<1x16x8xbf16> to vector<16x8xbf16>
    %cst_49 = arith.constant dense<0.000000e+00> : vector<8x8xf32>
    %97 = tpu.matmul %94, %96, %cst_49 {dimension_numbers = #tpu.dot_dimension_numbers<[1], [0], [0], [1], [0, 0, 1, 1], [], []>} : vector<8x16xbf16>, vector<16x8xbf16>, vector<8x8xf32> -> vector<8x8xf32>
    %98 = tpu.reciprocal %93 {approx = true} : vector<8x1xf32> -> vector<8x1xf32>
    %99 = vector.broadcast %98 : vector<8x1xf32> to vector<8x8xf32>
    %100 = arith.mulf %97, %99 : vector<8x8xf32>
    %101 = tpu.concatenate %40, %60, %80, %100 in 1 : vector<8x8xf32>, vector<8x8xf32>, vector<8x8xf32>, vector<8x8xf32> -> vector<8x32xf32>
    %102 = arith.truncf %101 : vector<8x32xf32> to vector<8x32xbf16>
    %cst_50 = arith.constant dense<0.000000e+00> : vector<8x32xf32>
    %103 = tpu.matmul %102, %15, %cst_50 {dimension_numbers = #tpu.dot_dimension_numbers<[1], [0], [0], [1], [0, 0, 1, 1], [], []>} : vector<8x32xbf16>, vector<32x32xbf16>, vector<8x32xf32> -> vector<8x32xf32>
    %104 = vector.broadcast %16 : vector<1x32xf32> to vector<8x32xf32>
    %105 = arith.addf %103, %104 : vector<8x32xf32>
    %106 = arith.addf %8, %105 : vector<8x32xf32>
    %107 = vector.extract_strided_slice %0 {offsets = [9, 0], sizes = [1, 32], strides = [1, 1]} : vector<16x32xf32> to vector<1x32xf32>
    %108 = vector.extract_strided_slice %0 {offsets = [10, 0], sizes = [1, 32], strides = [1, 1]} : vector<16x32xf32> to vector<1x32xf32>
    %cst_51 = arith.constant dense<0.000000e+00> : vector<8xf32>
    %109 = vector.multi_reduction <add>, %106, %cst_51 [1] : vector<8x32xf32> to vector<8xf32>
    %110 = vector.shape_cast %109 : vector<8xf32> to vector<8x1xf32>
    %cst_52 = arith.constant 3.200000e+01 : f32
    %111 = vector.broadcast %cst_52 : f32 to vector<8x1xf32>
    %112 = arith.divf %110, %111 : vector<8x1xf32>
    %113 = vector.broadcast %112 : vector<8x1xf32> to vector<8x32xf32>
    %114 = arith.subf %106, %113 : vector<8x32xf32>
    %115 = arith.mulf %114, %114 : vector<8x32xf32>
    %cst_53 = arith.constant dense<0.000000e+00> : vector<8xf32>
    %116 = vector.multi_reduction <add>, %115, %cst_53 [1] : vector<8x32xf32> to vector<8xf32>
    %117 = vector.shape_cast %116 : vector<8xf32> to vector<8x1xf32>
    %cst_54 = arith.constant 0.0322580636 : f32
    %118 = vector.broadcast %cst_54 : f32 to vector<8x1xf32>
    %119 = arith.mulf %117, %118 : vector<8x1xf32>
    %120 = vector.broadcast %107 : vector<1x32xf32> to vector<8x32xf32>
    %121 = arith.mulf %120, %114 : vector<8x32xf32>
    %122 = math.sqrt %119 : vector<8x1xf32>
    %cst_55 = arith.constant 9.99999997E-7 : f32
    %123 = vector.broadcast %cst_55 : f32 to vector<8x1xf32>
    %124 = arith.addf %122, %123 : vector<8x1xf32>
    %125 = vector.broadcast %124 : vector<8x1xf32> to vector<8x32xf32>
    %126 = arith.divf %121, %125 : vector<8x32xf32>
    %127 = vector.broadcast %108 : vector<1x32xf32> to vector<8x32xf32>
    %128 = arith.addf %126, %127 : vector<8x32xf32>
    %c1_56 = arith.constant 1 : index
    %c0_57 = arith.constant 0 : index
    %c0_58 = arith.constant 0 : index
    %129 = vector.load %arg6[%c1_56, %c0_57, %c0_58] : memref<2x32x32xbf16, #tpu.memory_space<vmem>>, vector<1x32x32xbf16>
    %130 = vector.shape_cast %129 : vector<1x32x32xbf16> to vector<32x32xbf16>
    %131 = vector.extract_strided_slice %0 {offsets = [3, 0], sizes = [1, 32], strides = [1, 1]} : vector<16x32xf32> to vector<1x32xf32>
    %c0_59 = arith.constant 0 : index
    %c0_60 = arith.constant 0 : index
    %c0_61 = arith.constant 0 : index
    %132 = vector.load %arg5[%c0_59, %c0_60, %c0_61] : memref<1x1x8xf32, #tpu.memory_space<vmem>>, vector<1x1x8xf32>
    %133 = vector.shape_cast %132 : vector<1x1x8xf32> to vector<1x8xf32>
    %c1_62 = arith.constant 1 : index
    %c0_63 = arith.constant 0 : index
    %c0_64 = arith.constant 0 : index
    %134 = vector.load %arg8[%c1_62, %c0_63, %c0_64] : memref<2x32x32xbf16, #tpu.memory_space<vmem>>, vector<1x32x32xbf16>
    %135 = vector.shape_cast %134 : vector<1x32x32xbf16> to vector<32x32xbf16>
    %136 = vector.extract_strided_slice %0 {offsets = [7, 0], sizes = [1, 32], strides = [1, 1]} : vector<16x32xf32> to vector<1x32xf32>
    %137 = arith.truncf %128 : vector<8x32xf32> to vector<8x32xbf16>
    %cst_65 = arith.constant dense<0.000000e+00> : vector<8x32xf32>
    %138 = tpu.matmul %137, %130, %cst_65 {dimension_numbers = #tpu.dot_dimension_numbers<[1], [0], [0], [1], [0, 0, 1, 1], [], []>} : vector<8x32xbf16>, vector<32x32xbf16>, vector<8x32xf32> -> vector<8x32xf32>
    %139 = vector.broadcast %131 : vector<1x32xf32> to vector<8x32xf32>
    %140 = arith.addf %138, %139 : vector<8x32xf32>
    %141 = vector.extract_strided_slice %140 {offsets = [0, 0], sizes = [8, 8], strides = [1, 1]} : vector<8x32xf32> to vector<8x8xf32>
    %142 = arith.truncf %141 : vector<8x8xf32> to vector<8x8xbf16>
    %c0_66 = arith.constant 0 : index
    %c0_67 = arith.constant 0 : index
    %c0_68 = arith.constant 0 : index
    %143 = vector.load %arg16[%c0_66, %c0_67, %c0_68] : memref<4x8x8xbf16, #tpu.memory_space<vmem>>, vector<1x8x8xbf16>
    %144 = vector.shape_cast %143 : vector<1x8x8xbf16> to vector<8x8xbf16>
    %cst_69 = arith.constant dense<0.000000e+00> : vector<8x8xf32>
    %145 = tpu.matmul %142, %144, %cst_69 {dimension_numbers = #tpu.dot_dimension_numbers<[1], [1], [0], [0], [0, 0, 1, 0], [], []>} : vector<8x8xbf16>, vector<8x8xbf16>, vector<8x8xf32> -> vector<8x8xf32>
    %146 = vector.broadcast %133 : vector<1x8xf32> to vector<8x8xf32>
    %147 = arith.addf %145, %146 : vector<8x8xf32>
    %cst_70 = arith.constant dense<0xFF800000> : vector<8xf32>
    %148 = vector.multi_reduction <maximumf>, %147, %cst_70 [1] : vector<8x8xf32> to vector<8xf32>
    %149 = vector.shape_cast %148 : vector<8xf32> to vector<8x1xf32>
    %150 = vector.broadcast %149 : vector<8x1xf32> to vector<8x8xf32>
    %151 = arith.subf %147, %150 : vector<8x8xf32>
    %152 = math.exp %151 : vector<8x8xf32>
    %cst_71 = arith.constant dense<0.000000e+00> : vector<8xf32>
    %153 = vector.multi_reduction <add>, %152, %cst_71 [1] : vector<8x8xf32> to vector<8xf32>
    %154 = vector.shape_cast %153 : vector<8xf32> to vector<8x1xf32>
    %155 = arith.truncf %152 : vector<8x8xf32> to vector<8x8xbf16>
    %c0_72 = arith.constant 0 : index
    %c0_73 = arith.constant 0 : index
    %c0_74 = arith.constant 0 : index
    %156 = vector.load %arg17[%c0_72, %c0_73, %c0_74] : memref<4x8x8xbf16, #tpu.memory_space<vmem>>, vector<1x8x8xbf16>
    %157 = vector.shape_cast %156 : vector<1x8x8xbf16> to vector<8x8xbf16>
    %cst_75 = arith.constant dense<0.000000e+00> : vector<8x8xf32>
    %158 = tpu.matmul %155, %157, %cst_75 {dimension_numbers = #tpu.dot_dimension_numbers<[1], [0], [0], [1], [0, 0, 1, 1], [], []>} : vector<8x8xbf16>, vector<8x8xbf16>, vector<8x8xf32> -> vector<8x8xf32>
    %159 = tpu.reciprocal %154 {approx = true} : vector<8x1xf32> -> vector<8x1xf32>
    %160 = vector.broadcast %159 : vector<8x1xf32> to vector<8x8xf32>
    %161 = arith.mulf %158, %160 : vector<8x8xf32>
    %162 = vector.extract_strided_slice %140 {offsets = [0, 8], sizes = [8, 8], strides = [1, 1]} : vector<8x32xf32> to vector<8x8xf32>
    %163 = arith.truncf %162 : vector<8x8xf32> to vector<8x8xbf16>
    %c1_76 = arith.constant 1 : index
    %c0_77 = arith.constant 0 : index
    %c0_78 = arith.constant 0 : index
    %164 = vector.load %arg16[%c1_76, %c0_77, %c0_78] : memref<4x8x8xbf16, #tpu.memory_space<vmem>>, vector<1x8x8xbf16>
    %165 = vector.shape_cast %164 : vector<1x8x8xbf16> to vector<8x8xbf16>
    %cst_79 = arith.constant dense<0.000000e+00> : vector<8x8xf32>
    %166 = tpu.matmul %163, %165, %cst_79 {dimension_numbers = #tpu.dot_dimension_numbers<[1], [1], [0], [0], [0, 0, 1, 0], [], []>} : vector<8x8xbf16>, vector<8x8xbf16>, vector<8x8xf32> -> vector<8x8xf32>
    %167 = vector.broadcast %133 : vector<1x8xf32> to vector<8x8xf32>
    %168 = arith.addf %166, %167 : vector<8x8xf32>
    %cst_80 = arith.constant dense<0xFF800000> : vector<8xf32>
    %169 = vector.multi_reduction <maximumf>, %168, %cst_80 [1] : vector<8x8xf32> to vector<8xf32>
    %170 = vector.shape_cast %169 : vector<8xf32> to vector<8x1xf32>
    %171 = vector.broadcast %170 : vector<8x1xf32> to vector<8x8xf32>
    %172 = arith.subf %168, %171 : vector<8x8xf32>
    %173 = math.exp %172 : vector<8x8xf32>
    %cst_81 = arith.constant dense<0.000000e+00> : vector<8xf32>
    %174 = vector.multi_reduction <add>, %173, %cst_81 [1] : vector<8x8xf32> to vector<8xf32>
    %175 = vector.shape_cast %174 : vector<8xf32> to vector<8x1xf32>
    %176 = arith.truncf %173 : vector<8x8xf32> to vector<8x8xbf16>
    %c1_82 = arith.constant 1 : index
    %c0_83 = arith.constant 0 : index
    %c0_84 = arith.constant 0 : index
    %177 = vector.load %arg17[%c1_82, %c0_83, %c0_84] : memref<4x8x8xbf16, #tpu.memory_space<vmem>>, vector<1x8x8xbf16>
    %178 = vector.shape_cast %177 : vector<1x8x8xbf16> to vector<8x8xbf16>
    %cst_85 = arith.constant dense<0.000000e+00> : vector<8x8xf32>
    %179 = tpu.matmul %176, %178, %cst_85 {dimension_numbers = #tpu.dot_dimension_numbers<[1], [0], [0], [1], [0, 0, 1, 1], [], []>} : vector<8x8xbf16>, vector<8x8xbf16>, vector<8x8xf32> -> vector<8x8xf32>
    %180 = tpu.reciprocal %175 {approx = true} : vector<8x1xf32> -> vector<8x1xf32>
    %181 = vector.broadcast %180 : vector<8x1xf32> to vector<8x8xf32>
    %182 = arith.mulf %179, %181 : vector<8x8xf32>
    %183 = vector.extract_strided_slice %140 {offsets = [0, 16], sizes = [8, 8], strides = [1, 1]} : vector<8x32xf32> to vector<8x8xf32>
    %184 = arith.truncf %183 : vector<8x8xf32> to vector<8x8xbf16>
    %c2_86 = arith.constant 2 : index
    %c0_87 = arith.constant 0 : index
    %c0_88 = arith.constant 0 : index
    %185 = vector.load %arg16[%c2_86, %c0_87, %c0_88] : memref<4x8x8xbf16, #tpu.memory_space<vmem>>, vector<1x8x8xbf16>
    %186 = vector.shape_cast %185 : vector<1x8x8xbf16> to vector<8x8xbf16>
    %cst_89 = arith.constant dense<0.000000e+00> : vector<8x8xf32>
    %187 = tpu.matmul %184, %186, %cst_89 {dimension_numbers = #tpu.dot_dimension_numbers<[1], [1], [0], [0], [0, 0, 1, 0], [], []>} : vector<8x8xbf16>, vector<8x8xbf16>, vector<8x8xf32> -> vector<8x8xf32>
    %188 = vector.broadcast %133 : vector<1x8xf32> to vector<8x8xf32>
    %189 = arith.addf %187, %188 : vector<8x8xf32>
    %cst_90 = arith.constant dense<0xFF800000> : vector<8xf32>
    %190 = vector.multi_reduction <maximumf>, %189, %cst_90 [1] : vector<8x8xf32> to vector<8xf32>
    %191 = vector.shape_cast %190 : vector<8xf32> to vector<8x1xf32>
    %192 = vector.broadcast %191 : vector<8x1xf32> to vector<8x8xf32>
    %193 = arith.subf %189, %192 : vector<8x8xf32>
    %194 = math.exp %193 : vector<8x8xf32>
    %cst_91 = arith.constant dense<0.000000e+00> : vector<8xf32>
    %195 = vector.multi_reduction <add>, %194, %cst_91 [1] : vector<8x8xf32> to vector<8xf32>
    %196 = vector.shape_cast %195 : vector<8xf32> to vector<8x1xf32>
    %197 = arith.truncf %194 : vector<8x8xf32> to vector<8x8xbf16>
    %c2_92 = arith.constant 2 : index
    %c0_93 = arith.constant 0 : index
    %c0_94 = arith.constant 0 : index
    %198 = vector.load %arg17[%c2_92, %c0_93, %c0_94] : memref<4x8x8xbf16, #tpu.memory_space<vmem>>, vector<1x8x8xbf16>
    %199 = vector.shape_cast %198 : vector<1x8x8xbf16> to vector<8x8xbf16>
    %cst_95 = arith.constant dense<0.000000e+00> : vector<8x8xf32>
    %200 = tpu.matmul %197, %199, %cst_95 {dimension_numbers = #tpu.dot_dimension_numbers<[1], [0], [0], [1], [0, 0, 1, 1], [], []>} : vector<8x8xbf16>, vector<8x8xbf16>, vector<8x8xf32> -> vector<8x8xf32>
    %201 = tpu.reciprocal %196 {approx = true} : vector<8x1xf32> -> vector<8x1xf32>
    %202 = vector.broadcast %201 : vector<8x1xf32> to vector<8x8xf32>
    %203 = arith.mulf %200, %202 : vector<8x8xf32>
    %204 = vector.extract_strided_slice %140 {offsets = [0, 24], sizes = [8, 8], strides = [1, 1]} : vector<8x32xf32> to vector<8x8xf32>
    %205 = arith.truncf %204 : vector<8x8xf32> to vector<8x8xbf16>
    %c3_96 = arith.constant 3 : index
    %c0_97 = arith.constant 0 : index
    %c0_98 = arith.constant 0 : index
    %206 = vector.load %arg16[%c3_96, %c0_97, %c0_98] : memref<4x8x8xbf16, #tpu.memory_space<vmem>>, vector<1x8x8xbf16>
    %207 = vector.shape_cast %206 : vector<1x8x8xbf16> to vector<8x8xbf16>
    %cst_99 = arith.constant dense<0.000000e+00> : vector<8x8xf32>
    %208 = tpu.matmul %205, %207, %cst_99 {dimension_numbers = #tpu.dot_dimension_numbers<[1], [1], [0], [0], [0, 0, 1, 0], [], []>} : vector<8x8xbf16>, vector<8x8xbf16>, vector<8x8xf32> -> vector<8x8xf32>
    %209 = vector.broadcast %133 : vector<1x8xf32> to vector<8x8xf32>
    %210 = arith.addf %208, %209 : vector<8x8xf32>
    %cst_100 = arith.constant dense<0xFF800000> : vector<8xf32>
    %211 = vector.multi_reduction <maximumf>, %210, %cst_100 [1] : vector<8x8xf32> to vector<8xf32>
    %212 = vector.shape_cast %211 : vector<8xf32> to vector<8x1xf32>
    %213 = vector.broadcast %212 : vector<8x1xf32> to vector<8x8xf32>
    %214 = arith.subf %210, %213 : vector<8x8xf32>
    %215 = math.exp %214 : vector<8x8xf32>
    %cst_101 = arith.constant dense<0.000000e+00> : vector<8xf32>
    %216 = vector.multi_reduction <add>, %215, %cst_101 [1] : vector<8x8xf32> to vector<8xf32>
    %217 = vector.shape_cast %216 : vector<8xf32> to vector<8x1xf32>
    %218 = arith.truncf %215 : vector<8x8xf32> to vector<8x8xbf16>
    %c3_102 = arith.constant 3 : index
    %c0_103 = arith.constant 0 : index
    %c0_104 = arith.constant 0 : index
    %219 = vector.load %arg17[%c3_102, %c0_103, %c0_104] : memref<4x8x8xbf16, #tpu.memory_space<vmem>>, vector<1x8x8xbf16>
    %220 = vector.shape_cast %219 : vector<1x8x8xbf16> to vector<8x8xbf16>
    %cst_105 = arith.constant dense<0.000000e+00> : vector<8x8xf32>
    %221 = tpu.matmul %218, %220, %cst_105 {dimension_numbers = #tpu.dot_dimension_numbers<[1], [0], [0], [1], [0, 0, 1, 1], [], []>} : vector<8x8xbf16>, vector<8x8xbf16>, vector<8x8xf32> -> vector<8x8xf32>
    %222 = tpu.reciprocal %217 {approx = true} : vector<8x1xf32> -> vector<8x1xf32>
    %223 = vector.broadcast %222 : vector<8x1xf32> to vector<8x8xf32>
    %224 = arith.mulf %221, %223 : vector<8x8xf32>
    %225 = tpu.concatenate %161, %182, %203, %224 in 1 : vector<8x8xf32>, vector<8x8xf32>, vector<8x8xf32>, vector<8x8xf32> -> vector<8x32xf32>
    %226 = arith.truncf %225 : vector<8x32xf32> to vector<8x32xbf16>
    %cst_106 = arith.constant dense<0.000000e+00> : vector<8x32xf32>
    %227 = tpu.matmul %226, %135, %cst_106 {dimension_numbers = #tpu.dot_dimension_numbers<[1], [0], [0], [1], [0, 0, 1, 1], [], []>} : vector<8x32xbf16>, vector<32x32xbf16>, vector<8x32xf32> -> vector<8x32xf32>
    %228 = vector.broadcast %136 : vector<1x32xf32> to vector<8x32xf32>
    %229 = arith.addf %227, %228 : vector<8x32xf32>
    %230 = arith.addf %128, %229 : vector<8x32xf32>
    %231 = vector.extract_strided_slice %0 {offsets = [11, 0], sizes = [1, 32], strides = [1, 1]} : vector<16x32xf32> to vector<1x32xf32>
    %232 = vector.extract_strided_slice %0 {offsets = [12, 0], sizes = [1, 32], strides = [1, 1]} : vector<16x32xf32> to vector<1x32xf32>
    %cst_107 = arith.constant dense<0.000000e+00> : vector<8xf32>
    %233 = vector.multi_reduction <add>, %230, %cst_107 [1] : vector<8x32xf32> to vector<8xf32>
    %234 = vector.shape_cast %233 : vector<8xf32> to vector<8x1xf32>
    %cst_108 = arith.constant 3.200000e+01 : f32
    %235 = vector.broadcast %cst_108 : f32 to vector<8x1xf32>
    %236 = arith.divf %234, %235 : vector<8x1xf32>
    %237 = vector.broadcast %236 : vector<8x1xf32> to vector<8x32xf32>
    %238 = arith.subf %230, %237 : vector<8x32xf32>
    %239 = arith.mulf %238, %238 : vector<8x32xf32>
    %cst_109 = arith.constant dense<0.000000e+00> : vector<8xf32>
    %240 = vector.multi_reduction <add>, %239, %cst_109 [1] : vector<8x32xf32> to vector<8xf32>
    %241 = vector.shape_cast %240 : vector<8xf32> to vector<8x1xf32>
    %cst_110 = arith.constant 0.0322580636 : f32
    %242 = vector.broadcast %cst_110 : f32 to vector<8x1xf32>
    %243 = arith.mulf %241, %242 : vector<8x1xf32>
    %244 = vector.broadcast %231 : vector<1x32xf32> to vector<8x32xf32>
    %245 = arith.mulf %244, %238 : vector<8x32xf32>
    %246 = math.sqrt %243 : vector<8x1xf32>
    %cst_111 = arith.constant 9.99999997E-7 : f32
    %247 = vector.broadcast %cst_111 : f32 to vector<8x1xf32>
    %248 = arith.addf %246, %247 : vector<8x1xf32>
    %249 = vector.broadcast %248 : vector<8x1xf32> to vector<8x32xf32>
    %250 = arith.divf %245, %249 : vector<8x32xf32>
    %251 = vector.broadcast %232 : vector<1x32xf32> to vector<8x32xf32>
    %252 = arith.addf %250, %251 : vector<8x32xf32>
    %253 = arith.truncf %252 : vector<8x32xf32> to vector<8x32xbf16>
    %c0_112 = arith.constant 0 : index
    %c0_113 = arith.constant 0 : index
    %254 = vector.load %arg9[%c0_112, %c0_113] : memref<32x64xbf16, #tpu.memory_space<vmem>>, vector<32x64xbf16>
    %cst_114 = arith.constant dense<0.000000e+00> : vector<8x64xf32>
    %255 = tpu.matmul %253, %254, %cst_114 {dimension_numbers = #tpu.dot_dimension_numbers<[1], [0], [0], [1], [0, 0, 1, 1], [], []>} : vector<8x32xbf16>, vector<32x64xbf16>, vector<8x64xf32> -> vector<8x64xf32>
    %c0_115 = arith.constant 0 : index
    %c0_116 = arith.constant 0 : index
    %256 = vector.load %arg10[%c0_115, %c0_116] : memref<1x64xf32, #tpu.memory_space<vmem>>, vector<1x64xf32>
    %257 = vector.broadcast %256 : vector<1x64xf32> to vector<8x64xf32>
    %258 = arith.addf %255, %257 : vector<8x64xf32>
    %cst_117 = arith.constant 0.000000e+00 : f32
    %259 = vector.broadcast %cst_117 : f32 to vector<8x64xf32>
    %260 = arith.maximumf %258, %259 : vector<8x64xf32>
    %261 = arith.truncf %260 : vector<8x64xf32> to vector<8x64xbf16>
    %c0_118 = arith.constant 0 : index
    %c0_119 = arith.constant 0 : index
    %262 = vector.load %arg11[%c0_118, %c0_119] : memref<64x32xbf16, #tpu.memory_space<vmem>>, vector<64x32xbf16>
    %cst_120 = arith.constant dense<0.000000e+00> : vector<8x32xf32>
    %263 = tpu.matmul %261, %262, %cst_120 {dimension_numbers = #tpu.dot_dimension_numbers<[1], [0], [0], [1], [0, 0, 1, 1], [], []>} : vector<8x64xbf16>, vector<64x32xbf16>, vector<8x32xf32> -> vector<8x32xf32>
    %264 = vector.extract_strided_slice %0 {offsets = [8, 0], sizes = [1, 32], strides = [1, 1]} : vector<16x32xf32> to vector<1x32xf32>
    %265 = vector.broadcast %264 : vector<1x32xf32> to vector<8x32xf32>
    %266 = arith.addf %263, %265 : vector<8x32xf32>
    %267 = arith.addf %252, %266 : vector<8x32xf32>
    %268 = vector.extract_strided_slice %0 {offsets = [13, 0], sizes = [1, 32], strides = [1, 1]} : vector<16x32xf32> to vector<1x32xf32>
    %269 = vector.extract_strided_slice %0 {offsets = [14, 0], sizes = [1, 32], strides = [1, 1]} : vector<16x32xf32> to vector<1x32xf32>
    %cst_121 = arith.constant dense<0.000000e+00> : vector<8xf32>
    %270 = vector.multi_reduction <add>, %267, %cst_121 [1] : vector<8x32xf32> to vector<8xf32>
    %271 = vector.shape_cast %270 : vector<8xf32> to vector<8x1xf32>
    %cst_122 = arith.constant 3.200000e+01 : f32
    %272 = vector.broadcast %cst_122 : f32 to vector<8x1xf32>
    %273 = arith.divf %271, %272 : vector<8x1xf32>
    %274 = vector.broadcast %273 : vector<8x1xf32> to vector<8x32xf32>
    %275 = arith.subf %267, %274 : vector<8x32xf32>
    %276 = arith.mulf %275, %275 : vector<8x32xf32>
    %cst_123 = arith.constant dense<0.000000e+00> : vector<8xf32>
    %277 = vector.multi_reduction <add>, %276, %cst_123 [1] : vector<8x32xf32> to vector<8xf32>
    %278 = vector.shape_cast %277 : vector<8xf32> to vector<8x1xf32>
    %cst_124 = arith.constant 0.0322580636 : f32
    %279 = vector.broadcast %cst_124 : f32 to vector<8x1xf32>
    %280 = arith.mulf %278, %279 : vector<8x1xf32>
    %281 = vector.broadcast %268 : vector<1x32xf32> to vector<8x32xf32>
    %282 = arith.mulf %281, %275 : vector<8x32xf32>
    %283 = math.sqrt %280 : vector<8x1xf32>
    %cst_125 = arith.constant 9.99999997E-7 : f32
    %284 = vector.broadcast %cst_125 : f32 to vector<8x1xf32>
    %285 = arith.addf %283, %284 : vector<8x1xf32>
    %286 = vector.broadcast %285 : vector<8x1xf32> to vector<8x32xf32>
    %287 = arith.divf %282, %286 : vector<8x32xf32>
    %288 = vector.broadcast %269 : vector<1x32xf32> to vector<8x32xf32>
    %289 = arith.addf %287, %288 : vector<8x32xf32>
    %c0_126 = arith.constant 0 : index
    %c0_127 = arith.constant 0 : index
    %c0_128 = arith.constant 0 : index
    %290 = vector.load %arg13[%c0_126, %c0_127, %c0_128] : memref<1x8x32xf32, #tpu.memory_space<vmem>>, vector<1x8x32xf32>
    %291 = vector.shape_cast %290 : vector<1x8x32xf32> to vector<8x32xf32>
    %292 = vector.shape_cast %289 : vector<8x32xf32> to vector<1x8x32xf32>
    tpu.vector_store %arg13[%c0_126, %c0_127, %c0_128], %292 {strides = array<i32>} : memref<1x8x32xf32, #tpu.memory_space<vmem>>, vector<1x8x32xf32>,
    return
  }
  func.func @transform_0(%arg0: i32, %arg1: i32) -> (i32, i32, i32) {
    %c0_i32 = arith.constant 0 : i32
    %c0_i32_0 = arith.constant 0 : i32
    %c0_i32_1 = arith.constant 0 : i32
    return %arg0, %c0_i32, %c0_i32_0 : i32, i32, i32
  }
  func.func @transform_1(%arg0: i32, %arg1: i32) -> (i32, i32, i32) {
    %c0_i32 = arith.constant 0 : i32
    %c0_i32_0 = arith.constant 0 : i32
    %c0_i32_1 = arith.constant 0 : i32
    return %arg0, %c0_i32, %c0_i32_0 : i32, i32, i32
  }
  func.func @transform_2(%arg0: i32, %arg1: i32) -> (i32, i32, i32) {
    %c0_i32 = arith.constant 0 : i32
    %c0_i32_0 = arith.constant 0 : i32
    return %arg0, %arg1, %c0_i32 : i32, i32, i32
  }
  func.func @transform_3(%arg0: i32, %arg1: i32) -> (i32, i32, i32) {
    %c0_i32 = arith.constant 0 : i32
    %c0_i32_0 = arith.constant 0 : i32
    %c0_i32_1 = arith.constant 0 : i32
    return %arg0, %c0_i32, %c0_i32_0 : i32, i32, i32
  }
  func.func @transform_4(%arg0: i32, %arg1: i32) -> (i32, i32, i32) {
    %c0_i32 = arith.constant 0 : i32
    %c0_i32_0 = arith.constant 0 : i32
    %c0_i32_1 = arith.constant 0 : i32
    %c0_i32_2 = arith.constant 0 : i32
    return %c0_i32, %c0_i32_0, %c0_i32_1 : i32, i32, i32
  }
  func.func @transform_5(%arg0: i32, %arg1: i32) -> (i32, i32, i32) {
    %c0_i32 = arith.constant 0 : i32
    %c0_i32_0 = arith.constant 0 : i32
    %c0_i32_1 = arith.constant 0 : i32
    %c0_i32_2 = arith.constant 0 : i32
    return %c0_i32, %c0_i32_0, %c0_i32_1 : i32, i32, i32
  }
  func.func @transform_6(%arg0: i32, %arg1: i32) -> (i32, i32, i32) {
    %c0_i32 = arith.constant 0 : i32
    %c0_i32_0 = arith.constant 0 : i32
    %c0_i32_1 = arith.constant 0 : i32
    %c0_i32_2 = arith.constant 0 : i32
    return %c0_i32, %c0_i32_0, %c0_i32_1 : i32, i32, i32
  }
  func.func @transform_7(%arg0: i32, %arg1: i32) -> (i32, i32) {
    %c0_i32 = arith.constant 0 : i32
    %c0_i32_0 = arith.constant 0 : i32
    %c0_i32_1 = arith.constant 0 : i32
    return %c0_i32, %c0_i32_0 : i32, i32
  }
  func.func @transform_8(%arg0: i32, %arg1: i32) -> (i32, i32) {
    %c0_i32 = arith.constant 0 : i32
    %c0_i32_0 = arith.constant 0 : i32
    %c0_i32_1 = arith.constant 0 : i32
    return %c0_i32, %c0_i32_0 : i32, i32
  }
  func.func @transform_9(%arg0: i32, %arg1: i32) -> (i32, i32) {
    %c0_i32 = arith.constant 0 : i32
    %c0_i32_0 = arith.constant 0 : i32
    %c0_i32_1 = arith.constant 0 : i32
    return %c0_i32, %c0_i32_0 : i32, i32
  }
  func.func @transform_10(%arg0: i32, %arg1: i32) -> (i32, i32) {
    %c0_i32 = arith.constant 0 : i32
    %c0_i32_0 = arith.constant 0 : i32
    %c0_i32_1 = arith.constant 0 : i32
    return %c0_i32, %c0_i32_0 : i32, i32
  }
  func.func @transform_11(%arg0: i32, %arg1: i32) -> (i32, i32, i32) {
    %c0_i32 = arith.constant 0 : i32
    %c0_i32_0 = arith.constant 0 : i32
    return %arg0, %arg1, %c0_i32 : i32, i32, i32
  }
}

</mosaic_0001>

<llo_original>
// kernel: tpu_custom_call.1
$region0: #{tpu_custom_call.1}
  #allocation0 [shape = 'u32[]', space=smem, size = 0x4, offset = 0x4, fixed_abs, tag = 'smem constant byte address 0x4 - core index']
  #allocation1 [shape = 'u32[144,128]{1,0:T(1,128)}', space=vmem, size = 0x12000, scoped, tag = 'internal scratch']
  #allocation2 [shape = 'bf16[4,16,8]{2,1,0:T(8,128)(2,1)}', space=vmem, size = 0x4000, scoped, tag = 'scratch operand']
  #allocation3 [shape = 'bf16[4,16,8]{2,1,0:T(8,128)(2,1)}', space=vmem, size = 0x4000, scoped, tag = 'scratch operand']
  #allocation4 [shape = 'bf16[4,8,8]{2,1,0:T(8,128)(2,1)}', space=vmem, size = 0x2000, scoped, tag = 'scratch operand']
  #allocation5 [shape = 'bf16[4,8,8]{2,1,0:T(8,128)(2,1)}', space=vmem, size = 0x2000, scoped, tag = 'scratch operand']
  %s0 = inlined_call_operand.vmem [shape: f32[2,16,32], index: 0, kind: input, shape index: {}]
  %s1 = inlined_call_operand.vmem [shape: f32[2,8,32], index: 1, kind: input, shape index: {}]
  %s2 = inlined_call_operand.hbm [shape: f32[2,16,16], index: 2, kind: input, shape index: {}]
  %s3 = inlined_call_operand.hbm [shape: f32[2,1,8], index: 3, kind: input, shape index: {}]
  %s4 = inlined_call_operand.hbm [shape: bf16[2,32,32], index: 4, kind: input, shape index: {}]
  %s5 = inlined_call_operand.hbm [shape: bf16[2,32,64], index: 5, kind: input, shape index: {}]
  %s6 = inlined_call_operand.hbm [shape: bf16[2,32,32], index: 6, kind: input, shape index: {}]
  %s7 = inlined_call_operand.hbm [shape: bf16[32,64], index: 7, kind: input, shape index: {}]
  %s8 = inlined_call_operand.hbm [shape: f32[1,64], index: 8, kind: input, shape index: {}]
  %s9 = inlined_call_operand.vmem [shape: bf16[64,32], index: 9, kind: input, shape index: {}]
  %s10 = inlined_call_operand.hbm [shape: f32[16,32], index: 10, kind: input, shape index: {}]
  %s11 = inlined_call_operand.hbm [shape: f32[2,16,32], index: 11, kind: output, shape index: {}]
  %s12 = sld [smem:[#allocation0]]
  $region113: #{tpu_custom_call.1} parent=0
    _
  %s14 = ssub.s32 1, %s12
  %s15 = scalar_select 0, %s14, %s12
  $region1: #{tpu_custom_call.1} parent=0
    #allocation6 [shape = 'u8[8192]{0}', space=vmem, size = 0x2000, scoped, tag = 'input window, operand 2']
    #allocation7 [shape = 's32[2]{0}', space=sflag, size = 0x8, scoped, tag = 'scoped memory for tpu_custom_call.1']
    #allocation8 [shape = 's32[2]{0}', space=sflag, size = 0x8, scoped, tag = 'scoped memory for tpu_custom_call.1']
    #allocation9 [shape = 'u8[1024]{0}', space=vmem, size = 0x400, scoped, tag = 'input window, operand 3']
    #allocation10 [shape = 's32[2]{0}', space=sflag, size = 0x8, scoped, tag = 'scoped memory for tpu_custom_call.1']
    #allocation11 [shape = 'u8[16384]{0}', space=vmem, size = 0x4000, scoped, tag = 'input window, operand 4, single buffered']
    #allocation12 [shape = 'u8[16384]{0}', space=vmem, size = 0x4000, scoped, tag = 'input window, operand 5, single buffered']
    #allocation13 [shape = 's32[1]{0}', space=sflag, size = 0x4, scoped, tag = 'scoped memory for tpu_custom_call.1']
    #allocation14 [shape = 'u8[16384]{0}', space=vmem, size = 0x4000, scoped, tag = 'input window, operand 6, single buffered']
    #allocation15 [shape = 'u8[8192]{0}', space=vmem, size = 0x2000, scoped, tag = 'input window, operand 7, single buffered']
    #allocation16 [shape = 's32[1]{0}', space=sflag, size = 0x4, scoped, tag = 'scoped memory for tpu_custom_call.1']
    #allocation17 [shape = 'u8[512]{0}', space=vmem, size = 0x400, scoped, tag = 'input window, operand 8, single buffered']
    #allocation18 [shape = 'u8[8192]{0}', space=vmem, size = 0x2000, scoped, tag = 'input window, operand 10, single buffered']
    #allocation19 [shape = 's32[1]{0}', space=sflag, size = 0x4, scoped, tag = 'scoped memory for tpu_custom_call.1']
    #allocation20 [shape = 'u8[8192]{0}', space=vmem, size = 0x2000, scoped, tag = 'output window, operand 0']
    %16 = vsyncpa [#allocation7], 0
    %s17 = scalar_lea.sflag [#allocation7], 1
    %18 = vsyncpa %s17, 0
    %19 = vsyncpa [#allocation10], 0
    %s20 = scalar_lea.sflag [#allocation10], 1
    %21 = vsyncpa %s20, 0
    %22 = vsyncpa [#allocation13], 0
    %23 = vsyncpa [#allocation16], 0
    %24 = vsyncpa [#allocation19], 0
    %25 = vsyncpa [#allocation8], 0
    %s26 = scalar_lea.sflag [#allocation8], 1
    %27 = vsyncpa %s26, 0
    loop: start=0, step=1, limit=6
    $region2: #{tpu_custom_call.1} parent=1 // loop_pre_header
      _
    $region3: #{tpu_custom_call.1} parent=1 // loop_header
      %s29 = sphi 0, %s33
      %p30 = scmp.ge.s32.totalorder %s29, 6
      %s36 = sphi 0, %s48
      %s37 = sphi 0, %s44
      %s38 = sphi 0, %s36
      %s39 = sphi 0, %s37
      %s40 = sphi 0, %s38
      %s41 = sphi 0, %s39
      %s51 = sphi 0, %s53
      %s54 = sphi 0, %s51
      %s55 = sphi 0, %s54
      %s71 = sphi 0, %s55
      %s77 = sphi 0, %s79
      %s80 = sphi 0, %s77
      %s81 = sphi 0, %s80
      %s97 = sphi 0, %s81
      %s105 = sphi 0, %s107
      %s108 = sphi 0, %s105
      %s109 = sphi 0, %s108
      %s125 = sphi 0, %s109
      %s131 = sphi 0, %s133
      %s134 = sphi 0, %s131
      %s135 = sphi 0, %s134
      %s151 = sphi 0, %s135
      %s155 = sphi 0, %s155
      %s157 = sphi 0, %s155
      %s158 = sphi 0, %s157
      %s172 = sphi 0, %s158
      %s176 = sphi 0, %s176
      %s178 = sphi 0, %s176
      %s179 = sphi 0, %s178
      %s193 = sphi 0, %s179
      %s197 = sphi 0, %s197
      %s199 = sphi 0, %s197
      %s200 = sphi 0, %s199
      %s214 = sphi 0, %s200
      %s218 = sphi 0, %s218
      %s220 = sphi 0, %s218
      %s221 = sphi 0, %s220
      %s235 = sphi 0, %s221
      %s239 = sphi 0, %s239
      %s241 = sphi 0, %s239
      %s242 = sphi 0, %s241
      %s256 = sphi 0, %s242
      %s260 = sphi 0, %s260
      %s262 = sphi 0, %s260
      %s263 = sphi 0, %s262
      %s277 = sphi 0, %s263
      %s281 = sphi 0, %s281
      %s283 = sphi 0, %s281
      %s284 = sphi 0, %s283
      %s298 = sphi 0, %s284
      %s306 = sphi 0, %s308
      %s309 = sphi 0, %s306
      %s310 = sphi 0, %s309
      %s326 = sphi 0, %s310
    $region4: #{tpu_custom_call.1} parent=1 // loop_header_branch
      %32 = sbr.rel (%p30) target = $region8
    $region5: #{tpu_custom_call.1} parent=1 // loop_body
      %s34 = ssub.s32 %s29, 1
      %s35 = ssub.s32 %s29, 2
      %s42 = sadd.s32 1, %s37
      %p43 = scmp.ge.s32.totalorder %s42, 2
      %s44 = scalar_select %p43, 0, %s42
      %s45 = sadd.s32 1, %s36
      %s46 = scalar_select %p43, %s45, %s36
      %p47 = scmp.ge.s32.totalorder %s46, 2
      %s48 = scalar_select %p47, 0, %s46
      %s49 = ssub.s32 %s36, %s48
      %p50 = scmp.eq.s32.totalorder %s49, 0
      %s52 = sadd.s32 %s51, 1
      %s53 = scalar_select %p50, %s51, %s52
      %p56 = pneg %p50
      %p57 = scmp.eq.s32.totalorder %s29, 3
      %p58 = por %p56, %p57
      %p59 = scmp.ne.s32.totalorder %s51, %s54
      %p60 = scmp.eq.s32.totalorder %s29, 0
      %p61 = por %p59, %p60
      %p62 = scmp.ne.s32.totalorder %s51, %s54
      %p63 = scmp.eq.s32.totalorder %s34, 3
      %p64 = por %p62, %p63
      %p65 = scmp.ne.s32.totalorder %s54, %s55
      %p66 = scmp.eq.s32.totalorder %s34, 0
      %p67 = por %p65, %p66
      %p68 = scmp.ne.s32.totalorder %s54, %s55
      %p69 = scmp.eq.s32.totalorder %s35, 3
      %p70 = por %p68, %p69
      %p72 = scmp.ne.s32.totalorder %s55, %s71
      %p73 = scmp.eq.s32.totalorder %s35, 0
      %p74 = por %p72, %p73
      %s75 = ssub.s32 %s36, %s48
      %p76 = scmp.eq.s32.totalorder %s75, 0
      %s78 = sadd.s32 %s77, 1
      %s79 = scalar_select %p76, %s77, %s78
      %p82 = pneg %p76
      %p83 = scmp.eq.s32.totalorder %s29, 3
      %p84 = por %p82, %p83
      %p85 = scmp.ne.s32.totalorder %s77, %s80
      %p86 = scmp.eq.s32.totalorder %s29, 0
      %p87 = por %p85, %p86
      %p88 = scmp.ne.s32.totalorder %s77, %s80
      %p89 = scmp.eq.s32.totalorder %s34, 3
      %p90 = por %p88, %p89
      %p91 = scmp.ne.s32.totalorder %s80, %s81
      %p92 = scmp.eq.s32.totalorder %s34, 0
      %p93 = por %p91, %p92
      %p94 = scmp.ne.s32.totalorder %s80, %s81
      %p95 = scmp.eq.s32.totalorder %s35, 3
      %p96 = por %p94, %p95
      %p98 = scmp.ne.s32.totalorder %s81, %s97
      %p99 = scmp.eq.s32.totalorder %s35, 0
      %p100 = por %p98, %p99
      %s101 = ssub.s32 %s36, %s48
      %s102 = ssub.s32 %s37, %s44
      %s103 = sor.u32 %s101, %s102
      %p104 = scmp.eq.s32.totalorder %s103, 0
      %s106 = sadd.s32 %s105, 1
      %s107 = scalar_select %p104, %s105, %s106
      %p110 = pneg %p104
      %p111 = scmp.eq.s32.totalorder %s29, 3
      %p112 = por %p110, %p111
      %p113 = scmp.ne.s32.totalorder %s105, %s108
      %p114 = scmp.eq.s32.totalorder %s29, 0
      %p115 = por %p113, %p114
      %p116 = scmp.ne.s32.totalorder %s105, %s108
      %p117 = scmp.eq.s32.totalorder %s34, 3
      %p118 = por %p116, %p117
      %p119 = scmp.ne.s32.totalorder %s108, %s109
      %p120 = scmp.eq.s32.totalorder %s34, 0
      %p121 = por %p119, %p120
      %p122 = scmp.ne.s32.totalorder %s108, %s109
      %p123 = scmp.eq.s32.totalorder %s35, 3
      %p124 = por %p122, %p123
      %p126 = scmp.ne.s32.totalorder %s109, %s125
      %p127 = scmp.eq.s32.totalorder %s35, 0
      %p128 = por %p126, %p127
      %s129 = ssub.s32 %s36, %s48
      %p130 = scmp.eq.s32.totalorder %s129, 0
      %s132 = sadd.s32 %s131, 1
      %s133 = scalar_select %p130, %s131, %s132
      %p136 = pneg %p130
      %p137 = scmp.eq.s32.totalorder %s29, 3
      %p138 = por %p136, %p137
      %p139 = scmp.ne.s32.totalorder %s131, %s134
      %p140 = scmp.eq.s32.totalorder %s29, 0
      %p141 = por %p139, %p140
      %p142 = scmp.ne.s32.totalorder %s131, %s134
      %p143 = scmp.eq.s32.totalorder %s34, 3
      %p144 = por %p142, %p143
      %p145 = scmp.ne.s32.totalorder %s134, %s135
      %p146 = scmp.eq.s32.totalorder %s34, 0
      %p147 = por %p145, %p146
      %p148 = scmp.ne.s32.totalorder %s134, %s135
      %p149 = scmp.eq.s32.totalorder %s35, 3
      %p150 = por %p148, %p149
      %p152 = scmp.ne.s32.totalorder %s135, %s151
      %p153 = scmp.eq.s32.totalorder %s35, 0
      %p154 = por %p152, %p153
      %s156 = sadd.s32 %s155, 1
      %p159 = scmp.eq.s32.totalorder %s29, 3
      %p160 = scmp.ne.s32.totalorder %s155, %s157
      %p161 = scmp.eq.s32.totalorder %s29, 0
      %p162 = por %p160, %p161
      %p163 = scmp.ne.s32.totalorder %s155, %s157
      %p164 = scmp.eq.s32.totalorder %s34, 3
      %p165 = por %p163, %p164
      %p166 = scmp.ne.s32.totalorder %s157, %s158
      %p167 = scmp.eq.s32.totalorder %s34, 0
      %p168 = por %p166, %p167
      %p169 = scmp.ne.s32.totalorder %s157, %s158
      %p170 = scmp.eq.s32.totalorder %s35, 3
      %p171 = por %p169, %p170
      %p173 = scmp.ne.s32.totalorder %s158, %s172
      %p174 = scmp.eq.s32.totalorder %s35, 0
      %p175 = por %p173, %p174
      %s177 = sadd.s32 %s176, 1
      %p180 = scmp.eq.s32.totalorder %s29, 3
      %p181 = scmp.ne.s32.totalorder %s176, %s178
      %p182 = scmp.eq.s32.totalorder %s29, 0
      %p183 = por %p181, %p182
      %p184 = scmp.ne.s32.totalorder %s176, %s178
      %p185 = scmp.eq.s32.totalorder %s34, 3
      %p186 = por %p184, %p185
      %p187 = scmp.ne.s32.totalorder %s178, %s179
      %p188 = scmp.eq.s32.totalorder %s34, 0
      %p189 = por %p187, %p188
      %p190 = scmp.ne.s32.totalorder %s178, %s179
      %p191 = scmp.eq.s32.totalorder %s35, 3
      %p192 = por %p190, %p191
      %p194 = scmp.ne.s32.totalorder %s179, %s193
      %p195 = scmp.eq.s32.totalorder %s35, 0
      %p196 = por %p194, %p195
      %s198 = sadd.s32 %s197, 1
      %p201 = scmp.eq.s32.totalorder %s29, 3
      %p202 = scmp.ne.s32.totalorder %s197, %s199
      %p203 = scmp.eq.s32.totalorder %s29, 0
      %p204 = por %p202, %p203
      %p205 = scmp.ne.s32.totalorder %s197, %s199
      %p206 = scmp.eq.s32.totalorder %s34, 3
      %p207 = por %p205, %p206
      %p208 = scmp.ne.s32.totalorder %s199, %s200
      %p209 = scmp.eq.s32.totalorder %s34, 0
      %p210 = por %p208, %p209
      %p211 = scmp.ne.s32.totalorder %s199, %s200
      %p212 = scmp.eq.s32.totalorder %s35, 3
      %p213 = por %p211, %p212
      %p215 = scmp.ne.s32.totalorder %s200, %s214
      %p216 = scmp.eq.s32.totalorder %s35, 0
      %p217 = por %p215, %p216
      %s219 = sadd.s32 %s218, 1
      %p222 = scmp.eq.s32.totalorder %s29, 3
      %p223 = scmp.ne.s32.totalorder %s218, %s220
      %p224 = scmp.eq.s32.totalorder %s29, 0
      %p225 = por %p223, %p224
      %p226 = scmp.ne.s32.totalorder %s218, %s220
      %p227 = scmp.eq.s32.totalorder %s34, 3
      %p228 = por %p226, %p227
      %p229 = scmp.ne.s32.totalorder %s220, %s221
      %p230 = scmp.eq.s32.totalorder %s34, 0
      %p231 = por %p229, %p230
      %p232 = scmp.ne.s32.totalorder %s220, %s221
      %p233 = scmp.eq.s32.totalorder %s35, 3
      %p234 = por %p232, %p233
      %p236 = scmp.ne.s32.totalorder %s221, %s235
      %p237 = scmp.eq.s32.totalorder %s35, 0
      %p238 = por %p236, %p237
      %s240 = sadd.s32 %s239, 1
      %p243 = scmp.eq.s32.totalorder %s29, 3
      %p244 = scmp.ne.s32.totalorder %s239, %s241
      %p245 = scmp.eq.s32.totalorder %s29, 0
      %p246 = por %p244, %p245
      %p247 = scmp.ne.s32.totalorder %s239, %s241
      %p248 = scmp.eq.s32.totalorder %s34, 3
      %p249 = por %p247, %p248
      %p250 = scmp.ne.s32.totalorder %s241, %s242
      %p251 = scmp.eq.s32.totalorder %s34, 0
      %p252 = por %p250, %p251
      %p253 = scmp.ne.s32.totalorder %s241, %s242
      %p254 = scmp.eq.s32.totalorder %s35, 3
      %p255 = por %p253, %p254
      %p257 = scmp.ne.s32.totalorder %s242, %s256
      %p258 = scmp.eq.s32.totalorder %s35, 0
      %p259 = por %p257, %p258
      %s261 = sadd.s32 %s260, 1
      %p264 = scmp.eq.s32.totalorder %s29, 3
      %p265 = scmp.ne.s32.totalorder %s260, %s262
      %p266 = scmp.eq.s32.totalorder %s29, 0
      %p267 = por %p265, %p266
      %p268 = scmp.ne.s32.totalorder %s260, %s262
      %p269 = scmp.eq.s32.totalorder %s34, 3
      %p270 = por %p268, %p269
      %p271 = scmp.ne.s32.totalorder %s262, %s263
      %p272 = scmp.eq.s32.totalorder %s34, 0
      %p273 = por %p271, %p272
      %p274 = scmp.ne.s32.totalorder %s262, %s263
      %p275 = scmp.eq.s32.totalorder %s35, 3
      %p276 = por %p274, %p275
      %p278 = scmp.ne.s32.totalorder %s263, %s277
      %p279 = scmp.eq.s32.totalorder %s35, 0
      %p280 = por %p278, %p279
      %s282 = sadd.s32 %s281, 1
      %p285 = scmp.eq.s32.totalorder %s29, 3
      %p286 = scmp.ne.s32.totalorder %s281, %s283
      %p287 = scmp.eq.s32.totalorder %s29, 0
      %p288 = por %p286, %p287
      %p289 = scmp.ne.s32.totalorder %s281, %s283
      %p290 = scmp.eq.s32.totalorder %s34, 3
      %p291 = por %p289, %p290
      %p292 = scmp.ne.s32.totalorder %s283, %s284
      %p293 = scmp.eq.s32.totalorder %s34, 0
      %p294 = por %p292, %p293
      %p295 = scmp.ne.s32.totalorder %s283, %s284
      %p296 = scmp.eq.s32.totalorder %s35, 3
      %p297 = por %p295, %p296
      %p299 = scmp.ne.s32.totalorder %s284, %s298
      %p300 = scmp.eq.s32.totalorder %s35, 0
      %p301 = por %p299, %p300
      %s302 = ssub.s32 %s36, %s48
      %s303 = ssub.s32 %s37, %s44
      %s304 = sor.u32 %s302, %s303
      %p305 = scmp.eq.s32.totalorder %s304, 0
      %s307 = sadd.s32 %s306, 1
      %s308 = scalar_select %p305, %s306, %s307
      %p311 = pneg %p305
      %p312 = scmp.eq.s32.totalorder %s29, 3
      %p313 = por %p311, %p312
      %p314 = scmp.ne.s32.totalorder %s306, %s309
      %p315 = scmp.eq.s32.totalorder %s29, 0
      %p316 = por %p314, %p315
      %p317 = scmp.ne.s32.totalorder %s306, %s309
      %p318 = scmp.eq.s32.totalorder %s34, 3
      %p319 = por %p317, %p318
      %p320 = scmp.ne.s32.totalorder %s309, %s310
      %p321 = scmp.eq.s32.totalorder %s34, 0
      %p322 = por %p320, %p321
      %p323 = scmp.ne.s32.totalorder %s309, %s310
      %p324 = scmp.eq.s32.totalorder %s35, 3
      %p325 = por %p323, %p324
      %p327 = scmp.ne.s32.totalorder %s310, %s326
      %p328 = scmp.eq.s32.totalorder %s35, 0
      %p329 = por %p327, %p328
      %p330 = scmp.le.s32.totalorder 1, %s29
      %p331 = scmp.lt.s32.totalorder %s29, 5
      %p332 = pnand %p330, %p331
      %p333 = pneg %p332
      // Predicated region
      $region9: #{tpu_custom_call.1} parent=5 // pred_check
        _
      $region10: #{tpu_custom_call.1} parent=5 // pred_check_branch
        %335 = sbr.rel (%p332) target = $region12
      $region11: #{tpu_custom_call.1} parent=5 // pred_region
        %s336 = ssub.s32 %s29, 1
        // Predicated region
        $region13: #{tpu_custom_call.1} parent=11 // pred_check
          %p337 = pneg %p168
        $region14: #{tpu_custom_call.1} parent=11 // pred_check_branch
          %339 = sbr.rel (%p337) target = $region16
        $region15: #{tpu_custom_call.1} parent=11 // pred_region
          %s341 = ssub.s32 512, 512
          %342 = vsyncadd [#allocation10], %s341
          %s343 = sshll.u32 [#allocation11], 4
          %s344 = int_to_ptr.vmem [resolvable:$true] %s343
          %349 = dma.hbm_to_vmem [thread:$0]  %s4, 512, %s344, [#allocation10], 64, 64, 4
        $region16: #{tpu_custom_call.1} parent=11 // pred_fallthru
          _
        // Predicated region
        $region17: #{tpu_custom_call.1} parent=11 // pred_check
          %p350 = pneg %p189
        $region18: #{tpu_custom_call.1} parent=11 // pred_check_branch
          %352 = sbr.rel (%p350) target = $region20
        $region19: #{tpu_custom_call.1} parent=11 // pred_region
          %s354 = ssub.s32 512, 512
          %355 = vsyncadd [#allocation13], %s354
          %s356 = sshll.u32 [#allocation12], 4
          %s357 = int_to_ptr.vmem [resolvable:$true] %s356
          %362 = dma.hbm_to_vmem [thread:$0]  %s5, 512, %s357, [#allocation13], 64, 64, 4
        $region20: #{tpu_custom_call.1} parent=11 // pred_fallthru
          _
        // Predicated region
        $region21: #{tpu_custom_call.1} parent=11 // pred_check
          %p363 = pneg %p210
        $region22: #{tpu_custom_call.1} parent=11 // pred_check_branch
          %365 = sbr.rel (%p363) target = $region24
        $region23: #{tpu_custom_call.1} parent=11 // pred_region
          %s367 = ssub.s32 512, 512
          %368 = vsyncadd [#allocation13], %s367
          %s369 = sshll.u32 [#allocation14], 4
          %s370 = int_to_ptr.vmem [resolvable:$true] %s369
          %375 = dma.hbm_to_vmem [thread:$0]  %s6, 512, %s370, [#allocation13], 64, 64, 4
        $region24: #{tpu_custom_call.1} parent=11 // pred_fallthru
          _
        // Predicated region
        $region25: #{tpu_custom_call.1} parent=11 // pred_check
          %p376 = pneg %p231
        $region26: #{tpu_custom_call.1} parent=11 // pred_check_branch
          %378 = sbr.rel (%p376) target = $region28
        $region27: #{tpu_custom_call.1} parent=11 // pred_region
          %s380 = ssub.s32 256, 256
          %381 = vsyncadd [#allocation16], %s380
          %s382 = sshll.u32 [#allocation15], 4
          %s383 = int_to_ptr.vmem [resolvable:$true] %s382
          %388 = dma.hbm_to_vmem [thread:$0]  %s7, 256, %s383, [#allocation16], 64, 64, 4
        $region28: #{tpu_custom_call.1} parent=11 // pred_fallthru
          _
        // Predicated region
        $region29: #{tpu_custom_call.1} parent=11 // pred_check
          %p389 = pneg %p252
        $region30: #{tpu_custom_call.1} parent=11 // pred_check_branch
          %391 = sbr.rel (%p389) target = $region32
        $region31: #{tpu_custom_call.1} parent=11 // pred_region
          %s393 = ssub.s32 16, 16
          %394 = vsyncadd [#allocation16], %s393
          %s396 = sshll.u32 [#allocation17], 4
          %s397 = int_to_ptr.vmem [resolvable:$true] %s396
          %399 = dma.hbm_to_vmem [thread:$0]  %s8, 16, %s397, [#allocation16]
        $region32: #{tpu_custom_call.1} parent=11 // pred_fallthru
          _
        // Predicated region
        $region33: #{tpu_custom_call.1} parent=11 // pred_check
          %p400 = pneg %p273
        $region34: #{tpu_custom_call.1} parent=11 // pred_check_branch
          %402 = sbr.rel (%p400) target = $region36
        $region35: #{tpu_custom_call.1} parent=11 // pred_region
          _
        $region36: #{tpu_custom_call.1} parent=11 // pred_fallthru
          _
        // Predicated region
        $region37: #{tpu_custom_call.1} parent=11 // pred_check
          %p403 = pneg %p294
        $region38: #{tpu_custom_call.1} parent=11 // pred_check_branch
          %405 = sbr.rel (%p403) target = $region40
        $region39: #{tpu_custom_call.1} parent=11 // pred_region
          %s407 = ssub.s32 256, 256
          %408 = vsyncadd [#allocation19], %s407
          %s409 = sshll.u32 [#allocation18], 4
          %s410 = int_to_ptr.vmem [resolvable:$true] %s409
          %415 = dma.hbm_to_vmem [thread:$0]  %s10, 256, %s410, [#allocation19], 128, 128, 8
        $region40: #{tpu_custom_call.1} parent=11 // pred_fallthru
          _
      $region12: #{tpu_custom_call.1} parent=5 // pred_fallthru
        _
      %p416 = scmp.lt.s32.totalorder %s29, 4
      // Predicated region
      $region41: #{tpu_custom_call.1} parent=5 // pred_check
        %p417 = pneg %p416
      $region42: #{tpu_custom_call.1} parent=5 // pred_check_branch
        %419 = sbr.rel (%p417) target = $region44
      $region43: #{tpu_custom_call.1} parent=5 // pred_region
        // Predicated region
        $region45: #{tpu_custom_call.1} parent=43 // pred_check
          %p420 = pneg %p61
        $region46: #{tpu_custom_call.1} parent=43 // pred_check_branch
          %422 = sbr.rel (%p420) target = $region48
        $region47: #{tpu_custom_call.1} parent=43 // pred_region
          %p423 = scmp.lt.s32.totalorder %s36, 1
          %s424 = scalar_select %p423, %s36, 1
          %s425 = smul.addr %s424, 2
          %s426 = smul.addr %s425, 8
          %s427 = scalar_lea.vmem %s0, %s426
        $region48: #{tpu_custom_call.1} parent=43 // pred_fallthru
          _
        // Predicated region
        $region49: #{tpu_custom_call.1} parent=43 // pred_check
          %p428 = pneg %p87
        $region50: #{tpu_custom_call.1} parent=43 // pred_check_branch
          %430 = sbr.rel (%p428) target = $region52
        $region51: #{tpu_custom_call.1} parent=43 // pred_region
          %p431 = scmp.lt.s32.totalorder %s36, 1
          %s432 = scalar_select %p431, %s36, 1
          %s433 = smul.addr %s432, 8
          %s434 = scalar_lea.vmem %s1, %s433
        $region52: #{tpu_custom_call.1} parent=43 // pred_fallthru
          _
        // Predicated region
        $region53: #{tpu_custom_call.1} parent=43 // pred_check
          %p435 = pneg %p115
        $region54: #{tpu_custom_call.1} parent=43 // pred_check_branch
          %437 = sbr.rel (%p435) target = $region56
        $region55: #{tpu_custom_call.1} parent=43 // pred_region
          %s438 = sand.u32 %s105, 1
          %s439 = scalar_lea.sflag [#allocation7], %s438
          %s440 = sand.u32 %s105, 1
          %s441 = smul.addr %s440, 8
          %s442 = scalar_lea.vmem [#allocation6], %s441
          %s444 = ssub.s32 128, 128
          %445 = vsyncadd %s439, %s444
          %s446 = smul.addr %s36, 2
          %s447 = sadd.s32 %s37, %s446
          %s448 = smul.addr %s447, 128
          %s449 = scalar_lea.hbm %s2, %s448
          %s451 = sshll.u32 %s442, 4
          %s452 = int_to_ptr.vmem [resolvable:$true] %s451
          %454 = dma.hbm_to_vmem [thread:$0]  %s449, 128, %s452, %s439
        $region56: #{tpu_custom_call.1} parent=43 // pred_fallthru
          _
        // Predicated region
        $region57: #{tpu_custom_call.1} parent=43 // pred_check
          %p455 = pneg %p141
        $region58: #{tpu_custom_call.1} parent=43 // pred_check_branch
          %457 = sbr.rel (%p455) target = $region60
        $region59: #{tpu_custom_call.1} parent=43 // pred_region
          %s458 = sand.u32 %s29, 1
          %s459 = scalar_lea.sflag [#allocation10], %s458
          %s460 = sand.u32 %s131, 1
          %s461 = scalar_lea.vmem [#allocation9], %s460
          %s463 = ssub.s32 16, 16
          %464 = vsyncadd %s459, %s463
          %s465 = smul.addr %s36, 16
          %s466 = scalar_lea.hbm %s3, %s465
          %s468 = sshll.u32 %s461, 4
          %s469 = int_to_ptr.vmem [resolvable:$true] %s468
          %471 = dma.hbm_to_vmem [thread:$0]  %s466, 16, %s469, %s459
        $region60: #{tpu_custom_call.1} parent=43 // pred_fallthru
          _
      $region44: #{tpu_custom_call.1} parent=5 // pred_fallthru
        _
      %p472 = scmp.le.s32.totalorder 1, %s29
      %p473 = scmp.lt.s32.totalorder %s29, 5
      %p474 = pnand %p472, %p473
      %p475 = pneg %p474
      // Predicated region
      $region61: #{tpu_custom_call.1} parent=5 // pred_check
        _
      $region62: #{tpu_custom_call.1} parent=5 // pred_check_branch
        %477 = sbr.rel (%p474) target = $region64
      $region63: #{tpu_custom_call.1} parent=5 // pred_region
        %s478 = ssub.s32 %s29, 1
        %s479 = sand.u32 %s108, 1
        %s480 = scalar_lea.sflag [#allocation7], %s479
        %s481 = sand.u32 %s108, 1
        %s482 = smul.addr %s481, 8
        %s483 = scalar_lea.vmem [#allocation6], %s482
        // Predicated region
        $region65: #{tpu_custom_call.1} parent=63 // pred_check
          %p484 = pneg %p121
        $region66: #{tpu_custom_call.1} parent=63 // pred_check_branch
          %486 = sbr.rel (%p484) target = $region68
        $region67: #{tpu_custom_call.1} parent=63 // pred_region
          %487 = dma.done %s480, 128
        $region68: #{tpu_custom_call.1} parent=63 // pred_fallthru
          _
        %s488 = sand.u32 %s34, 1
        %s489 = scalar_lea.sflag [#allocation10], %s488
        %s490 = sand.u32 %s134, 1
        %s491 = scalar_lea.vmem [#allocation9], %s490
        // Predicated region
        $region69: #{tpu_custom_call.1} parent=63 // pred_check
          %p492 = pneg %p147
        $region70: #{tpu_custom_call.1} parent=63 // pred_check_branch
          %494 = sbr.rel (%p492) target = $region72
        $region71: #{tpu_custom_call.1} parent=63 // pred_region
          %495 = dma.done %s489, 16
        $region72: #{tpu_custom_call.1} parent=63 // pred_fallthru
          _
        // Predicated region
        $region73: #{tpu_custom_call.1} parent=63 // pred_check
          %p496 = pneg %p168
        $region74: #{tpu_custom_call.1} parent=63 // pred_check_branch
          %498 = sbr.rel (%p496) target = $region76
        $region75: #{tpu_custom_call.1} parent=63 // pred_region
          %499 = dma.done [#allocation10], 512
        $region76: #{tpu_custom_call.1} parent=63 // pred_fallthru
          _
        // Predicated region
        $region77: #{tpu_custom_call.1} parent=63 // pred_check
          %p500 = pneg %p189
        $region78: #{tpu_custom_call.1} parent=63 // pred_check_branch
          %502 = sbr.rel (%p500) target = $region80
        $region79: #{tpu_custom_call.1} parent=63 // pred_region
          %503 = dma.done [#allocation13], 512
        $region80: #{tpu_custom_call.1} parent=63 // pred_fallthru
          _
        // Predicated region
        $region81: #{tpu_custom_call.1} parent=63 // pred_check
          %p504 = pneg %p210
        $region82: #{tpu_custom_call.1} parent=63 // pred_check_branch
          %506 = sbr.rel (%p504) target = $region84
        $region83: #{tpu_custom_call.1} parent=63 // pred_region
          %507 = dma.done [#allocation13], 512
        $region84: #{tpu_custom_call.1} parent=63 // pred_fallthru
          _
        // Predicated region
        $region85: #{tpu_custom_call.1} parent=63 // pred_check
          %p508 = pneg %p231
        $region86: #{tpu_custom_call.1} parent=63 // pred_check_branch
          %510 = sbr.rel (%p508) target = $region88
        $region87: #{tpu_custom_call.1} parent=63 // pred_region
          %511 = dma.done [#allocation16], 256
        $region88: #{tpu_custom_call.1} parent=63 // pred_fallthru
          _
        // Predicated region
        $region89: #{tpu_custom_call.1} parent=63 // pred_check
          %p512 = pneg %p252
        $region90: #{tpu_custom_call.1} parent=63 // pred_check_branch
          %514 = sbr.rel (%p512) target = $region92
        $region91: #{tpu_custom_call.1} parent=63 // pred_region
          %515 = dma.done [#allocation16], 16
        $region92: #{tpu_custom_call.1} parent=63 // pred_fallthru
          _
        // Predicated region
        $region93: #{tpu_custom_call.1} parent=63 // pred_check
          %p516 = pneg %p294
        $region94: #{tpu_custom_call.1} parent=63 // pred_check_branch
          %518 = sbr.rel (%p516) target = $region96
        $region95: #{tpu_custom_call.1} parent=63 // pred_region
          %519 = dma.done [#allocation19], 256
        $region96: #{tpu_custom_call.1} parent=63 // pred_fallthru
          _
        %p520 = scmp.lt.s32.totalorder %s38, 1
        %s521 = scalar_select %p520, %s38, 1
        %s522 = smul.addr %s521, 2
        %s523 = smul.addr %s522, 8
        %s524 = scalar_lea.vmem %s0, %s523
        %p525 = pneg %p67
        %p526 = pneg %p64
        %p527 = scmp.lt.s32.totalorder %s38, 1
        %s528 = scalar_select %p527, %s38, 1
        %s529 = smul.addr %s528, 8
        %s530 = scalar_lea.vmem %s1, %s529
        %p531 = pneg %p93
        %p532 = pneg %p90
        %s533 = sand.u32 %s108, 1
        %s534 = scalar_lea.sflag [#allocation7], %s533
        %s535 = sand.u32 %s108, 1
        %s536 = smul.addr %s535, 8
        %s537 = scalar_lea.vmem [#allocation6], %s536
        %p538 = pneg %p121
        %p539 = pneg %p118
        %s540 = sand.u32 %s34, 1
        %s541 = scalar_lea.sflag [#allocation10], %s540
        %s542 = sand.u32 %s134, 1
        %s543 = scalar_lea.vmem [#allocation9], %s542
        %p544 = pneg %p147
        %p545 = pneg %p144
        %p546 = pneg %p168
        %p547 = pneg %p165
        %p548 = pneg %p189
        %p549 = pneg %p186
        %p550 = pneg %p210
        %p551 = pneg %p207
        %p552 = pneg %p231
        %p553 = pneg %p228
        %p554 = pneg %p252
        %p555 = pneg %p249
        %p556 = pneg %p273
        %p557 = pneg %p270
        %p558 = pneg %p294
        %p559 = pneg %p291
        %p560 = pneg %p322
        %p561 = pneg %p319
        %s562 = sand.u32 %s309, 1
        %s563 = scalar_lea.sflag [#allocation8], %s562
        %s564 = sand.u32 %s309, 1
        %s565 = smul.addr %s564, 8
        %s566 = scalar_lea.vmem [#allocation20], %s565
        %p567 = scmp.lt.s32.totalorder %s38, 1
        %s568 = scalar_select %p567, %s38, 1
        %s569 = smul.addr %s568, 2
        %s570 = smul.addr %s569, 8
        %s571 = scalar_lea.vmem %s0, %s570
        %p572 = scmp.lt.s32.totalorder %s38, 1
        %s573 = scalar_select %p572, %s38, 1
        %s574 = smul.addr %s573, 8
        %s575 = scalar_lea.vmem %s1, %s574
        %v577 = vld [vmem:[#allocation18] sm:$0xff]
        %v578 = vld [vmem:[#allocation18 + $0x8] sm:$0xff]
        %p579 = scmp.eq.s32.totalorder %s39, 0
        // Predicated region
        $region97: #{tpu_custom_call.1} parent=63 // pred_check
          %p580 = pneg %p579
        $region98: #{tpu_custom_call.1} parent=63 // pred_check_branch
          %582 = sbr.rel (%p580) target = $region100
        $region99: #{tpu_custom_call.1} parent=63 // pred_region
          %v583 = vld [vmem:[%s571] sm:$0xff]
          %v584 = vld [vmem:[%s571 + $0x8] sm:$0xff]
          %v585 = vld [vmem:[#allocation12] sm:$0xf]
          %v586 = vld [vmem:[#allocation12 + $0x4] sm:$0xf]
          %v587 = vld [vmem:[#allocation12 + $0x8] sm:$0xf]
          %v588 = vld [vmem:[#allocation12 + $0xc] sm:$0xf]
          %v589 = vpack.c.bf16 %v584, %v583
          %v594 = vunpack.c.l.b16 %v585
          %v595 = vunpack.c.l.b16 %v586
          %v596 = vunpack.c.l.b16 %v587
          %v597 = vunpack.c.l.b16 %v588
          %v598 = vpack.c.b16 %v595, %v594
          %v599 = vpack.c.b16 %v597, %v596
          %vm602 = vcmask 261120
          %v604 = vsel %vm602, %v589, 0
          %606 = vmatprep.subr.bf16.mxu0 0
          %607 = vmatpush1.bf16.msra.mxu0 0
          %608 = vmatprep.subr.bf16.mxu0 0
          %609 = vmatpush1.bf16.msra.mxu0 0
          %610 = vmatprep.subr.bf16.mxu0 0
          %611 = vmatpush1.bf16.msra.mxu0 0
          %612 = vmatprep.subr.bf16.mxu0 0
          %613 = vmatpush1.bf16.msra.mxu0 0
          %614 = vmatprep.subr.bf16.mxu0 0
          %615 = vmatpush1.bf16.msra.mxu0 0
          %616 = vmatprep.subr.bf16.mxu0 0
          %617 = vmatpush1.bf16.msra.mxu0 0
          %618 = vmatprep.subr.bf16.mxu0 0
          %619 = vmatpush1.bf16.msra.mxu0 %v599
          %620 = vmatprep.subr.bf16.mxu0 0
          %621 = vmatpush1.bf16.msra.mxu0 %v598
          %622 = vmatprep.subr.bf16.mxu0 0
          %623 = vmatpush2.bf16.msra.mxu0 0
          %624 = vmatprep.subr.bf16.mxu0 0
          %625 = vmatpush2.bf16.msra.mxu0 0
          %626 = vmatprep.subr.bf16.mxu0 0
          %627 = vmatpush2.bf16.msra.mxu0 0
          %628 = vmatprep.subr.bf16.mxu0 0
          %629 = vmatpush2.bf16.msra.mxu0 0
          %630 = vmatprep.subr.bf16.mxu0 0
          %631 = vmatpush2.bf16.msra.mxu0 0
          %632 = vmatprep.subr.bf16.mxu0 0
          %633 = vmatpush2.bf16.msra.mxu0 0
          %634 = vmatprep.subr.bf16.mxu0 0
          %635 = vmatpush2.bf16.msra.mxu0 0
          %636 = vmatprep.subr.bf16.mxu0 0
          %637 = vmatpush2.bf16.msra.mxu0 0
          %638 = vmatprep.mubr.bf16.mxu0 0
          %639 = vmatmul.mubr.bf16.gmra.mxu0 %v604
          %v640 = vpop.f32.mrf.mxu0
          %v641 = vadd.f32 0.0, %v640
          %v642 = vpop.f32.mrf.mxu0
          %v643 = vpop.f32.mrf.mxu0
          %v644 = vadd.f32 0.0, %v643
          %v645 = vpop.f32.mrf.mxu0
          %646 = vdwg.mxu0
          %v647 = vlaneseq
          %v648 = vshrl.u32 %v647, 7
          %v649 = vsub.s32 1, %v648
          %v650 = vrot.slane %v577, %v649
          %v651 = vadd.f32 %v641, %v650
          %v652 = vadd.f32 %v644, %v650
          %v653 = vlaneseq
          %v654 = vshrl.u32 %v653, 7
          %v655 = vsub.s32 2, %v654
          %v656 = vrot.slane %v577, %v655
          %658 = vrot.lane.b32.xlu0 %v656, 32
          %v659 = vpop.permute.xlu0 %658
          %v661 = vadd.f32 %v641, %v659
          %v662 = vadd.f32 %v644, %v659
          %v663 = vpack.c.bf16 %v652, %v651
          %v665 = vunpack.c.l.b16 %v663
          %v666 = vunpack.c.h.b16 %v663
          %v667 = vpack.c.b16 %v665, %v665
          %v668 = vpack.c.b16 %v666, %v666
          %vm671 = vcmask 60416
          %672 = vst.msk [vmem:[#allocation2] sm:$0xf] %vm671, %v667
          %673 = vst.msk [vmem:[#allocation2 + $0x4] sm:$0xf] %vm671, %v668
          %v674 = vpack.c.bf16 %v662, %v661
          %v676 = vunpack.c.l.b16 %v674
          %v677 = vunpack.c.h.b16 %v674
          %v678 = vpack.c.b16 %v676, %v676
          %v679 = vpack.c.b16 %v677, %v677
          %680 = vrot.lane.b32.xlu0 %v678, 96
          %v681 = vpop.permute.xlu0 %680
          %682 = vrot.lane.b32.xlu0 %v679, 96
          %v683 = vpop.permute.xlu0 %682
          %686 = vst.msk [vmem:[#allocation3] sm:$0xf] %vm671, %v681
          %687 = vst.msk [vmem:[#allocation3 + $0x4] sm:$0xf] %vm671, %v683
          %688 = vrot.lane.b32.xlu0 %v667, 120
          %v689 = vpop.permute.xlu0 %688
          %690 = vrot.lane.b32.xlu0 %v668, 120
          %v691 = vpop.permute.xlu0 %690
          %s694 = scalar_lea.vmem [#allocation2], 8
          %695 = vst.msk [vmem:[%s694] sm:$0xf] %vm671, %v689
          %696 = vst.msk [vmem:[%s694 + $0x4] sm:$0xf] %vm671, %v691
          %697 = vrot.lane.b32.xlu0 %v678, 88
          %v698 = vpop.permute.xlu0 %697
          %699 = vrot.lane.b32.xlu0 %v679, 88
          %v700 = vpop.permute.xlu0 %699
          %s703 = scalar_lea.vmem [#allocation3], 8
          %704 = vst.msk [vmem:[%s703] sm:$0xf] %vm671, %v698
          %705 = vst.msk [vmem:[%s703 + $0x4] sm:$0xf] %vm671, %v700
          %706 = vrot.lane.b32.xlu0 %v667, 112
          %v707 = vpop.permute.xlu0 %706
          %708 = vrot.lane.b32.xlu0 %v668, 112
          %v709 = vpop.permute.xlu0 %708
          %s712 = scalar_lea.vmem [#allocation2], 16
          %713 = vst.msk [vmem:[%s712] sm:$0xf] %vm671, %v707
          %714 = vst.msk [vmem:[%s712 + $0x4] sm:$0xf] %vm671, %v709
          %715 = vrot.lane.b32.xlu0 %v678, 80
          %v716 = vpop.permute.xlu0 %715
          %717 = vrot.lane.b32.xlu0 %v679, 80
          %v718 = vpop.permute.xlu0 %717
          %s721 = scalar_lea.vmem [#allocation3], 16
          %722 = vst.msk [vmem:[%s721] sm:$0xf] %vm671, %v716
          %723 = vst.msk [vmem:[%s721 + $0x4] sm:$0xf] %vm671, %v718
          %724 = vrot.lane.b32.xlu0 %v667, 104
          %v725 = vpop.permute.xlu0 %724
          %726 = vrot.lane.b32.xlu0 %v668, 104
          %v727 = vpop.permute.xlu0 %726
          %s730 = scalar_lea.vmem [#allocation2], 24
          %731 = vst.msk [vmem:[%s730] sm:$0xf] %vm671, %v725
          %732 = vst.msk [vmem:[%s730 + $0x4] sm:$0xf] %vm671, %v727
          %733 = vrot.lane.b32.xlu0 %v678, 72
          %v734 = vpop.permute.xlu0 %733
          %735 = vrot.lane.b32.xlu0 %v679, 72
          %v736 = vpop.permute.xlu0 %735
          %s739 = scalar_lea.vmem [#allocation3], 24
          %740 = vst.msk [vmem:[%s739] sm:$0xf] %vm671, %v734
          %741 = vst.msk [vmem:[%s739 + $0x4] sm:$0xf] %vm671, %v736
          %v742 = vld [vmem:[%s575] sm:$0xff]
          %s743 = scalar_lea.vmem [#allocation12], 16
          %v744 = vld [vmem:[%s743] sm:$0xf]
          %v745 = vld [vmem:[%s743 + $0x4] sm:$0xf]
          %v746 = vld [vmem:[%s743 + $0x8] sm:$0xf]
          %v747 = vld [vmem:[%s743 + $0xc] sm:$0xf]
          %v748 = vpack.c.bf16 %v742, %v742
          %v753 = vunpack.c.l.b16 %v744
          %v754 = vunpack.c.l.b16 %v745
          %v755 = vunpack.c.l.b16 %v746
          %v756 = vunpack.c.l.b16 %v747
          %v757 = vpack.c.b16 %v754, %v753
          %v758 = vpack.c.b16 %v756, %v755
          %v762 = vsel %vm602, %v748, 0
          %764 = vmatprep.subr.bf16.mxu0 0
          %765 = vmatpush1.bf16.msra.mxu0 0
          %766 = vmatprep.subr.bf16.mxu0 0
          %767 = vmatpush1.bf16.msra.mxu0 0
          %768 = vmatprep.subr.bf16.mxu0 0
          %769 = vmatpush1.bf16.msra.mxu0 0
          %770 = vmatprep.subr.bf16.mxu0 0
          %771 = vmatpush1.bf16.msra.mxu0 0
          %772 = vmatprep.subr.bf16.mxu0 0
          %773 = vmatpush1.bf16.msra.mxu0 0
          %774 = vmatprep.subr.bf16.mxu0 0
          %775 = vmatpush1.bf16.msra.mxu0 0
          %776 = vmatprep.subr.bf16.mxu0 0
          %777 = vmatpush1.bf16.msra.mxu0 %v758
          %778 = vmatprep.subr.bf16.mxu0 0
          %779 = vmatpush1.bf16.msra.mxu0 %v757
          %780 = vmatprep.subr.bf16.mxu0 0
          %781 = vmatpush2.bf16.msra.mxu0 0
          %782 = vmatprep.subr.bf16.mxu0 0
          %783 = vmatpush2.bf16.msra.mxu0 0
          %784 = vmatprep.subr.bf16.mxu0 0
          %785 = vmatpush2.bf16.msra.mxu0 0
          %786 = vmatprep.subr.bf16.mxu0 0
          %787 = vmatpush2.bf16.msra.mxu0 0
          %788 = vmatprep.subr.bf16.mxu0 0
          %789 = vmatpush2.bf16.msra.mxu0 0
          %790 = vmatprep.subr.bf16.mxu0 0
          %791 = vmatpush2.bf16.msra.mxu0 0
          %792 = vmatprep.subr.bf16.mxu0 0
          %793 = vmatpush2.bf16.msra.mxu0 0
          %794 = vmatprep.subr.bf16.mxu0 0
          %795 = vmatpush2.bf16.msra.mxu0 0
          %796 = vmatprep.mubr.bf16.mxu0 0
          %797 = vmatmul.mubr.bf16.gmra.mxu0 %v762
          %v798 = vpop.f32.mrf.mxu0
          %v799 = vadd.f32 0.0, %v798
          %v800 = vpop.f32.mrf.mxu0
          %v801 = vpop.f32.mrf.mxu0
          %v802 = vpop.f32.mrf.mxu0
          %803 = vdwg.mxu0
          %v804 = vlaneseq
          %v805 = vshrl.u32 %v804, 7
          %v806 = vsub.s32 4, %v805
          %v807 = vrot.slane %v577, %v806
          %v808 = vadd.f32 %v799, %v807
          %v809 = vlaneseq
          %v810 = vshrl.u32 %v809, 7
          %v811 = vsub.s32 5, %v810
          %v812 = vrot.slane %v577, %v811
          %814 = vrot.lane.b32.xlu0 %v812, 32
          %v815 = vpop.permute.xlu0 %814
          %v817 = vadd.f32 %v799, %v815
          %v818 = vpack.c.bf16 %v808, %v808
          %819 = vst.msk [vmem:[#allocation4] sm:$0xf] %vm671, %v818
          %v820 = vpack.c.bf16 %v817, %v817
          %v822 = vunpack.c.l.b16 %v820
          %v823 = vpack.c.b16 %v822, %v822
          %824 = vrot.lane.b32.xlu0 %v823, 96
          %v825 = vpop.permute.xlu0 %824
          %827 = vst.msk [vmem:[#allocation5] sm:$0xf] %vm671, %v825
          %v829 = vunpack.c.l.b16 %v818
          %v830 = vpack.c.b16 %v829, %v829
          %831 = vrot.lane.b32.xlu0 %v830, 120
          %v832 = vpop.permute.xlu0 %831
          %s834 = scalar_lea.vmem [#allocation4], 4
          %835 = vst.msk [vmem:[%s834] sm:$0xf] %vm671, %v832
          %836 = vrot.lane.b32.xlu0 %v823, 88
          %v837 = vpop.permute.xlu0 %836
          %s839 = scalar_lea.vmem [#allocation5], 4
          %840 = vst.msk [vmem:[%s839] sm:$0xf] %vm671, %v837
          %841 = vrot.lane.b32.xlu0 %v830, 112
          %v842 = vpop.permute.xlu0 %841
          %s844 = scalar_lea.vmem [#allocation4], 8
          %845 = vst.msk [vmem:[%s844] sm:$0xf] %vm671, %v842
          %846 = vrot.lane.b32.xlu0 %v823, 80
          %v847 = vpop.permute.xlu0 %846
          %s849 = scalar_lea.vmem [#allocation5], 8
          %850 = vst.msk [vmem:[%s849] sm:$0xf] %vm671, %v847
          %851 = vrot.lane.b32.xlu0 %v830, 104
          %v852 = vpop.permute.xlu0 %851
          %s854 = scalar_lea.vmem [#allocation4], 12
          %855 = vst.msk [vmem:[%s854] sm:$0xf] %vm671, %v852
          %856 = vrot.lane.b32.xlu0 %v823, 72
          %v857 = vpop.permute.xlu0 %856
          %s859 = scalar_lea.vmem [#allocation5], 12
          %860 = vst.msk [vmem:[%s859] sm:$0xf] %vm671, %v857
        $region100: #{tpu_custom_call.1} parent=63 // pred_fallthru
          _
        %s861 = smul.u32 %s39, 8
        %s862 = scalar_lea.vmem %s571, %s861
        %v863 = vld [vmem:[%s862] sm:$0xff]
        %v864 = vld [vmem:[#allocation11] sm:$0xf]
        %v865 = vld [vmem:[#allocation11 + $0x4] sm:$0xf]
        %v866 = vld [vmem:[#allocation11 + $0x8] sm:$0xf]
        %v867 = vld [vmem:[#allocation11 + $0xc] sm:$0xf]
        %v868 = vld [vmem:[%s483] sm:$0xff]
        %v869 = vld [vmem:[#allocation14] sm:$0xf]
        %v870 = vld [vmem:[#allocation14 + $0x4] sm:$0xf]
        %v871 = vld [vmem:[#allocation14 + $0x8] sm:$0xf]
        %v872 = vld [vmem:[#allocation14 + $0xc] sm:$0xf]
        %v873 = vpack.c.bf16 %v863, %v863
        %v874 = vlaneseq
        %v875 = vshrl.u32 %v874, 7
        %v876 = vsub.s32 0, %v875
        %v877 = vrot.slane %v577, %v876
        %v882 = vunpack.c.l.b16 %v864
        %v883 = vunpack.c.l.b16 %v865
        %v884 = vunpack.c.l.b16 %v866
        %v885 = vunpack.c.l.b16 %v867
        %v886 = vpack.c.b16 %v883, %v882
        %v887 = vpack.c.b16 %v885, %v884
        %vm890 = vcmask 261120
        %v892 = vsel %vm890, %v873, 0
        %894 = vmatprep.subr.bf16.mxu0 0
        %895 = vmatpush1.bf16.msra.mxu0 0
        %896 = vmatprep.subr.bf16.mxu0 0
        %897 = vmatpush1.bf16.msra.mxu0 0
        %898 = vmatprep.subr.bf16.mxu0 0
        %899 = vmatpush1.bf16.msra.mxu0 0
        %900 = vmatprep.subr.bf16.mxu0 0
        %901 = vmatpush1.bf16.msra.mxu0 0
        %902 = vmatprep.subr.bf16.mxu0 0
        %903 = vmatpush1.bf16.msra.mxu0 0
        %904 = vmatprep.subr.bf16.mxu0 0
        %905 = vmatpush1.bf16.msra.mxu0 0
        %906 = vmatprep.subr.bf16.mxu0 0
        %907 = vmatpush1.bf16.msra.mxu0 %v887
        %908 = vmatprep.subr.bf16.mxu0 0
        %909 = vmatpush1.bf16.msra.mxu0 %v886
        %910 = vmatprep.subr.bf16.mxu0 0
        %911 = vmatpush2.bf16.msra.mxu0 0
        %912 = vmatprep.subr.bf16.mxu0 0
        %913 = vmatpush2.bf16.msra.mxu0 0
        %914 = vmatprep.subr.bf16.mxu0 0
        %915 = vmatpush2.bf16.msra.mxu0 0
        %916 = vmatprep.subr.bf16.mxu0 0
        %917 = vmatpush2.bf16.msra.mxu0 0
        %918 = vmatprep.subr.bf16.mxu0 0
        %919 = vmatpush2.bf16.msra.mxu0 0
        %920 = vmatprep.subr.bf16.mxu0 0
        %921 = vmatpush2.bf16.msra.mxu0 0
        %922 = vmatprep.subr.bf16.mxu0 0
        %923 = vmatpush2.bf16.msra.mxu0 0
        %924 = vmatprep.subr.bf16.mxu0 0
        %925 = vmatpush2.bf16.msra.mxu0 0
        %926 = vmatprep.mubr.bf16.mxu0 0
        %927 = vmatmul.mubr.bf16.gmra.mxu0 %v892
        %v928 = vpop.f32.mrf.mxu0
        %v929 = vadd.f32 %v877, %v928
        %v930 = vpop.f32.mrf.mxu0
        %v931 = vpop.f32.mrf.mxu0
        %v932 = vpop.f32.mrf.mxu0
        %933 = vdwg.mxu0
        %v934 = vpack.c.bf16 %v929, %v929
        %v935 = vld [vmem:[#allocation2] sm:$0xf]
        %v936 = vld [vmem:[#allocation2 + $0x4] sm:$0xf]
        %v939 = vunpack.c.l.b16 %v935
        %v940 = vunpack.c.l.b16 %v936
        %v941 = vpack.c.b16 %v940, %v939
        %vm942 = vcmask 64512
        %v944 = vsel %vm942, %v934, 0
        %v947 = vsel %vm942, %v941, 0
        %949 = vmatprep.subr.bf16.mxu0 0
        %950 = vmatpush1.bf16.xpose.msra.mxu0 0
        %951 = vmatprep.subr.bf16.mxu0 0
        %952 = vmatpush1.bf16.xpose.msra.mxu0 0
        %953 = vmatprep.subr.bf16.mxu0 0
        %954 = vmatpush1.bf16.xpose.msra.mxu0 0
        %955 = vmatprep.subr.bf16.mxu0 0
        %956 = vmatpush1.bf16.xpose.msra.mxu0 0
        %957 = vmatprep.subr.bf16.mxu0 0
        %958 = vmatpush1.bf16.xpose.msra.mxu0 0
        %959 = vmatprep.subr.bf16.mxu0 0
        %960 = vmatpush1.bf16.xpose.msra.mxu0 0
        %961 = vmatprep.subr.bf16.mxu0 0
        %962 = vmatpush1.bf16.xpose.msra.mxu0 0
        %963 = vmatprep.subr.bf16.mxu0 0
        %964 = vmatpush1.bf16.xpose.msra.mxu0 %v947
        %965 = vmatprep.subr.bf16.mxu0 0
        %966 = vmatpush2.bf16.xpose.msra.mxu0 0
        %967 = vmatprep.subr.bf16.mxu0 0
        %968 = vmatpush2.bf16.xpose.msra.mxu0 0
        %969 = vmatprep.subr.bf16.mxu0 0
        %970 = vmatpush2.bf16.xpose.msra.mxu0 0
        %971 = vmatprep.subr.bf16.mxu0 0
        %972 = vmatpush2.bf16.xpose.msra.mxu0 0
        %973 = vmatprep.subr.bf16.mxu0 0
        %974 = vmatpush2.bf16.xpose.msra.mxu0 0
        %975 = vmatprep.subr.bf16.mxu0 0
        %976 = vmatpush2.bf16.xpose.msra.mxu0 0
        %977 = vmatprep.subr.bf16.mxu0 0
        %978 = vmatpush2.bf16.xpose.msra.mxu0 0
        %979 = vmatprep.subr.bf16.mxu0 0
        %980 = vmatpush2.bf16.xpose.msra.mxu0 0
        %981 = vmatprep.mubr.bf16.mxu0 0
        %982 = vmatmul.mubr.bf16.gmra.mxu0 %v944
        %v983 = vpop.f32.mrf.mxu0
        %v984 = vadd.f32 %v868, %v983
        %v985 = vpop.f32.mrf.mxu0
        %v986 = vpop.f32.mrf.mxu0
        %v987 = vpop.f32.mrf.mxu0
        %988 = vdwg.mxu0
        %vm989 = vcmask 130048
        %v990 = vsel %vm989, %v984, -inf
        %991 = vmax.xlane.f32.xlu0 %v990
        %v992 = vpop.xlane.xlu0 %991
        %v993 = vsub.f32 %v984, %v992
        %v994 = vmul.f32 %v993, 1.442695
        %v995 = vpow.pop %v994
        %v996 = vsel %vm989, %v995, 0.0
        %997 = vadd.xlane.f32.xlu0 %v996
        %v998 = vpop.xlane.xlu0 %997
        %v999 = vpack.c.bf16 %v995, %v995
        %v1000 = vld [vmem:[#allocation3] sm:$0xf]
        %v1001 = vld [vmem:[#allocation3 + $0x4] sm:$0xf]
        %v1004 = vunpack.c.l.b16 %v1000
        %v1005 = vunpack.c.l.b16 %v1001
        %v1006 = vpack.c.b16 %v1005, %v1004
        %v1009 = vsel %vm989, %v999, 0
        %1011 = vmatprep.subr.bf16.mxu0 0
        %1012 = vmatpush1.bf16.msra.mxu0 0
        %1013 = vmatprep.subr.bf16.mxu0 0
        %1014 = vmatpush1.bf16.msra.mxu0 0
        %1015 = vmatprep.subr.bf16.mxu0 0
        %1016 = vmatpush1.bf16.msra.mxu0 0
        %1017 = vmatprep.subr.bf16.mxu0 0
        %1018 = vmatpush1.bf16.msra.mxu0 0
        %1019 = vmatprep.subr.bf16.mxu0 0
        %1020 = vmatpush1.bf16.msra.mxu0 0
        %1021 = vmatprep.subr.bf16.mxu0 0
        %1022 = vmatpush1.bf16.msra.mxu0 0
        %1023 = vmatprep.subr.bf16.mxu0 0
        %1024 = vmatpush1.bf16.msra.mxu0 0
        %1025 = vmatprep.subr.bf16.mxu0 0
        %1026 = vmatpush1.bf16.msra.mxu0 %v1006
        %1027 = vmatprep.subr.bf16.mxu0 0
        %1028 = vmatpush2.bf16.msra.mxu0 0
        %1029 = vmatprep.subr.bf16.mxu0 0
        %1030 = vmatpush2.bf16.msra.mxu0 0
        %1031 = vmatprep.subr.bf16.mxu0 0
        %1032 = vmatpush2.bf16.msra.mxu0 0
        %1033 = vmatprep.subr.bf16.mxu0 0
        %1034 = vmatpush2.bf16.msra.mxu0 0
        %1035 = vmatprep.subr.bf16.mxu0 0
        %1036 = vmatpush2.bf16.msra.mxu0 0
        %1037 = vmatprep.subr.bf16.mxu0 0
        %1038 = vmatpush2.bf16.msra.mxu0 0
        %1039 = vmatprep.subr.bf16.mxu0 0
        %1040 = vmatpush2.bf16.msra.mxu0 0
        %1041 = vmatprep.subr.bf16.mxu0 0
        %1042 = vmatpush2.bf16.msra.mxu0 0
        %1043 = vmatprep.mubr.bf16.mxu0 0
        %1044 = vmatmul.mubr.bf16.gmra.mxu0 %v1009
        %v1045 = vpop.f32.mrf.mxu0
        %v1046 = vadd.f32 0.0, %v1045
        %v1047 = vpop.f32.mrf.mxu0
        %v1048 = vpop.f32.mrf.mxu0
        %v1049 = vpop.f32.mrf.mxu0
        %1050 = vdwg.mxu0
        %v1051 = vrcp.pop %v998
        %v1052 = vmul.f32 %v1046, %v1051
        %s1053 = scalar_lea.vmem [#allocation2], 8
        %v1054 = vld [vmem:[%s1053] sm:$0xf]
        %v1055 = vld [vmem:[%s1053 + $0x4] sm:$0xf]
        %1057 = vrot.lane.b32.xlu0 %v934, 120
        %v1058 = vpop.permute.xlu0 %1057
        %v1061 = vunpack.c.l.b16 %v1054
        %v1062 = vunpack.c.l.b16 %v1055
        %v1063 = vpack.c.b16 %v1062, %v1061
        %v1065 = vsel %vm942, %v1058, 0
        %v1068 = vsel %vm942, %v1063, 0
        %1070 = vmatprep.subr.bf16.mxu0 0
        %1071 = vmatpush1.bf16.xpose.msra.mxu0 0
        %1072 = vmatprep.subr.bf16.mxu0 0
        %1073 = vmatpush1.bf16.xpose.msra.mxu0 0
        %1074 = vmatprep.subr.bf16.mxu0 0
        %1075 = vmatpush1.bf16.xpose.msra.mxu0 0
        %1076 = vmatprep.subr.bf16.mxu0 0
        %1077 = vmatpush1.bf16.xpose.msra.mxu0 0
        %1078 = vmatprep.subr.bf16.mxu0 0
        %1079 = vmatpush1.bf16.xpose.msra.mxu0 0
        %1080 = vmatprep.subr.bf16.mxu0 0
        %1081 = vmatpush1.bf16.xpose.msra.mxu0 0
        %1082 = vmatprep.subr.bf16.mxu0 0
        %1083 = vmatpush1.bf16.xpose.msra.mxu0 0
        %1084 = vmatprep.subr.bf16.mxu0 0
        %1085 = vmatpush1.bf16.xpose.msra.mxu0 %v1068
        %1086 = vmatprep.subr.bf16.mxu0 0
        %1087 = vmatpush2.bf16.xpose.msra.mxu0 0
        %1088 = vmatprep.subr.bf16.mxu0 0
        %1089 = vmatpush2.bf16.xpose.msra.mxu0 0
        %1090 = vmatprep.subr.bf16.mxu0 0
        %1091 = vmatpush2.bf16.xpose.msra.mxu0 0
        %1092 = vmatprep.subr.bf16.mxu0 0
        %1093 = vmatpush2.bf16.xpose.msra.mxu0 0
        %1094 = vmatprep.subr.bf16.mxu0 0
        %1095 = vmatpush2.bf16.xpose.msra.mxu0 0
        %1096 = vmatprep.subr.bf16.mxu0 0
        %1097 = vmatpush2.bf16.xpose.msra.mxu0 0
        %1098 = vmatprep.subr.bf16.mxu0 0
        %1099 = vmatpush2.bf16.xpose.msra.mxu0 0
        %1100 = vmatprep.subr.bf16.mxu0 0
        %1101 = vmatpush2.bf16.xpose.msra.mxu0 0
        %1102 = vmatprep.mubr.bf16.mxu0 0
        %1103 = vmatmul.mubr.bf16.gmra.mxu0 %v1065
        %v1104 = vpop.f32.mrf.mxu0
        %v1105 = vadd.f32 %v868, %v1104
        %v1106 = vpop.f32.mrf.mxu0
        %v1107 = vpop.f32.mrf.mxu0
        %v1108 = vpop.f32.mrf.mxu0
        %1109 = vdwg.mxu0
        %v1110 = vsel %vm989, %v1105, -inf
        %1111 = vmax.xlane.f32.xlu0 %v1110
        %v1112 = vpop.xlane.xlu0 %1111
        %v1113 = vsub.f32 %v1105, %v1112
        %v1114 = vmul.f32 %v1113, 1.442695
        %v1115 = vpow.pop %v1114
        %v1116 = vsel %vm989, %v1115, 0.0
        %1117 = vadd.xlane.f32.xlu0 %v1116
        %v1118 = vpop.xlane.xlu0 %1117
        %v1119 = vpack.c.bf16 %v1115, %v1115
        %s1120 = scalar_lea.vmem [#allocation3], 8
        %v1121 = vld [vmem:[%s1120] sm:$0xf]
        %v1122 = vld [vmem:[%s1120 + $0x4] sm:$0xf]
        %v1125 = vunpack.c.l.b16 %v1121
        %v1126 = vunpack.c.l.b16 %v1122
        %v1127 = vpack.c.b16 %v1126, %v1125
        %v1130 = vsel %vm989, %v1119, 0
        %1132 = vmatprep.subr.bf16.mxu0 0
        %1133 = vmatpush1.bf16.msra.mxu0 0
        %1134 = vmatprep.subr.bf16.mxu0 0
        %1135 = vmatpush1.bf16.msra.mxu0 0
        %1136 = vmatprep.subr.bf16.mxu0 0
        %1137 = vmatpush1.bf16.msra.mxu0 0
        %1138 = vmatprep.subr.bf16.mxu0 0
        %1139 = vmatpush1.bf16.msra.mxu0 0
        %1140 = vmatprep.subr.bf16.mxu0 0
        %1141 = vmatpush1.bf16.msra.mxu0 0
        %1142 = vmatprep.subr.bf16.mxu0 0
        %1143 = vmatpush1.bf16.msra.mxu0 0
        %1144 = vmatprep.subr.bf16.mxu0 0
        %1145 = vmatpush1.bf16.msra.mxu0 0
        %1146 = vmatprep.subr.bf16.mxu0 0
        %1147 = vmatpush1.bf16.msra.mxu0 %v1127
        %1148 = vmatprep.subr.bf16.mxu0 0
        %1149 = vmatpush2.bf16.msra.mxu0 0
        %1150 = vmatprep.subr.bf16.mxu0 0
        %1151 = vmatpush2.bf16.msra.mxu0 0
        %1152 = vmatprep.subr.bf16.mxu0 0
        %1153 = vmatpush2.bf16.msra.mxu0 0
        %1154 = vmatprep.subr.bf16.mxu0 0
        %1155 = vmatpush2.bf16.msra.mxu0 0
        %1156 = vmatprep.subr.bf16.mxu0 0
        %1157 = vmatpush2.bf16.msra.mxu0 0
        %1158 = vmatprep.subr.bf16.mxu0 0
        %1159 = vmatpush2.bf16.msra.mxu0 0
        %1160 = vmatprep.subr.bf16.mxu0 0
        %1161 = vmatpush2.bf16.msra.mxu0 0
        %1162 = vmatprep.subr.bf16.mxu0 0
        %1163 = vmatpush2.bf16.msra.mxu0 0
        %1164 = vmatprep.mubr.bf16.mxu0 0
        %1165 = vmatmul.mubr.bf16.gmra.mxu0 %v1130
        %v1166 = vpop.f32.mrf.mxu0
        %v1167 = vadd.f32 0.0, %v1166
        %v1168 = vpop.f32.mrf.mxu0
        %v1169 = vpop.f32.mrf.mxu0
        %v1170 = vpop.f32.mrf.mxu0
        %1171 = vdwg.mxu0
        %v1172 = vrcp.pop %v1118
        %v1173 = vmul.f32 %v1167, %v1172
        %s1174 = scalar_lea.vmem [#allocation2], 16
        %v1175 = vld [vmem:[%s1174] sm:$0xf]
        %v1176 = vld [vmem:[%s1174 + $0x4] sm:$0xf]
        %1177 = vrot.lane.b32.xlu0 %v934, 112
        %v1178 = vpop.permute.xlu0 %1177
        %v1181 = vunpack.c.l.b16 %v1175
        %v1182 = vunpack.c.l.b16 %v1176
        %v1183 = vpack.c.b16 %v1182, %v1181
        %v1185 = vsel %vm942, %v1178, 0
        %v1188 = vsel %vm942, %v1183, 0
        %1190 = vmatprep.subr.bf16.mxu0 0
        %1191 = vmatpush1.bf16.xpose.msra.mxu0 0
        %1192 = vmatprep.subr.bf16.mxu0 0
        %1193 = vmatpush1.bf16.xpose.msra.mxu0 0
        %1194 = vmatprep.subr.bf16.mxu0 0
        %1195 = vmatpush1.bf16.xpose.msra.mxu0 0
        %1196 = vmatprep.subr.bf16.mxu0 0
        %1197 = vmatpush1.bf16.xpose.msra.mxu0 0
        %1198 = vmatprep.subr.bf16.mxu0 0
        %1199 = vmatpush1.bf16.xpose.msra.mxu0 0
        %1200 = vmatprep.subr.bf16.mxu0 0
        %1201 = vmatpush1.bf16.xpose.msra.mxu0 0
        %1202 = vmatprep.subr.bf16.mxu0 0
        %1203 = vmatpush1.bf16.xpose.msra.mxu0 0
        %1204 = vmatprep.subr.bf16.mxu0 0
        %1205 = vmatpush1.bf16.xpose.msra.mxu0 %v1188
        %1206 = vmatprep.subr.bf16.mxu0 0
        %1207 = vmatpush2.bf16.xpose.msra.mxu0 0
        %1208 = vmatprep.subr.bf16.mxu0 0
        %1209 = vmatpush2.bf16.xpose.msra.mxu0 0
        %1210 = vmatprep.subr.bf16.mxu0 0
        %1211 = vmatpush2.bf16.xpose.msra.mxu0 0
        %1212 = vmatprep.subr.bf16.mxu0 0
        %1213 = vmatpush2.bf16.xpose.msra.mxu0 0
        %1214 = vmatprep.subr.bf16.mxu0 0
        %1215 = vmatpush2.bf16.xpose.msra.mxu0 0
        %1216 = vmatprep.subr.bf16.mxu0 0
        %1217 = vmatpush2.bf16.xpose.msra.mxu0 0
        %1218 = vmatprep.subr.bf16.mxu0 0
        %1219 = vmatpush2.bf16.xpose.msra.mxu0 0
        %1220 = vmatprep.subr.bf16.mxu0 0
        %1221 = vmatpush2.bf16.xpose.msra.mxu0 0
        %1222 = vmatprep.mubr.bf16.mxu0 0
        %1223 = vmatmul.mubr.bf16.gmra.mxu0 %v1185
        %v1224 = vpop.f32.mrf.mxu0
        %v1225 = vadd.f32 %v868, %v1224
        %v1226 = vpop.f32.mrf.mxu0
        %v1227 = vpop.f32.mrf.mxu0
        %v1228 = vpop.f32.mrf.mxu0
        %1229 = vdwg.mxu0
        %v1230 = vsel %vm989, %v1225, -inf
        %1231 = vmax.xlane.f32.xlu0 %v1230
        %v1232 = vpop.xlane.xlu0 %1231
        %v1233 = vsub.f32 %v1225, %v1232
        %v1234 = vmul.f32 %v1233, 1.442695
        %v1235 = vpow.pop %v1234
        %v1236 = vsel %vm989, %v1235, 0.0
        %1237 = vadd.xlane.f32.xlu0 %v1236
        %v1238 = vpop.xlane.xlu0 %1237
        %v1239 = vpack.c.bf16 %v1235, %v1235
        %s1240 = scalar_lea.vmem [#allocation3], 16
        %v1241 = vld [vmem:[%s1240] sm:$0xf]
        %v1242 = vld [vmem:[%s1240 + $0x4] sm:$0xf]
        %v1245 = vunpack.c.l.b16 %v1241
        %v1246 = vunpack.c.l.b16 %v1242
        %v1247 = vpack.c.b16 %v1246, %v1245
        %v1250 = vsel %vm989, %v1239, 0
        %1252 = vmatprep.subr.bf16.mxu0 0
        %1253 = vmatpush1.bf16.msra.mxu0 0
        %1254 = vmatprep.subr.bf16.mxu0 0
        %1255 = vmatpush1.bf16.msra.mxu0 0
        %1256 = vmatprep.subr.bf16.mxu0 0
        %1257 = vmatpush1.bf16.msra.mxu0 0
        %1258 = vmatprep.subr.bf16.mxu0 0
        %1259 = vmatpush1.bf16.msra.mxu0 0
        %1260 = vmatprep.subr.bf16.mxu0 0
        %1261 = vmatpush1.bf16.msra.mxu0 0
        %1262 = vmatprep.subr.bf16.mxu0 0
        %1263 = vmatpush1.bf16.msra.mxu0 0
        %1264 = vmatprep.subr.bf16.mxu0 0
        %1265 = vmatpush1.bf16.msra.mxu0 0
        %1266 = vmatprep.subr.bf16.mxu0 0
        %1267 = vmatpush1.bf16.msra.mxu0 %v1247
        %1268 = vmatprep.subr.bf16.mxu0 0
        %1269 = vmatpush2.bf16.msra.mxu0 0
        %1270 = vmatprep.subr.bf16.mxu0 0
        %1271 = vmatpush2.bf16.msra.mxu0 0
        %1272 = vmatprep.subr.bf16.mxu0 0
        %1273 = vmatpush2.bf16.msra.mxu0 0
        %1274 = vmatprep.subr.bf16.mxu0 0
        %1275 = vmatpush2.bf16.msra.mxu0 0
        %1276 = vmatprep.subr.bf16.mxu0 0
        %1277 = vmatpush2.bf16.msra.mxu0 0
        %1278 = vmatprep.subr.bf16.mxu0 0
        %1279 = vmatpush2.bf16.msra.mxu0 0
        %1280 = vmatprep.subr.bf16.mxu0 0
        %1281 = vmatpush2.bf16.msra.mxu0 0
        %1282 = vmatprep.subr.bf16.mxu0 0
        %1283 = vmatpush2.bf16.msra.mxu0 0
        %1284 = vmatprep.mubr.bf16.mxu0 0
        %1285 = vmatmul.mubr.bf16.gmra.mxu0 %v1250
        %v1286 = vpop.f32.mrf.mxu0
        %v1287 = vadd.f32 0.0, %v1286
        %v1288 = vpop.f32.mrf.mxu0
        %v1289 = vpop.f32.mrf.mxu0
        %v1290 = vpop.f32.mrf.mxu0
        %1291 = vdwg.mxu0
        %v1292 = vrcp.pop %v1238
        %v1293 = vmul.f32 %v1287, %v1292
        %s1294 = scalar_lea.vmem [#allocation2], 24
        %v1295 = vld [vmem:[%s1294] sm:$0xf]
        %v1296 = vld [vmem:[%s1294 + $0x4] sm:$0xf]
        %1297 = vrot.lane.b32.xlu0 %v934, 104
        %v1298 = vpop.permute.xlu0 %1297
        %v1301 = vunpack.c.l.b16 %v1295
        %v1302 = vunpack.c.l.b16 %v1296
        %v1303 = vpack.c.b16 %v1302, %v1301
        %v1305 = vsel %vm942, %v1298, 0
        %v1308 = vsel %vm942, %v1303, 0
        %1310 = vmatprep.subr.bf16.mxu0 0
        %1311 = vmatpush1.bf16.xpose.msra.mxu0 0
        %1312 = vmatprep.subr.bf16.mxu0 0
        %1313 = vmatpush1.bf16.xpose.msra.mxu0 0
        %1314 = vmatprep.subr.bf16.mxu0 0
        %1315 = vmatpush1.bf16.xpose.msra.mxu0 0
        %1316 = vmatprep.subr.bf16.mxu0 0
        %1317 = vmatpush1.bf16.xpose.msra.mxu0 0
        %1318 = vmatprep.subr.bf16.mxu0 0
        %1319 = vmatpush1.bf16.xpose.msra.mxu0 0
        %1320 = vmatprep.subr.bf16.mxu0 0
        %1321 = vmatpush1.bf16.xpose.msra.mxu0 0
        %1322 = vmatprep.subr.bf16.mxu0 0
        %1323 = vmatpush1.bf16.xpose.msra.mxu0 0
        %1324 = vmatprep.subr.bf16.mxu0 0
        %1325 = vmatpush1.bf16.xpose.msra.mxu0 %v1308
        %1326 = vmatprep.subr.bf16.mxu0 0
        %1327 = vmatpush2.bf16.xpose.msra.mxu0 0
        %1328 = vmatprep.subr.bf16.mxu0 0
        %1329 = vmatpush2.bf16.xpose.msra.mxu0 0
        %1330 = vmatprep.subr.bf16.mxu0 0
        %1331 = vmatpush2.bf16.xpose.msra.mxu0 0
        %1332 = vmatprep.subr.bf16.mxu0 0
        %1333 = vmatpush2.bf16.xpose.msra.mxu0 0
        %1334 = vmatprep.subr.bf16.mxu0 0
        %1335 = vmatpush2.bf16.xpose.msra.mxu0 0
        %1336 = vmatprep.subr.bf16.mxu0 0
        %1337 = vmatpush2.bf16.xpose.msra.mxu0 0
        %1338 = vmatprep.subr.bf16.mxu0 0
        %1339 = vmatpush2.bf16.xpose.msra.mxu0 0
        %1340 = vmatprep.subr.bf16.mxu0 0
        %1341 = vmatpush2.bf16.xpose.msra.mxu0 0
        %1342 = vmatprep.mubr.bf16.mxu0 0
        %1343 = vmatmul.mubr.bf16.gmra.mxu0 %v1305
        %v1344 = vpop.f32.mrf.mxu0
        %v1345 = vadd.f32 %v868, %v1344
        %v1346 = vpop.f32.mrf.mxu0
        %v1347 = vpop.f32.mrf.mxu0
        %v1348 = vpop.f32.mrf.mxu0
        %1349 = vdwg.mxu0
        %v1350 = vsel %vm989, %v1345, -inf
        %1351 = vmax.xlane.f32.xlu0 %v1350
        %v1352 = vpop.xlane.xlu0 %1351
        %v1353 = vsub.f32 %v1345, %v1352
        %v1354 = vmul.f32 %v1353, 1.442695
        %v1355 = vpow.pop %v1354
        %v1356 = vsel %vm989, %v1355, 0.0
        %1357 = vadd.xlane.f32.xlu0 %v1356
        %v1358 = vpop.xlane.xlu0 %1357
        %v1359 = vpack.c.bf16 %v1355, %v1355
        %s1360 = scalar_lea.vmem [#allocation3], 24
        %v1361 = vld [vmem:[%s1360] sm:$0xf]
        %v1362 = vld [vmem:[%s1360 + $0x4] sm:$0xf]
        %v1365 = vunpack.c.l.b16 %v1361
        %v1366 = vunpack.c.l.b16 %v1362
        %v1367 = vpack.c.b16 %v1366, %v1365
        %v1370 = vsel %vm989, %v1359, 0
        %1372 = vmatprep.subr.bf16.mxu0 0
        %1373 = vmatpush1.bf16.msra.mxu0 0
        %1374 = vmatprep.subr.bf16.mxu0 0
        %1375 = vmatpush1.bf16.msra.mxu0 0
        %1376 = vmatprep.subr.bf16.mxu0 0
        %1377 = vmatpush1.bf16.msra.mxu0 0
        %1378 = vmatprep.subr.bf16.mxu0 0
        %1379 = vmatpush1.bf16.msra.mxu0 0
        %1380 = vmatprep.subr.bf16.mxu0 0
        %1381 = vmatpush1.bf16.msra.mxu0 0
        %1382 = vmatprep.subr.bf16.mxu0 0
        %1383 = vmatpush1.bf16.msra.mxu0 0
        %1384 = vmatprep.subr.bf16.mxu0 0
        %1385 = vmatpush1.bf16.msra.mxu0 0
        %1386 = vmatprep.subr.bf16.mxu0 0
        %1387 = vmatpush1.bf16.msra.mxu0 %v1367
        %1388 = vmatprep.subr.bf16.mxu0 0
        %1389 = vmatpush2.bf16.msra.mxu0 0
        %1390 = vmatprep.subr.bf16.mxu0 0
        %1391 = vmatpush2.bf16.msra.mxu0 0
        %1392 = vmatprep.subr.bf16.mxu0 0
        %1393 = vmatpush2.bf16.msra.mxu0 0
        %1394 = vmatprep.subr.bf16.mxu0 0
        %1395 = vmatpush2.bf16.msra.mxu0 0
        %1396 = vmatprep.subr.bf16.mxu0 0
        %1397 = vmatpush2.bf16.msra.mxu0 0
        %1398 = vmatprep.subr.bf16.mxu0 0
        %1399 = vmatpush2.bf16.msra.mxu0 0
        %1400 = vmatprep.subr.bf16.mxu0 0
        %1401 = vmatpush2.bf16.msra.mxu0 0
        %1402 = vmatprep.subr.bf16.mxu0 0
        %1403 = vmatpush2.bf16.msra.mxu0 0
        %1404 = vmatprep.mubr.bf16.mxu0 0
        %1405 = vmatmul.mubr.bf16.gmra.mxu0 %v1370
        %v1406 = vpop.f32.mrf.mxu0
        %v1407 = vadd.f32 0.0, %v1406
        %v1408 = vpop.f32.mrf.mxu0
        %v1409 = vpop.f32.mrf.mxu0
        %v1410 = vpop.f32.mrf.mxu0
        %1411 = vdwg.mxu0
        %v1412 = vrcp.pop %v1358
        %v1413 = vmul.f32 %v1407, %v1412
        %1415 = vrot.lane.b32.xlu0 %v1173, 8
        %v1416 = vpop.permute.xlu0 %1415
        %1419 = vrot.lane.b32.xlu0 %v1293, 16
        %v1420 = vpop.permute.xlu0 %1419
        %1423 = vrot.lane.b32.xlu0 %v1413, 24
        %v1424 = vpop.permute.xlu0 %1423
        %v1426 = vsel %vm942, %v1052, %v1416
        %v1427 = vsel %vm989, %v1426, %v1420
        %vm1428 = vcmask 195584
        %v1429 = vsel %vm1428, %v1427, %v1424
        %v1430 = vpack.c.bf16 %v1429, %v1429
        %v1431 = vlaneseq
        %v1432 = vshrl.u32 %v1431, 7
        %v1433 = vsub.s32 6, %v1432
        %v1434 = vrot.slane %v577, %v1433
        %v1439 = vunpack.c.l.b16 %v869
        %v1440 = vunpack.c.l.b16 %v870
        %v1441 = vunpack.c.l.b16 %v871
        %v1442 = vunpack.c.l.b16 %v872
        %v1443 = vpack.c.b16 %v1440, %v1439
        %v1444 = vpack.c.b16 %v1442, %v1441
        %v1448 = vsel %vm890, %v1430, 0
        %1450 = vmatprep.subr.bf16.mxu0 0
        %1451 = vmatpush1.bf16.msra.mxu0 0
        %1452 = vmatprep.subr.bf16.mxu0 0
        %1453 = vmatpush1.bf16.msra.mxu0 0
        %1454 = vmatprep.subr.bf16.mxu0 0
        %1455 = vmatpush1.bf16.msra.mxu0 0
        %1456 = vmatprep.subr.bf16.mxu0 0
        %1457 = vmatpush1.bf16.msra.mxu0 0
        %1458 = vmatprep.subr.bf16.mxu0 0
        %1459 = vmatpush1.bf16.msra.mxu0 0
        %1460 = vmatprep.subr.bf16.mxu0 0
        %1461 = vmatpush1.bf16.msra.mxu0 0
        %1462 = vmatprep.subr.bf16.mxu0 0
        %1463 = vmatpush1.bf16.msra.mxu0 %v1444
        %1464 = vmatprep.subr.bf16.mxu0 0
        %1465 = vmatpush1.bf16.msra.mxu0 %v1443
        %1466 = vmatprep.subr.bf16.mxu0 0
        %1467 = vmatpush2.bf16.msra.mxu0 0
        %1468 = vmatprep.subr.bf16.mxu0 0
        %1469 = vmatpush2.bf16.msra.mxu0 0
        %1470 = vmatprep.subr.bf16.mxu0 0
        %1471 = vmatpush2.bf16.msra.mxu0 0
        %1472 = vmatprep.subr.bf16.mxu0 0
        %1473 = vmatpush2.bf16.msra.mxu0 0
        %1474 = vmatprep.subr.bf16.mxu0 0
        %1475 = vmatpush2.bf16.msra.mxu0 0
        %1476 = vmatprep.subr.bf16.mxu0 0
        %1477 = vmatpush2.bf16.msra.mxu0 0
        %1478 = vmatprep.subr.bf16.mxu0 0
        %1479 = vmatpush2.bf16.msra.mxu0 0
        %1480 = vmatprep.subr.bf16.mxu0 0
        %1481 = vmatpush2.bf16.msra.mxu0 0
        %1482 = vmatprep.mubr.bf16.mxu0 0
        %1483 = vmatmul.mubr.bf16.gmra.mxu0 %v1448
        %v1484 = vpop.f32.mrf.mxu0
        %v1485 = vadd.f32 %v1434, %v1484
        %v1486 = vpop.f32.mrf.mxu0
        %v1487 = vpop.f32.mrf.mxu0
        %v1488 = vpop.f32.mrf.mxu0
        %1489 = vdwg.mxu0
        %v1490 = vadd.f32 %v863, %v1485
        %v1491 = vsel %vm890, %v1490, 0.0
        %1492 = vadd.xlane.f32.xlu0 %v1491
        %v1493 = vpop.xlane.xlu0 %1492
        %v1494 = vrcp.pop 32.0
        %v1495 = vmul.f32 %v1493, %v1494
        %v1496 = vsub.f32 %v1490, %v1495
        %v1497 = vmul.f32 %v1496, %v1496
        %v1498 = vsel %vm890, %v1497, 0.0
        %1499 = vadd.xlane.f32.xlu0 %v1498
        %v1500 = vpop.xlane.xlu0 %1499
        %v1501 = vmul.f32 %v1500, 0.032258064
        %v1502 = vlaneseq
        %v1503 = vshrl.u32 %v1502, 7
        %v1504 = vsub.s32 1, %v1503
        %v1505 = vrot.slane %v578, %v1504
        %v1506 = vmul.f32 %v1505, %v1496
        %v1507 = vrsqrt.pop %v1501
        %v1508 = vmul.f32 %v1501, %v1507
        %vm1509 = vcmp.eq.f32.partialorder %v1501, inf
        %v1510 = vsel %vm1509, %v1501, %v1508
        %vm1511 = vcmp.eq.f32.partialorder %v1501, 0.0
        %v1512 = vand.u32 %v1501, 2147483648
        %v1513 = vsel %vm1511, %v1512, %v1510
        %v1514 = vadd.f32 %v1513, 1e-06
        %v1515 = vrcp.pop %v1514
        %v1516 = vmul.f32 %v1506, %v1515
        %v1517 = vlaneseq
        %v1518 = vshrl.u32 %v1517, 7
        %v1519 = vsub.s32 2, %v1518
        %v1520 = vrot.slane %v578, %v1519
        %v1521 = vadd.f32 %v1516, %v1520
        %s1522 = scalar_lea.vmem [#allocation11], 16
        %v1523 = vld [vmem:[%s1522] sm:$0xf]
        %v1524 = vld [vmem:[%s1522 + $0x4] sm:$0xf]
        %v1525 = vld [vmem:[%s1522 + $0x8] sm:$0xf]
        %v1526 = vld [vmem:[%s1522 + $0xc] sm:$0xf]
        %v1527 = vld [vmem:[%s491] sm:$0x1]
        %s1528 = scalar_lea.vmem [#allocation14], 16
        %v1529 = vld [vmem:[%s1528] sm:$0xf]
        %v1530 = vld [vmem:[%s1528 + $0x4] sm:$0xf]
        %v1531 = vld [vmem:[%s1528 + $0x8] sm:$0xf]
        %v1532 = vld [vmem:[%s1528 + $0xc] sm:$0xf]
        %v1533 = vpack.c.bf16 %v1521, %v1521
        %v1534 = vlaneseq
        %v1535 = vshrl.u32 %v1534, 7
        %v1536 = vsub.s32 3, %v1535
        %v1537 = vrot.slane %v577, %v1536
        %v1542 = vunpack.c.l.b16 %v1523
        %v1543 = vunpack.c.l.b16 %v1524
        %v1544 = vunpack.c.l.b16 %v1525
        %v1545 = vunpack.c.l.b16 %v1526
        %v1546 = vpack.c.b16 %v1543, %v1542
        %v1547 = vpack.c.b16 %v1545, %v1544
        %v1551 = vsel %vm890, %v1533, 0
        %1553 = vmatprep.subr.bf16.mxu0 0
        %1554 = vmatpush1.bf16.msra.mxu0 0
        %1555 = vmatprep.subr.bf16.mxu0 0
        %1556 = vmatpush1.bf16.msra.mxu0 0
        %1557 = vmatprep.subr.bf16.mxu0 0
        %1558 = vmatpush1.bf16.msra.mxu0 0
        %1559 = vmatprep.subr.bf16.mxu0 0
        %1560 = vmatpush1.bf16.msra.mxu0 0
        %1561 = vmatprep.subr.bf16.mxu0 0
        %1562 = vmatpush1.bf16.msra.mxu0 0
        %1563 = vmatprep.subr.bf16.mxu0 0
        %1564 = vmatpush1.bf16.msra.mxu0 0
        %1565 = vmatprep.subr.bf16.mxu0 0
        %1566 = vmatpush1.bf16.msra.mxu0 %v1547
        %1567 = vmatprep.subr.bf16.mxu0 0
        %1568 = vmatpush1.bf16.msra.mxu0 %v1546
        %1569 = vmatprep.subr.bf16.mxu0 0
        %1570 = vmatpush2.bf16.msra.mxu0 0
        %1571 = vmatprep.subr.bf16.mxu0 0
        %1572 = vmatpush2.bf16.msra.mxu0 0
        %1573 = vmatprep.subr.bf16.mxu0 0
        %1574 = vmatpush2.bf16.msra.mxu0 0
        %1575 = vmatprep.subr.bf16.mxu0 0
        %1576 = vmatpush2.bf16.msra.mxu0 0
        %1577 = vmatprep.subr.bf16.mxu0 0
        %1578 = vmatpush2.bf16.msra.mxu0 0
        %1579 = vmatprep.subr.bf16.mxu0 0
        %1580 = vmatpush2.bf16.msra.mxu0 0
        %1581 = vmatprep.subr.bf16.mxu0 0
        %1582 = vmatpush2.bf16.msra.mxu0 0
        %1583 = vmatprep.subr.bf16.mxu0 0
        %1584 = vmatpush2.bf16.msra.mxu0 0
        %1585 = vmatprep.mubr.bf16.mxu0 0
        %1586 = vmatmul.mubr.bf16.gmra.mxu0 %v1551
        %v1587 = vpop.f32.mrf.mxu0
        %v1588 = vadd.f32 %v1537, %v1587
        %v1589 = vpop.f32.mrf.mxu0
        %v1590 = vpop.f32.mrf.mxu0
        %v1591 = vpop.f32.mrf.mxu0
        %1592 = vdwg.mxu0
        %v1593 = vpack.c.bf16 %v1588, %v1588
        %v1594 = vld [vmem:[#allocation4] sm:$0xf]
        %v1596 = vlaneseq
        %v1597 = vshrl.u32 %v1596, 7
        %v1598 = vsub.s32 0, %v1597
        %v1599 = vrot.slane %v1527, %v1598
        %v1602 = vsel %vm942, %v1593, 0
        %v1605 = vsel %vm942, %v1594, 0
        %1607 = vmatprep.subr.bf16.mxu0 0
        %1608 = vmatpush1.bf16.xpose.msra.mxu0 0
        %1609 = vmatprep.subr.bf16.mxu0 0
        %1610 = vmatpush1.bf16.xpose.msra.mxu0 0
        %1611 = vmatprep.subr.bf16.mxu0 0
        %1612 = vmatpush1.bf16.xpose.msra.mxu0 0
        %1613 = vmatprep.subr.bf16.mxu0 0
        %1614 = vmatpush1.bf16.xpose.msra.mxu0 0
        %1615 = vmatprep.subr.bf16.mxu0 0
        %1616 = vmatpush1.bf16.xpose.msra.mxu0 0
        %1617 = vmatprep.subr.bf16.mxu0 0
        %1618 = vmatpush1.bf16.xpose.msra.mxu0 0
        %1619 = vmatprep.subr.bf16.mxu0 0
        %1620 = vmatpush1.bf16.xpose.msra.mxu0 0
        %1621 = vmatprep.subr.bf16.mxu0 0
        %1622 = vmatpush1.bf16.xpose.msra.mxu0 %v1605
        %1623 = vmatprep.subr.bf16.mxu0 0
        %1624 = vmatpush2.bf16.xpose.msra.mxu0 0
        %1625 = vmatprep.subr.bf16.mxu0 0
        %1626 = vmatpush2.bf16.xpose.msra.mxu0 0
        %1627 = vmatprep.subr.bf16.mxu0 0
        %1628 = vmatpush2.bf16.xpose.msra.mxu0 0
        %1629 = vmatprep.subr.bf16.mxu0 0
        %1630 = vmatpush2.bf16.xpose.msra.mxu0 0
        %1631 = vmatprep.subr.bf16.mxu0 0
        %1632 = vmatpush2.bf16.xpose.msra.mxu0 0
        %1633 = vmatprep.subr.bf16.mxu0 0
        %1634 = vmatpush2.bf16.xpose.msra.mxu0 0
        %1635 = vmatprep.subr.bf16.mxu0 0
        %1636 = vmatpush2.bf16.xpose.msra.mxu0 0
        %1637 = vmatprep.subr.bf16.mxu0 0
        %1638 = vmatpush2.bf16.xpose.msra.mxu0 0
        %1639 = vmatprep.mubr.bf16.mxu0 0
        %1640 = vmatmul.mubr.bf16.gmra.mxu0 %v1602
        %v1641 = vpop.f32.mrf.mxu0
        %v1642 = vadd.f32 %v1599, %v1641
        %v1643 = vpop.f32.mrf.mxu0
        %v1644 = vpop.f32.mrf.mxu0
        %v1645 = vpop.f32.mrf.mxu0
        %1646 = vdwg.mxu0
        %v1647 = vsel %vm942, %v1642, -inf
        %1648 = vmax.xlane.f32.xlu0 %v1647
        %v1649 = vpop.xlane.xlu0 %1648
        %v1650 = vsub.f32 %v1642, %v1649
        %v1651 = vmul.f32 %v1650, 1.442695
        %v1652 = vpow.pop %v1651
        %v1653 = vsel %vm942, %v1652, 0.0
        %1654 = vadd.xlane.f32.xlu0 %v1653
        %v1655 = vpop.xlane.xlu0 %1654
        %v1656 = vpack.c.bf16 %v1652, %v1652
        %v1657 = vld [vmem:[#allocation5] sm:$0xf]
        %v1659 = vsel %vm942, %v1656, 0
        %vm1661 = vcmask 1043456
        %v1663 = vsel %vm1661, %v1657, 0
        %1665 = vmatprep.subr.bf16.mxu0 0
        %1666 = vmatpush1.bf16.msra.mxu0 0
        %1667 = vmatprep.subr.bf16.mxu0 0
        %1668 = vmatpush1.bf16.msra.mxu0 0
        %1669 = vmatprep.subr.bf16.mxu0 0
        %1670 = vmatpush1.bf16.msra.mxu0 0
        %1671 = vmatprep.subr.bf16.mxu0 0
        %1672 = vmatpush1.bf16.msra.mxu0 0
        %1673 = vmatprep.subr.bf16.mxu0 0
        %1674 = vmatpush1.bf16.msra.mxu0 0
        %1675 = vmatprep.subr.bf16.mxu0 0
        %1676 = vmatpush1.bf16.msra.mxu0 0
        %1677 = vmatprep.subr.bf16.mxu0 0
        %1678 = vmatpush1.bf16.msra.mxu0 0
        %1679 = vmatprep.subr.bf16.mxu0 0
        %1680 = vmatpush1.bf16.msra.mxu0 %v1663
        %1681 = vmatprep.subr.bf16.mxu0 0
        %1682 = vmatpush2.bf16.msra.mxu0 0
        %1683 = vmatprep.subr.bf16.mxu0 0
        %1684 = vmatpush2.bf16.msra.mxu0 0
        %1685 = vmatprep.subr.bf16.mxu0 0
        %1686 = vmatpush2.bf16.msra.mxu0 0
        %1687 = vmatprep.subr.bf16.mxu0 0
        %1688 = vmatpush2.bf16.msra.mxu0 0
        %1689 = vmatprep.subr.bf16.mxu0 0
        %1690 = vmatpush2.bf16.msra.mxu0 0
        %1691 = vmatprep.subr.bf16.mxu0 0
        %1692 = vmatpush2.bf16.msra.mxu0 0
        %1693 = vmatprep.subr.bf16.mxu0 0
        %1694 = vmatpush2.bf16.msra.mxu0 0
        %1695 = vmatprep.subr.bf16.mxu0 0
        %1696 = vmatpush2.bf16.msra.mxu0 0
        %1697 = vmatprep.mubr.bf16.mxu0 0
        %1698 = vmatmul.mubr.bf16.gmra.mxu0 %v1659
        %v1699 = vpop.f32.mrf.mxu0
        %v1700 = vadd.f32 0.0, %v1699
        %v1701 = vpop.f32.mrf.mxu0
        %v1702 = vpop.f32.mrf.mxu0
        %v1703 = vpop.f32.mrf.mxu0
        %1704 = vdwg.mxu0
        %v1705 = vrcp.pop %v1655
        %v1706 = vmul.f32 %v1700, %v1705
        %s1707 = scalar_lea.vmem [#allocation4], 4
        %v1708 = vld [vmem:[%s1707] sm:$0xf]
        %1710 = vrot.lane.b32.xlu0 %v1593, 120
        %v1711 = vpop.permute.xlu0 %1710
        %v1713 = vsel %vm942, %v1711, 0
        %v1716 = vsel %vm942, %v1708, 0
        %1718 = vmatprep.subr.bf16.mxu0 0
        %1719 = vmatpush1.bf16.xpose.msra.mxu0 0
        %1720 = vmatprep.subr.bf16.mxu0 0
        %1721 = vmatpush1.bf16.xpose.msra.mxu0 0
        %1722 = vmatprep.subr.bf16.mxu0 0
        %1723 = vmatpush1.bf16.xpose.msra.mxu0 0
        %1724 = vmatprep.subr.bf16.mxu0 0
        %1725 = vmatpush1.bf16.xpose.msra.mxu0 0
        %1726 = vmatprep.subr.bf16.mxu0 0
        %1727 = vmatpush1.bf16.xpose.msra.mxu0 0
        %1728 = vmatprep.subr.bf16.mxu0 0
        %1729 = vmatpush1.bf16.xpose.msra.mxu0 0
        %1730 = vmatprep.subr.bf16.mxu0 0
        %1731 = vmatpush1.bf16.xpose.msra.mxu0 0
        %1732 = vmatprep.subr.bf16.mxu0 0
        %1733 = vmatpush1.bf16.xpose.msra.mxu0 %v1716
        %1734 = vmatprep.subr.bf16.mxu0 0
        %1735 = vmatpush2.bf16.xpose.msra.mxu0 0
        %1736 = vmatprep.subr.bf16.mxu0 0
        %1737 = vmatpush2.bf16.xpose.msra.mxu0 0
        %1738 = vmatprep.subr.bf16.mxu0 0
        %1739 = vmatpush2.bf16.xpose.msra.mxu0 0
        %1740 = vmatprep.subr.bf16.mxu0 0
        %1741 = vmatpush2.bf16.xpose.msra.mxu0 0
        %1742 = vmatprep.subr.bf16.mxu0 0
        %1743 = vmatpush2.bf16.xpose.msra.mxu0 0
        %1744 = vmatprep.subr.bf16.mxu0 0
        %1745 = vmatpush2.bf16.xpose.msra.mxu0 0
        %1746 = vmatprep.subr.bf16.mxu0 0
        %1747 = vmatpush2.bf16.xpose.msra.mxu0 0
        %1748 = vmatprep.subr.bf16.mxu0 0
        %1749 = vmatpush2.bf16.xpose.msra.mxu0 0
        %1750 = vmatprep.mubr.bf16.mxu0 0
        %1751 = vmatmul.mubr.bf16.gmra.mxu0 %v1713
        %v1752 = vpop.f32.mrf.mxu0
        %v1753 = vadd.f32 %v1599, %v1752
        %v1754 = vpop.f32.mrf.mxu0
        %v1755 = vpop.f32.mrf.mxu0
        %v1756 = vpop.f32.mrf.mxu0
        %1757 = vdwg.mxu0
        %v1758 = vsel %vm942, %v1753, -inf
        %1759 = vmax.xlane.f32.xlu0 %v1758
        %v1760 = vpop.xlane.xlu0 %1759
        %v1761 = vsub.f32 %v1753, %v1760
        %v1762 = vmul.f32 %v1761, 1.442695
        %v1763 = vpow.pop %v1762
        %v1764 = vsel %vm942, %v1763, 0.0
        %1765 = vadd.xlane.f32.xlu0 %v1764
        %v1766 = vpop.xlane.xlu0 %1765
        %v1767 = vpack.c.bf16 %v1763, %v1763
        %s1768 = scalar_lea.vmem [#allocation5], 4
        %v1769 = vld [vmem:[%s1768] sm:$0xf]
        %v1771 = vsel %vm942, %v1767, 0
        %v1774 = vsel %vm1661, %v1769, 0
        %1776 = vmatprep.subr.bf16.mxu0 0
        %1777 = vmatpush1.bf16.msra.mxu0 0
        %1778 = vmatprep.subr.bf16.mxu0 0
        %1779 = vmatpush1.bf16.msra.mxu0 0
        %1780 = vmatprep.subr.bf16.mxu0 0
        %1781 = vmatpush1.bf16.msra.mxu0 0
        %1782 = vmatprep.subr.bf16.mxu0 0
        %1783 = vmatpush1.bf16.msra.mxu0 0
        %1784 = vmatprep.subr.bf16.mxu0 0
        %1785 = vmatpush1.bf16.msra.mxu0 0
        %1786 = vmatprep.subr.bf16.mxu0 0
        %1787 = vmatpush1.bf16.msra.mxu0 0
        %1788 = vmatprep.subr.bf16.mxu0 0
        %1789 = vmatpush1.bf16.msra.mxu0 0
        %1790 = vmatprep.subr.bf16.mxu0 0
        %1791 = vmatpush1.bf16.msra.mxu0 %v1774
        %1792 = vmatprep.subr.bf16.mxu0 0
        %1793 = vmatpush2.bf16.msra.mxu0 0
        %1794 = vmatprep.subr.bf16.mxu0 0
        %1795 = vmatpush2.bf16.msra.mxu0 0
        %1796 = vmatprep.subr.bf16.mxu0 0
        %1797 = vmatpush2.bf16.msra.mxu0 0
        %1798 = vmatprep.subr.bf16.mxu0 0
        %1799 = vmatpush2.bf16.msra.mxu0 0
        %1800 = vmatprep.subr.bf16.mxu0 0
        %1801 = vmatpush2.bf16.msra.mxu0 0
        %1802 = vmatprep.subr.bf16.mxu0 0
        %1803 = vmatpush2.bf16.msra.mxu0 0
        %1804 = vmatprep.subr.bf16.mxu0 0
        %1805 = vmatpush2.bf16.msra.mxu0 0
        %1806 = vmatprep.subr.bf16.mxu0 0
        %1807 = vmatpush2.bf16.msra.mxu0 0
        %1808 = vmatprep.mubr.bf16.mxu0 0
        %1809 = vmatmul.mubr.bf16.gmra.mxu0 %v1771
        %v1810 = vpop.f32.mrf.mxu0
        %v1811 = vadd.f32 0.0, %v1810
        %v1812 = vpop.f32.mrf.mxu0
        %v1813 = vpop.f32.mrf.mxu0
        %v1814 = vpop.f32.mrf.mxu0
        %1815 = vdwg.mxu0
        %v1816 = vrcp.pop %v1766
        %v1817 = vmul.f32 %v1811, %v1816
        %s1818 = scalar_lea.vmem [#allocation4], 8
        %v1819 = vld [vmem:[%s1818] sm:$0xf]
        %1820 = vrot.lane.b32.xlu0 %v1593, 112
        %v1821 = vpop.permute.xlu0 %1820
        %v1823 = vsel %vm942, %v1821, 0
        %v1826 = vsel %vm942, %v1819, 0
        %1828 = vmatprep.subr.bf16.mxu0 0
        %1829 = vmatpush1.bf16.xpose.msra.mxu0 0
        %1830 = vmatprep.subr.bf16.mxu0 0
        %1831 = vmatpush1.bf16.xpose.msra.mxu0 0
        %1832 = vmatprep.subr.bf16.mxu0 0
        %1833 = vmatpush1.bf16.xpose.msra.mxu0 0
        %1834 = vmatprep.subr.bf16.mxu0 0
        %1835 = vmatpush1.bf16.xpose.msra.mxu0 0
        %1836 = vmatprep.subr.bf16.mxu0 0
        %1837 = vmatpush1.bf16.xpose.msra.mxu0 0
        %1838 = vmatprep.subr.bf16.mxu0 0
        %1839 = vmatpush1.bf16.xpose.msra.mxu0 0
        %1840 = vmatprep.subr.bf16.mxu0 0
        %1841 = vmatpush1.bf16.xpose.msra.mxu0 0
        %1842 = vmatprep.subr.bf16.mxu0 0
        %1843 = vmatpush1.bf16.xpose.msra.mxu0 %v1826
        %1844 = vmatprep.subr.bf16.mxu0 0
        %1845 = vmatpush2.bf16.xpose.msra.mxu0 0
        %1846 = vmatprep.subr.bf16.mxu0 0
        %1847 = vmatpush2.bf16.xpose.msra.mxu0 0
        %1848 = vmatprep.subr.bf16.mxu0 0
        %1849 = vmatpush2.bf16.xpose.msra.mxu0 0
        %1850 = vmatprep.subr.bf16.mxu0 0
        %1851 = vmatpush2.bf16.xpose.msra.mxu0 0
        %1852 = vmatprep.subr.bf16.mxu0 0
        %1853 = vmatpush2.bf16.xpose.msra.mxu0 0
        %1854 = vmatprep.subr.bf16.mxu0 0
        %1855 = vmatpush2.bf16.xpose.msra.mxu0 0
        %1856 = vmatprep.subr.bf16.mxu0 0
        %1857 = vmatpush2.bf16.xpose.msra.mxu0 0
        %1858 = vmatprep.subr.bf16.mxu0 0
        %1859 = vmatpush2.bf16.xpose.msra.mxu0 0
        %1860 = vmatprep.mubr.bf16.mxu0 0
        %1861 = vmatmul.mubr.bf16.gmra.mxu0 %v1823
        %v1862 = vpop.f32.mrf.mxu0
        %v1863 = vadd.f32 %v1599, %v1862
        %v1864 = vpop.f32.mrf.mxu0
        %v1865 = vpop.f32.mrf.mxu0
        %v1866 = vpop.f32.mrf.mxu0
        %1867 = vdwg.mxu0
        %v1868 = vsel %vm942, %v1863, -inf
        %1869 = vmax.xlane.f32.xlu0 %v1868
        %v1870 = vpop.xlane.xlu0 %1869
        %v1871 = vsub.f32 %v1863, %v1870
        %v1872 = vmul.f32 %v1871, 1.442695
        %v1873 = vpow.pop %v1872
        %v1874 = vsel %vm942, %v1873, 0.0
        %1875 = vadd.xlane.f32.xlu0 %v1874
        %v1876 = vpop.xlane.xlu0 %1875
        %v1877 = vpack.c.bf16 %v1873, %v1873
        %s1878 = scalar_lea.vmem [#allocation5], 8
        %v1879 = vld [vmem:[%s1878] sm:$0xf]
        %v1881 = vsel %vm942, %v1877, 0
        %v1884 = vsel %vm1661, %v1879, 0
        %1886 = vmatprep.subr.bf16.mxu0 0
        %1887 = vmatpush1.bf16.msra.mxu0 0
        %1888 = vmatprep.subr.bf16.mxu0 0
        %1889 = vmatpush1.bf16.msra.mxu0 0
        %1890 = vmatprep.subr.bf16.mxu0 0
        %1891 = vmatpush1.bf16.msra.mxu0 0
        %1892 = vmatprep.subr.bf16.mxu0 0
        %1893 = vmatpush1.bf16.msra.mxu0 0
        %1894 = vmatprep.subr.bf16.mxu0 0
        %1895 = vmatpush1.bf16.msra.mxu0 0
        %1896 = vmatprep.subr.bf16.mxu0 0
        %1897 = vmatpush1.bf16.msra.mxu0 0
        %1898 = vmatprep.subr.bf16.mxu0 0
        %1899 = vmatpush1.bf16.msra.mxu0 0
        %1900 = vmatprep.subr.bf16.mxu0 0
        %1901 = vmatpush1.bf16.msra.mxu0 %v1884
        %1902 = vmatprep.subr.bf16.mxu0 0
        %1903 = vmatpush2.bf16.msra.mxu0 0
        %1904 = vmatprep.subr.bf16.mxu0 0
        %1905 = vmatpush2.bf16.msra.mxu0 0
        %1906 = vmatprep.subr.bf16.mxu0 0
        %1907 = vmatpush2.bf16.msra.mxu0 0
        %1908 = vmatprep.subr.bf16.mxu0 0
        %1909 = vmatpush2.bf16.msra.mxu0 0
        %1910 = vmatprep.subr.bf16.mxu0 0
        %1911 = vmatpush2.bf16.msra.mxu0 0
        %1912 = vmatprep.subr.bf16.mxu0 0
        %1913 = vmatpush2.bf16.msra.mxu0 0
        %1914 = vmatprep.subr.bf16.mxu0 0
        %1915 = vmatpush2.bf16.msra.mxu0 0
        %1916 = vmatprep.subr.bf16.mxu0 0
        %1917 = vmatpush2.bf16.msra.mxu0 0
        %1918 = vmatprep.mubr.bf16.mxu0 0
        %1919 = vmatmul.mubr.bf16.gmra.mxu0 %v1881
        %v1920 = vpop.f32.mrf.mxu0
        %v1921 = vadd.f32 0.0, %v1920
        %v1922 = vpop.f32.mrf.mxu0
        %v1923 = vpop.f32.mrf.mxu0
        %v1924 = vpop.f32.mrf.mxu0
        %1925 = vdwg.mxu0
        %v1926 = vrcp.pop %v1876
        %v1927 = vmul.f32 %v1921, %v1926
        %s1928 = scalar_lea.vmem [#allocation4], 12
        %v1929 = vld [vmem:[%s1928] sm:$0xf]
        %1930 = vrot.lane.b32.xlu0 %v1593, 104
        %v1931 = vpop.permute.xlu0 %1930
        %v1933 = vsel %vm942, %v1931, 0
        %v1936 = vsel %vm942, %v1929, 0
        %1938 = vmatprep.subr.bf16.mxu0 0
        %1939 = vmatpush1.bf16.xpose.msra.mxu0 0
        %1940 = vmatprep.subr.bf16.mxu0 0
        %1941 = vmatpush1.bf16.xpose.msra.mxu0 0
        %1942 = vmatprep.subr.bf16.mxu0 0
        %1943 = vmatpush1.bf16.xpose.msra.mxu0 0
        %1944 = vmatprep.subr.bf16.mxu0 0
        %1945 = vmatpush1.bf16.xpose.msra.mxu0 0
        %1946 = vmatprep.subr.bf16.mxu0 0
        %1947 = vmatpush1.bf16.xpose.msra.mxu0 0
        %1948 = vmatprep.subr.bf16.mxu0 0
        %1949 = vmatpush1.bf16.xpose.msra.mxu0 0
        %1950 = vmatprep.subr.bf16.mxu0 0
        %1951 = vmatpush1.bf16.xpose.msra.mxu0 0
        %1952 = vmatprep.subr.bf16.mxu0 0
        %1953 = vmatpush1.bf16.xpose.msra.mxu0 %v1936
        %1954 = vmatprep.subr.bf16.mxu0 0
        %1955 = vmatpush2.bf16.xpose.msra.mxu0 0
        %1956 = vmatprep.subr.bf16.mxu0 0
        %1957 = vmatpush2.bf16.xpose.msra.mxu0 0
        %1958 = vmatprep.subr.bf16.mxu0 0
        %1959 = vmatpush2.bf16.xpose.msra.mxu0 0
        %1960 = vmatprep.subr.bf16.mxu0 0
        %1961 = vmatpush2.bf16.xpose.msra.mxu0 0
        %1962 = vmatprep.subr.bf16.mxu0 0
        %1963 = vmatpush2.bf16.xpose.msra.mxu0 0
        %1964 = vmatprep.subr.bf16.mxu0 0
        %1965 = vmatpush2.bf16.xpose.msra.mxu0 0
        %1966 = vmatprep.subr.bf16.mxu0 0
        %1967 = vmatpush2.bf16.xpose.msra.mxu0 0
        %1968 = vmatprep.subr.bf16.mxu0 0
        %1969 = vmatpush2.bf16.xpose.msra.mxu0 0
        %1970 = vmatprep.mubr.bf16.mxu0 0
        %1971 = vmatmul.mubr.bf16.gmra.mxu0 %v1933
        %v1972 = vpop.f32.mrf.mxu0
        %v1973 = vadd.f32 %v1599, %v1972
        %v1974 = vpop.f32.mrf.mxu0
        %v1975 = vpop.f32.mrf.mxu0
        %v1976 = vpop.f32.mrf.mxu0
        %1977 = vdwg.mxu0
        %v1978 = vsel %vm942, %v1973, -inf
        %1979 = vmax.xlane.f32.xlu0 %v1978
        %v1980 = vpop.xlane.xlu0 %1979
        %v1981 = vsub.f32 %v1973, %v1980
        %v1982 = vmul.f32 %v1981, 1.442695
        %v1983 = vpow.pop %v1982
        %v1984 = vsel %vm942, %v1983, 0.0
        %1985 = vadd.xlane.f32.xlu0 %v1984
        %v1986 = vpop.xlane.xlu0 %1985
        %v1987 = vpack.c.bf16 %v1983, %v1983
        %s1988 = scalar_lea.vmem [#allocation5], 12
        %v1989 = vld [vmem:[%s1988] sm:$0xf]
        %v1991 = vsel %vm942, %v1987, 0
        %v1994 = vsel %vm1661, %v1989, 0
        %1996 = vmatprep.subr.bf16.mxu0 0
        %1997 = vmatpush1.bf16.msra.mxu0 0
        %1998 = vmatprep.subr.bf16.mxu0 0
        %1999 = vmatpush1.bf16.msra.mxu0 0
        %2000 = vmatprep.subr.bf16.mxu0 0
        %2001 = vmatpush1.bf16.msra.mxu0 0
        %2002 = vmatprep.subr.bf16.mxu0 0
        %2003 = vmatpush1.bf16.msra.mxu0 0
        %2004 = vmatprep.subr.bf16.mxu0 0
        %2005 = vmatpush1.bf16.msra.mxu0 0
        %2006 = vmatprep.subr.bf16.mxu0 0
        %2007 = vmatpush1.bf16.msra.mxu0 0
        %2008 = vmatprep.subr.bf16.mxu0 0
        %2009 = vmatpush1.bf16.msra.mxu0 0
        %2010 = vmatprep.subr.bf16.mxu0 0
        %2011 = vmatpush1.bf16.msra.mxu0 %v1994
        %2012 = vmatprep.subr.bf16.mxu0 0
        %2013 = vmatpush2.bf16.msra.mxu0 0
        %2014 = vmatprep.subr.bf16.mxu0 0
        %2015 = vmatpush2.bf16.msra.mxu0 0
        %2016 = vmatprep.subr.bf16.mxu0 0
        %2017 = vmatpush2.bf16.msra.mxu0 0
        %2018 = vmatprep.subr.bf16.mxu0 0
        %2019 = vmatpush2.bf16.msra.mxu0 0
        %2020 = vmatprep.subr.bf16.mxu0 0
        %2021 = vmatpush2.bf16.msra.mxu0 0
        %2022 = vmatprep.subr.bf16.mxu0 0
        %2023 = vmatpush2.bf16.msra.mxu0 0
        %2024 = vmatprep.subr.bf16.mxu0 0
        %2025 = vmatpush2.bf16.msra.mxu0 0
        %2026 = vmatprep.subr.bf16.mxu0 0
        %2027 = vmatpush2.bf16.msra.mxu0 0
        %2028 = vmatprep.mubr.bf16.mxu0 0
        %2029 = vmatmul.mubr.bf16.gmra.mxu0 %v1991
        %v2030 = vpop.f32.mrf.mxu0
        %v2031 = vadd.f32 0.0, %v2030
        %v2032 = vpop.f32.mrf.mxu0
        %v2033 = vpop.f32.mrf.mxu0
        %v2034 = vpop.f32.mrf.mxu0
        %2035 = vdwg.mxu0
        %v2036 = vrcp.pop %v1986
        %v2037 = vmul.f32 %v2031, %v2036
        %2039 = vrot.lane.b32.xlu0 %v1817, 8
        %v2040 = vpop.permute.xlu0 %2039
        %2043 = vrot.lane.b32.xlu0 %v1927, 16
        %v2044 = vpop.permute.xlu0 %2043
        %2047 = vrot.lane.b32.xlu0 %v2037, 24
        %v2048 = vpop.permute.xlu0 %2047
        %v2050 = vsel %vm942, %v1706, %v2040
        %v2051 = vsel %vm989, %v2050, %v2044
        %v2052 = vsel %vm1428, %v2051, %v2048
        %v2053 = vpack.c.bf16 %v2052, %v2052
        %v2054 = vlaneseq
        %v2055 = vshrl.u32 %v2054, 7
        %v2056 = vsub.s32 7, %v2055
        %v2057 = vrot.slane %v577, %v2056
        %v2062 = vunpack.c.l.b16 %v1529
        %v2063 = vunpack.c.l.b16 %v1530
        %v2064 = vunpack.c.l.b16 %v1531
        %v2065 = vunpack.c.l.b16 %v1532
        %v2066 = vpack.c.b16 %v2063, %v2062
        %v2067 = vpack.c.b16 %v2065, %v2064
        %v2071 = vsel %vm890, %v2053, 0
        %2073 = vmatprep.subr.bf16.mxu0 0
        %2074 = vmatpush1.bf16.msra.mxu0 0
        %2075 = vmatprep.subr.bf16.mxu0 0
        %2076 = vmatpush1.bf16.msra.mxu0 0
        %2077 = vmatprep.subr.bf16.mxu0 0
        %2078 = vmatpush1.bf16.msra.mxu0 0
        %2079 = vmatprep.subr.bf16.mxu0 0
        %2080 = vmatpush1.bf16.msra.mxu0 0
        %2081 = vmatprep.subr.bf16.mxu0 0
        %2082 = vmatpush1.bf16.msra.mxu0 0
        %2083 = vmatprep.subr.bf16.mxu0 0
        %2084 = vmatpush1.bf16.msra.mxu0 0
        %2085 = vmatprep.subr.bf16.mxu0 0
        %2086 = vmatpush1.bf16.msra.mxu0 %v2067
        %2087 = vmatprep.subr.bf16.mxu0 0
        %2088 = vmatpush1.bf16.msra.mxu0 %v2066
        %2089 = vmatprep.subr.bf16.mxu0 0
        %2090 = vmatpush2.bf16.msra.mxu0 0
        %2091 = vmatprep.subr.bf16.mxu0 0
        %2092 = vmatpush2.bf16.msra.mxu0 0
        %2093 = vmatprep.subr.bf16.mxu0 0
        %2094 = vmatpush2.bf16.msra.mxu0 0
        %2095 = vmatprep.subr.bf16.mxu0 0
        %2096 = vmatpush2.bf16.msra.mxu0 0
        %2097 = vmatprep.subr.bf16.mxu0 0
        %2098 = vmatpush2.bf16.msra.mxu0 0
        %2099 = vmatprep.subr.bf16.mxu0 0
        %2100 = vmatpush2.bf16.msra.mxu0 0
        %2101 = vmatprep.subr.bf16.mxu0 0
        %2102 = vmatpush2.bf16.msra.mxu0 0
        %2103 = vmatprep.subr.bf16.mxu0 0
        %2104 = vmatpush2.bf16.msra.mxu0 0
        %2105 = vmatprep.mubr.bf16.mxu0 0
        %2106 = vmatmul.mubr.bf16.gmra.mxu0 %v2071
        %v2107 = vpop.f32.mrf.mxu0
        %v2108 = vadd.f32 %v2057, %v2107
        %v2109 = vpop.f32.mrf.mxu0
        %v2110 = vpop.f32.mrf.mxu0
        %v2111 = vpop.f32.mrf.mxu0
        %2112 = vdwg.mxu0
        %v2113 = vadd.f32 %v1521, %v2108
        %v2114 = vsel %vm890, %v2113, 0.0
        %2115 = vadd.xlane.f32.xlu0 %v2114
        %v2116 = vpop.xlane.xlu0 %2115
        %v2117 = vmul.f32 %v2116, %v1494
        %v2118 = vsub.f32 %v2113, %v2117
        %v2119 = vmul.f32 %v2118, %v2118
        %v2120 = vsel %vm890, %v2119, 0.0
        %2121 = vadd.xlane.f32.xlu0 %v2120
        %v2122 = vpop.xlane.xlu0 %2121
        %v2123 = vmul.f32 %v2122, 0.032258064
        %v2124 = vlaneseq
        %v2125 = vshrl.u32 %v2124, 7
        %v2126 = vsub.s32 3, %v2125
        %v2127 = vrot.slane %v578, %v2126
        %v2128 = vmul.f32 %v2127, %v2118
        %v2129 = vrsqrt.pop %v2123
        %v2130 = vmul.f32 %v2123, %v2129
        %vm2131 = vcmp.eq.f32.partialorder %v2123, inf
        %v2132 = vsel %vm2131, %v2123, %v2130
        %vm2133 = vcmp.eq.f32.partialorder %v2123, 0.0
        %v2134 = vand.u32 %v2123, 2147483648
        %v2135 = vsel %vm2133, %v2134, %v2132
        %v2136 = vadd.f32 %v2135, 1e-06
        %v2137 = vrcp.pop %v2136
        %v2138 = vmul.f32 %v2128, %v2137
        %v2139 = vlaneseq
        %v2140 = vshrl.u32 %v2139, 7
        %v2141 = vsub.s32 4, %v2140
        %v2142 = vrot.slane %v578, %v2141
        %v2143 = vadd.f32 %v2138, %v2142
        %v2144 = vpack.c.bf16 %v2143, %v2143
        %v2145 = vld [vmem:[#allocation15] sm:$0xf]
        %v2146 = vld [vmem:[#allocation15 + $0x4] sm:$0xf]
        %v2147 = vld [vmem:[#allocation15 + $0x8] sm:$0xf]
        %v2148 = vld [vmem:[#allocation15 + $0xc] sm:$0xf]
        %v2149 = vld [vmem:[#allocation17] sm:$0x1]
        %v2151 = vlaneseq
        %v2152 = vshrl.u32 %v2151, 7
        %v2153 = vsub.s32 0, %v2152
        %v2154 = vrot.slane %v2149, %v2153
        %v2160 = vunpack.c.l.b16 %v2145
        %v2161 = vunpack.c.l.b16 %v2146
        %v2162 = vunpack.c.l.b16 %v2147
        %v2163 = vunpack.c.l.b16 %v2148
        %v2164 = vpack.c.b16 %v2161, %v2160
        %v2165 = vpack.c.b16 %v2163, %v2162
        %v2169 = vsel %vm890, %v2144, 0
        %2171 = vmatprep.subr.bf16.mxu0 0
        %2172 = vmatpush1.bf16.msra.mxu0 0
        %2173 = vmatprep.subr.bf16.mxu0 0
        %2174 = vmatpush1.bf16.msra.mxu0 0
        %2175 = vmatprep.subr.bf16.mxu0 0
        %2176 = vmatpush1.bf16.msra.mxu0 0
        %2177 = vmatprep.subr.bf16.mxu0 0
        %2178 = vmatpush1.bf16.msra.mxu0 0
        %2179 = vmatprep.subr.bf16.mxu0 0
        %2180 = vmatpush1.bf16.msra.mxu0 0
        %2181 = vmatprep.subr.bf16.mxu0 0
        %2182 = vmatpush1.bf16.msra.mxu0 0
        %2183 = vmatprep.subr.bf16.mxu0 0
        %2184 = vmatpush1.bf16.msra.mxu0 %v2165
        %2185 = vmatprep.subr.bf16.mxu0 0
        %2186 = vmatpush1.bf16.msra.mxu0 %v2164
        %2187 = vmatprep.subr.bf16.mxu0 0
        %2188 = vmatpush2.bf16.msra.mxu0 0
        %2189 = vmatprep.subr.bf16.mxu0 0
        %2190 = vmatpush2.bf16.msra.mxu0 0
        %2191 = vmatprep.subr.bf16.mxu0 0
        %2192 = vmatpush2.bf16.msra.mxu0 0
        %2193 = vmatprep.subr.bf16.mxu0 0
        %2194 = vmatpush2.bf16.msra.mxu0 0
        %2195 = vmatprep.subr.bf16.mxu0 0
        %2196 = vmatpush2.bf16.msra.mxu0 0
        %2197 = vmatprep.subr.bf16.mxu0 0
        %2198 = vmatpush2.bf16.msra.mxu0 0
        %2199 = vmatprep.subr.bf16.mxu0 0
        %2200 = vmatpush2.bf16.msra.mxu0 0
        %2201 = vmatprep.subr.bf16.mxu0 0
        %2202 = vmatpush2.bf16.msra.mxu0 0
        %2203 = vmatprep.mubr.bf16.mxu0 0
        %2204 = vmatmul.mubr.bf16.gmra.mxu0 %v2169
        %v2205 = vpop.f32.mrf.mxu0
        %v2206 = vadd.f32 %v2154, %v2205
        %v2207 = vpop.f32.mrf.mxu0
        %v2208 = vpop.f32.mrf.mxu0
        %v2209 = vpop.f32.mrf.mxu0
        %2210 = vdwg.mxu0
        %v2211 = vmax.f32 %v2206, 0.0
        %v2212 = vpack.c.bf16 %v2211, %v2211
        %v2213 = vld [vmem:[%s9] sm:$0xf]
        %v2214 = vld [vmem:[%s9 + $0x4] sm:$0xf]
        %v2215 = vld [vmem:[%s9 + $0x8] sm:$0xf]
        %v2216 = vld [vmem:[%s9 + $0xc] sm:$0xf]
        %v2217 = vld [vmem:[%s9 + $0x10] sm:$0xf]
        %v2218 = vld [vmem:[%s9 + $0x14] sm:$0xf]
        %v2219 = vld [vmem:[%s9 + $0x18] sm:$0xf]
        %v2220 = vld [vmem:[%s9 + $0x1c] sm:$0xf]
        %v2221 = vlaneseq
        %v2222 = vshrl.u32 %v2221, 7
        %v2223 = vsub.s32 0, %v2222
        %v2224 = vrot.slane %v578, %v2223
        %v2233 = vunpack.c.l.b16 %v2213
        %v2234 = vunpack.c.l.b16 %v2214
        %v2235 = vunpack.c.l.b16 %v2215
        %v2236 = vunpack.c.l.b16 %v2216
        %v2237 = vunpack.c.l.b16 %v2217
        %v2238 = vunpack.c.l.b16 %v2218
        %v2239 = vunpack.c.l.b16 %v2219
        %v2240 = vunpack.c.l.b16 %v2220
        %v2241 = vpack.c.b16 %v2234, %v2233
        %v2242 = vpack.c.b16 %v2236, %v2235
        %v2243 = vpack.c.b16 %v2238, %v2237
        %v2244 = vpack.c.b16 %v2240, %v2239
        %vm2249 = vcmask 523264
        %v2251 = vsel %vm2249, %v2212, 0
        %2253 = vmatprep.subr.bf16.mxu0 0
        %2254 = vmatpush1.bf16.msra.mxu0 0
        %2255 = vmatprep.subr.bf16.mxu0 0
        %2256 = vmatpush1.bf16.msra.mxu0 0
        %2257 = vmatprep.subr.bf16.mxu0 0
        %2258 = vmatpush1.bf16.msra.mxu0 0
        %2259 = vmatprep.subr.bf16.mxu0 0
        %2260 = vmatpush1.bf16.msra.mxu0 0
        %2261 = vmatprep.subr.bf16.mxu0 0
        %2262 = vmatpush1.bf16.msra.mxu0 %v2244
        %2263 = vmatprep.subr.bf16.mxu0 0
        %2264 = vmatpush1.bf16.msra.mxu0 %v2243
        %2265 = vmatprep.subr.bf16.mxu0 0
        %2266 = vmatpush1.bf16.msra.mxu0 %v2242
        %2267 = vmatprep.subr.bf16.mxu0 0
        %2268 = vmatpush1.bf16.msra.mxu0 %v2241
        %2269 = vmatprep.subr.bf16.mxu0 0
        %2270 = vmatpush2.bf16.msra.mxu0 0
        %2271 = vmatprep.subr.bf16.mxu0 0
        %2272 = vmatpush2.bf16.msra.mxu0 0
        %2273 = vmatprep.subr.bf16.mxu0 0
        %2274 = vmatpush2.bf16.msra.mxu0 0
        %2275 = vmatprep.subr.bf16.mxu0 0
        %2276 = vmatpush2.bf16.msra.mxu0 0
        %2277 = vmatprep.subr.bf16.mxu0 0
        %2278 = vmatpush2.bf16.msra.mxu0 0
        %2279 = vmatprep.subr.bf16.mxu0 0
        %2280 = vmatpush2.bf16.msra.mxu0 0
        %2281 = vmatprep.subr.bf16.mxu0 0
        %2282 = vmatpush2.bf16.msra.mxu0 0
        %2283 = vmatprep.subr.bf16.mxu0 0
        %2284 = vmatpush2.bf16.msra.mxu0 0
        %2285 = vmatprep.mubr.bf16.mxu0 0
        %2286 = vmatmul.mubr.bf16.gmra.mxu0 %v2251
        %v2287 = vpop.f32.mrf.mxu0
        %v2288 = vadd.f32 %v2224, %v2287
        %v2289 = vpop.f32.mrf.mxu0
        %v2290 = vpop.f32.mrf.mxu0
        %v2291 = vpop.f32.mrf.mxu0
        %2292 = vdwg.mxu0
        %v2293 = vadd.f32 %v2143, %v2288
        %v2294 = vsel %vm890, %v2293, 0.0
        %2295 = vadd.xlane.f32.xlu0 %v2294
        %v2296 = vpop.xlane.xlu0 %2295
        %v2297 = vmul.f32 %v2296, %v1494
        %v2298 = vsub.f32 %v2293, %v2297
        %v2299 = vmul.f32 %v2298, %v2298
        %v2300 = vsel %vm890, %v2299, 0.0
        %2301 = vadd.xlane.f32.xlu0 %v2300
        %v2302 = vpop.xlane.xlu0 %2301
        %v2303 = vmul.f32 %v2302, 0.032258064
        %v2304 = vlaneseq
        %v2305 = vshrl.u32 %v2304, 7
        %v2306 = vsub.s32 5, %v2305
        %v2307 = vrot.slane %v578, %v2306
        %v2308 = vmul.f32 %v2307, %v2298
        %v2309 = vrsqrt.pop %v2303
        %v2310 = vmul.f32 %v2303, %v2309
        %vm2311 = vcmp.eq.f32.partialorder %v2303, inf
        %v2312 = vsel %vm2311, %v2303, %v2310
        %vm2313 = vcmp.eq.f32.partialorder %v2303, 0.0
        %v2314 = vand.u32 %v2303, 2147483648
        %v2315 = vsel %vm2313, %v2314, %v2312
        %v2316 = vadd.f32 %v2315, 1e-06
        %v2317 = vrcp.pop %v2316
        %v2318 = vmul.f32 %v2308, %v2317
        %v2319 = vlaneseq
        %v2320 = vshrl.u32 %v2319, 7
        %v2321 = vsub.s32 6, %v2320
        %v2322 = vrot.slane %v578, %v2321
        %v2323 = vadd.f32 %v2318, %v2322
        %2324 = vst.msk [vmem:[%s566] sm:$0xff] %vm890, %v2323
        %s2325 = sand.u32 %s309, 1
        %s2326 = scalar_lea.sflag [#allocation8], %s2325
        %s2327 = sand.u32 %s309, 1
        %s2328 = smul.addr %s2327, 8
        %s2329 = scalar_lea.vmem [#allocation20], %s2328
        // Predicated region
        $region101: #{tpu_custom_call.1} parent=63 // pred_check
          %p2330 = pneg %p319
        $region102: #{tpu_custom_call.1} parent=63 // pred_check_branch
          %2332 = sbr.rel (%p2330) target = $region104
        $region103: #{tpu_custom_call.1} parent=63 // pred_region
          %s2334 = ssub.s32 128, 128
          %2335 = vsyncadd %s2326, %s2334
          %s2336 = smul.addr %s38, 2
          %s2337 = sadd.s32 %s39, %s2336
          %s2338 = smul.addr %s2337, 128
          %s2339 = scalar_lea.hbm %s11, %s2338
          %s2341 = sshll.u32 %s2329, 4
          %s2342 = int_to_ptr.vmem [resolvable:$true] %s2341
          %2344 = dma.vmem_to_hbm [thread:$0]  %s2342, 128, %s2339, %s2326
        $region104: #{tpu_custom_call.1} parent=63 // pred_fallthru
          _
      $region64: #{tpu_custom_call.1} parent=5 // pred_fallthru
        _
      %p2345 = scmp.le.s32.totalorder 2, %s29
      // Predicated region
      $region105: #{tpu_custom_call.1} parent=5 // pred_check
        %p2346 = pneg %p2345
      $region106: #{tpu_custom_call.1} parent=5 // pred_check_branch
        %2348 = sbr.rel (%p2346) target = $region108
      $region107: #{tpu_custom_call.1} parent=5 // pred_region
        %s2349 = ssub.s32 %s29, 2
        // Predicated region
        $region109: #{tpu_custom_call.1} parent=107 // pred_check
          %p2350 = pneg %p325
        $region110: #{tpu_custom_call.1} parent=107 // pred_check_branch
          %2352 = sbr.rel (%p2350) target = $region112
        $region111: #{tpu_custom_call.1} parent=107 // pred_region
          %s2353 = sand.u32 %s310, 1
          %s2354 = scalar_lea.sflag [#allocation8], %s2353
          %s2355 = sand.u32 %s310, 1
          %s2356 = smul.addr %s2355, 8
          %s2357 = scalar_lea.vmem [#allocation20], %s2356
          %2358 = dma.done %s2354, 128
        $region112: #{tpu_custom_call.1} parent=107 // pred_fallthru
          _
      $region108: #{tpu_custom_call.1} parent=5 // pred_fallthru
        _
    $region6: #{tpu_custom_call.1} parent=1 // loop_footer
      %s33 = sadd.s32 1, %s29
    $region7: #{tpu_custom_call.1} parent=1 // loop_footer_branch
      %28 = sbr.rel target = $region3
    $region8: #{tpu_custom_call.1} parent=1 // loop_exit
      _
    %2359 = vsyncpa [#allocation7], 1
    %s2360 = scalar_lea.sflag [#allocation7], 1
    %2361 = vsyncpa %s2360, 1
    %2362 = vsyncpa [#allocation10], 1
    %s2363 = scalar_lea.sflag [#allocation10], 1
    %2364 = vsyncpa %s2363, 1
    %2365 = vsyncpa [#allocation13], 1
    %2366 = vsyncpa [#allocation16], 1
    %2367 = vsyncpa [#allocation19], 1
    %2368 = vsyncpa [#allocation8], 1
    %s2369 = scalar_lea.sflag [#allocation8], 1
    %2370 = vsyncpa %s2369, 1

</llo_original>
